<compile_context>
chip_gen: v6e
topology: v6e:2x2x1
jax: 0.10.0
libtpu: 0.0.40
codegen_flags: <defaults>
</compile_context>

<pallas_src>
import functools

import jax
import jax.numpy as jnp
from jax.experimental import pallas as pl
from jax.experimental.pallas import tpu as pltpu

LANE = 128
SUBLANE = 8


def _ceil_to(x, m):
    return ((x + m - 1) // m) * m


# ---------------------------------------------------------------------------
# Fused Pallas kernel: L-layer LSTM (time-major) + tanh + fc epilogue.
# ---------------------------------------------------------------------------
def fused_lstm_fc_kernel(*args, num_layers, seq_len, batch_p, hidden_p):
    """args = [x, (w_ih, w_hh, b) * L, fc_w, fc_b] + [out] + [gx_sc, seq_sc].

    x      : [S*Bp, Ein_p]   f32, padded, time-major, flattened sequence
    w_ih_l : [Din_p, 4*Hp]   bf16, per-gate padded (gate k in cols [k*Hp,...))
    w_hh_l : [Hp, 4*Hp]      bf16
    b_l    : [1, 4*Hp]       f32
    fc_w   : [2*L*Hp, Eout_p] bf16, rows: [h_0 | c_0 | h_1 | c_1 | ...]
    fc_b   : [1, Eout_p]     f32
    out    : [Bp, Eout_p]    f32
    gx_sc  : [S*Bp, 4*Hp]    f32 hoisted input-projection scratch (reused/layer)
    seq_sc : [S*Bp, Hp]      f32 inter-layer sequence scratch
    """
    n_in = 1 + 3 * num_layers + 2
    x_ref = args[0]
    layer_refs = args[1:1 + 3 * num_layers]
    fc_w_ref = args[n_in - 2]
    fc_b_ref = args[n_in - 1]
    out_ref = args[n_in]
    gx_sc = args[n_in + 1]
    seq_sc = args[n_in + 2]

    S, Bp, Hp, L = seq_len, batch_p, hidden_p, num_layers

    def cell_step(gates, c):
        # Gate math and state stay in f32 (bf16 only at the MXU operands).
        i_g = jax.nn.sigmoid(gates[:, 0 * Hp:1 * Hp])
        f_g = jax.nn.sigmoid(gates[:, 1 * Hp:2 * Hp])
        g_g = jnp.tanh(gates[:, 2 * Hp:3 * Hp])
        o_g = jax.nn.sigmoid(gates[:, 3 * Hp:4 * Hp])
        c_new = f_g * c + i_g * g_g
        h_new = o_g * jnp.tanh(c_new)
        return h_new, c_new

    feats = []
    for l in range(L):
        w_ih = layer_refs[3 * l][...]        # bf16 [Din_p, 4Hp]
        w_hh = layer_refs[3 * l + 1][...]    # bf16 [Hp, 4Hp]
        b = layer_refs[3 * l + 2][...]       # f32  [1, 4Hp]

        # --- Hoisted input projection: one big bf16 MXU call for the whole
        # sequence (tanh of the BERT output fused into layer 0, bias folded).
        if l == 0:
            xin = jnp.tanh(x_ref[...])                       # [S*Bp, Ein_p]
        else:
            xin = seq_sc[...]                                # [S*Bp, Hp]
        gx_sc[...] = (jnp.dot(xin.astype(w_ih.dtype), w_ih,
                              preferred_element_type=jnp.float32)
                      + b)                                   # [S*Bp, 4*Hp]

        # --- t = 0 peeled: h is all-zeros so the recurrence matmul is dead.
        h, c = cell_step(gx_sc[0:Bp, :], jnp.zeros((Bp, Hp), jnp.float32))
        if l + 1 < L:
            seq_sc[0:Bp, :] = h

        # --- Serial recurrence: only h @ W_hh remains on the critical path.
        # All slices are 8-sublane / 128-lane aligned.
        if S <= 32:
            # Short static S: full Python unroll (LLO scheduler visibility).
            for t in range(1, S):
                r = t * Bp
                gates = gx_sc[r:r + Bp, :] + jnp.dot(
                    h.astype(w_hh.dtype), w_hh,
                    preferred_element_type=jnp.float32)      # [Bp, 4*Hp]
                h, c = cell_step(gates, c)
                if l + 1 < L:                # feed next layer (skip on last)
                    seq_sc[r:r + Bp, :] = h
        else:
            # Production S: bounded unroll fori_loop to avoid code-size /
            # vreg-spill blowup of a full unroll.
            def body(t, carry, _l=l):
                h_t, c_t = carry
                r = pl.multiple_of(t * Bp, Bp)
                gates = gx_sc[pl.ds(r, Bp), :] + jnp.dot(
                    h_t.astype(w_hh.dtype), w_hh,
                    preferred_element_type=jnp.float32)
                h_n, c_n = cell_step(gates, c_t)
                if _l + 1 < L:
                    seq_sc[pl.ds(r, Bp), :] = h_n
                return h_n, c_n

            h, c = jax.lax.fori_loop(1, S, body, (h, c), unroll=4)

        feats.append((h, c))

    # --- Epilogue: fc(tanh(cat(hidden, cell))) as ONE MXU call.  The lane-axis
    # concat of 128-aligned blocks is layout-free; K = 2L*Hp fills the MXU.
    blocks = []
    for (h, c) in feats:
        blocks.append(jnp.tanh(h))
        blocks.append(jnp.tanh(c))
    feat = jnp.concatenate(blocks, axis=-1).astype(fc_w_ref.dtype)  # [Bp, 2L*Hp]
    out = jnp.dot(feat, fc_w_ref[...],
                  preferred_element_type=jnp.float32) + fc_b_ref[...]
    out_ref[...] = out.astype(out_ref.dtype)


def fused_forward_call(x_p, padded, *, num_layers, seq_len, batch_p, hidden_p,
                       out_p):
    kernel = functools.partial(fused_lstm_fc_kernel, num_layers=num_layers,
                               seq_len=seq_len, batch_p=batch_p,
                               hidden_p=hidden_p)
    inputs = [x_p]
    for lw in padded["layers"]:
        inputs += [lw["w_ih_p"], lw["w_hh_p"], lw["b_p"]]
    inputs += [padded["fc_w_p"], padded["fc_b_p"]]
    n_in = len(inputs)
    sb = seq_len * batch_p

    # Explicit VMEM budget: resident inputs + output + scratch, ~25% headroom,
    # floored at 32 MiB (<= default scoped limit on v6e/v7x, < v5e physical),
    # capped below v7x headroom concerns.
    in_bytes = sum(int(a.size) * a.dtype.itemsize for a in inputs)
    out_bytes = batch_p * out_p * 4
    sc_bytes = sb * (4 * hidden_p) * 4 + sb * hidden_p * 4
    vmem_limit = min(max(int(1.25 * (in_bytes + out_bytes + sc_bytes))
                         + (4 << 20), 32 << 20), 96 << 20)

    return pl.pallas_call(
        kernel,
        out_shape=jax.ShapeDtypeStruct((batch_p, out_p), jnp.float32),
        in_specs=[pl.BlockSpec(memory_space=pltpu.MemorySpace.VMEM)] * n_in,
        out_specs=pl.BlockSpec(memory_space=pltpu.MemorySpace.VMEM),
        scratch_shapes=[pltpu.VMEM((sb, 4 * hidden_p), jnp.float32),
                        pltpu.VMEM((sb, hidden_p), jnp.float32)],
        compiler_params=pltpu.CompilerParams(vmem_limit_bytes=vmem_limit),
    )(*inputs)


# ---------------------------------------------------------------------------
# Parameter construction + lane/sublane padding (per-gate aware, bf16 weights).
# ---------------------------------------------------------------------------
def init_params(key, *, vocab_size, word_embed_size, num_layers, hidden_size,
                embed_size):
    keys = jax.random.split(key, 3 + 3 * num_layers)
    params = {
        "embed_table": 0.1 * jax.random.normal(
            keys[0], (vocab_size, word_embed_size), jnp.float32),
        "layers": [],
    }
    for l in range(num_layers):
        din = word_embed_size if l == 0 else hidden_size
        k_ih, k_hh, k_b = keys[1 + 3 * l: 4 + 3 * l]
        w_ih = 0.1 * jax.random.normal(k_ih, (4 * hidden_size, din), jnp.float32)
        w_hh = 0.1 * jax.random.normal(k_hh, (4 * hidden_size, hidden_size),
                                       jnp.float32)
        b_ih = 0.1 * jax.random.normal(k_b, (4 * hidden_size,), jnp.float32)
        b_hh = jnp.zeros((4 * hidden_size,), jnp.float32)
        params["layers"].append({
            "w_ih_t": w_ih.T,                 # [Din, 4H]  (gate order i,f,g,o)
            "w_hh_t": w_hh.T,                 # [H, 4H]
            "b": (b_ih + b_hh)[None, :],      # [1, 4H]
        })
    fc_in = 2 * num_layers * hidden_size
    params["fc_w_t"] = (0.1 * jax.random.normal(
        keys[-2], (embed_size, fc_in), jnp.float32)).T     # [2LH, E]
    params["fc_b"] = 0.1 * jax.random.normal(
        keys[-1], (embed_size,), jnp.float32)[None, :]     # [1, E]
    return params


def _pad_gate_matrix(w_t, din_p, hp):
    din, four_h = w_t.shape
    h = four_h // 4
    w = w_t.reshape(din, 4, h)
    w = jnp.pad(w, ((0, din_p - din), (0, 0), (0, hp - h)))
    return w.reshape(din_p, 4 * hp)


def _pad_gate_bias(b, hp):
    h = b.shape[0] // 4
    b = jnp.pad(b.reshape(4, h), ((0, 0), (0, hp - h)))
    return b.reshape(1, 4 * hp)


def pad_params(params, *, num_layers, word_embed_size, hidden_size, embed_size):
    hp = _ceil_to(hidden_size, LANE)
    ein_p = _ceil_to(word_embed_size, LANE)
    eout_p = _ceil_to(embed_size, LANE)
    padded = {"layers": [], "hp": hp, "ein_p": ein_p, "eout_p": eout_p}
    for l, lp in enumerate(params["layers"]):
        din_p = ein_p if l == 0 else hp
        padded["layers"].append({
            # Weights stored bf16 (MXU-native); biases stay f32.
            "w_ih_p": _pad_gate_matrix(lp["w_ih_t"], din_p, hp).astype(
                jnp.bfloat16),
            "w_hh_p": _pad_gate_matrix(lp["w_hh_t"], hp, hp).astype(
                jnp.bfloat16),
            "b_p": _pad_gate_bias(lp["b"][0], hp),
        })
    fc_w = params["fc_w_t"].reshape(num_layers, 2, hidden_size, embed_size)
    fc_w = jnp.pad(fc_w, ((0, 0), (0, 0), (0, hp - hidden_size),
                          (0, eout_p - embed_size)))
    padded["fc_w_p"] = fc_w.reshape(num_layers * 2 * hp, eout_p).astype(
        jnp.bfloat16)
    padded["fc_b_p"] = jnp.pad(params["fc_b"],
                               ((0, 0), (0, eout_p - embed_size)))
    return padded


# ---------------------------------------------------------------------------
# BertEmbedder forward (Pallas)
# ---------------------------------------------------------------------------
def bert_embedder_forward(params, padded, question, *, num_layers, embed_size):
    """question: int32 token ids [B, S]  ->  qst_feature [B, embed_size]."""
    B, S = question.shape
    E_in = params["embed_table"].shape[1]
    hp, ein_p, eout_p = padded["hp"], padded["ein_p"], padded["eout_p"]
    # NOTE: the recurrence cost is one serial chain of S matmuls regardless of
    # Bp up to the MXU height, so callers with more batch should pad B up and
    # run one kernel call rather than multiple calls / vmap.
    bp = _ceil_to(max(B, SUBLANE), SUBLANE)

    # TODO(synk): BERT encoder stand-in: deterministic token-embedding lookup.
    # Time-major gather (question.T) avoids a separate [S,B,E] transpose copy.
    x = jnp.take(params["embed_table"], question.T, axis=0)      # [S, B, E_in]
    x = jnp.pad(x, ((0, 0), (0, bp - B), (0, ein_p - E_in)))
    x = x.reshape(S * bp, ein_p)                                 # lane/sublane dense

    out_p = fused_forward_call(x, padded, num_layers=num_layers, seq_len=S,
                               batch_p=bp, hidden_p=hp, out_p=eout_p)
    return out_p[:B, :embed_size]


# ---------------------------------------------------------------------------
# Pure-JAX reference (mirrors the PyTorch forward semantics, f32 weights)
# ---------------------------------------------------------------------------
def reference_forward(params, question):
    qst_vec = jnp.take(params["embed_table"], question, axis=0)
    qst_vec = jnp.tanh(qst_vec)
    x = jnp.transpose(qst_vec, (1, 0, 2))              # [S, B, E]
    S, B, _ = x.shape
    hiddens, cells = [], []
    for lp in params["layers"]:
        H = lp["w_hh_t"].shape[0]
        h = jnp.zeros((B, H), jnp.float32)
        c = jnp.zeros((B, H), jnp.float32)
        ys = []
        for t in range(S):
            gates = x[t] @ lp["w_ih_t"] + h @ lp["w_hh_t"] + lp["b"]
            i_g = jax.nn.sigmoid(gates[:, 0 * H:1 * H])
            f_g = jax.nn.sigmoid(gates[:, 1 * H:2 * H])
            g_g = jnp.tanh(gates[:, 2 * H:3 * H])
            o_g = jax.nn.sigmoid(gates[:, 3 * H:4 * H])
            c = f_g * c + i_g * g_g
            h = o_g * jnp.tanh(c)
            ys.append(h)
        x = jnp.stack(ys, axis=0)
        hiddens.append(h)
        cells.append(c)
    hidden = jnp.stack(hiddens, axis=0)
    cell = jnp.stack(cells, axis=0)
    feat = jnp.concatenate((hidden, cell), axis=2)
    feat = jnp.transpose(feat, (1, 0, 2)).reshape(feat.shape[1], -1)
    return jnp.tanh(feat) @ params["fc_w_t"] + params["fc_b"]


# ---------------------------------------------------------------------------
if __name__ == "__main__":
    batch, seq = 2, 8
    vocab_size = 64
    word_embed_size = 32
    num_layers = 2
    hidden_size = 32
    embed_size = 16

    key = jax.random.PRNGKey(0)
    k_params, k_tok = jax.random.split(key)
    params = init_params(k_params, vocab_size=vocab_size,
                         word_embed_size=word_embed_size,
                         num_layers=num_layers, hidden_size=hidden_size,
                         embed_size=embed_size)
    padded = pad_params(params, num_layers=num_layers,
                        word_embed_size=word_embed_size,
                        hidden_size=hidden_size, embed_size=embed_size)
    question = jax.random.randint(k_tok, (batch, seq), 0, vocab_size,
                                  dtype=jnp.int32)

    out = bert_embedder_forward(params, padded, question,
                                num_layers=num_layers, embed_size=embed_size)
    out = jax.block_until_ready(out)

    ref = jax.block_until_ready(reference_forward(params, question))
    assert out.shape == (batch, embed_size), out.shape
    # Tolerance loosened vs. the f32 reference because weights / matmul LHS
    # are bf16 on the MXU (state and nonlinearities stay f32).
    assert jnp.allclose(out, ref, atol=2e-2, rtol=2e-2), (
        float(jnp.max(jnp.abs(out - ref))))

    print("KERNEL_OK")
</pallas_src>

<mosaic_0001>
module attributes {stable_mosaic.version = 11 : i64} {
  func.func @fused_lstm_fc_kernel(%arg0: memref<64x128xf32, #tpu.memory_space<vmem>>, %arg1: memref<128x512xbf16, #tpu.memory_space<vmem>>, %arg2: memref<128x512xbf16, #tpu.memory_space<vmem>>, %arg3: memref<1x512xf32, #tpu.memory_space<vmem>>, %arg4: memref<128x512xbf16, #tpu.memory_space<vmem>>, %arg5: memref<128x512xbf16, #tpu.memory_space<vmem>>, %arg6: memref<1x512xf32, #tpu.memory_space<vmem>>, %arg7: memref<512x128xbf16, #tpu.memory_space<vmem>>, %arg8: memref<1x128xf32, #tpu.memory_space<vmem>>, %arg9: memref<8x128xf32, #tpu.memory_space<vmem>>, %arg10: memref<64x512xf32, #tpu.memory_space<vmem>>, %arg11: memref<64x128xf32, #tpu.memory_space<vmem>>) attributes {dimension_semantics = [], scalar_prefetch = 0 : i64, scratch_operands = 2 : i64, tpu.core_type = #tpu.core_type<tc>} {
    %c0 = arith.constant 0 : index
    %c0_0 = arith.constant 0 : index
    %0 = vector.load %arg1[%c0, %c0_0] : memref<128x512xbf16, #tpu.memory_space<vmem>>, vector<128x512xbf16>
    %c0_1 = arith.constant 0 : index
    %c0_2 = arith.constant 0 : index
    %1 = vector.load %arg2[%c0_1, %c0_2] : memref<128x512xbf16, #tpu.memory_space<vmem>>, vector<128x512xbf16>
    %c0_3 = arith.constant 0 : index
    %c0_4 = arith.constant 0 : index
    %2 = vector.load %arg3[%c0_3, %c0_4] : memref<1x512xf32, #tpu.memory_space<vmem>>, vector<1x512xf32>
    %c0_5 = arith.constant 0 : index
    %c0_6 = arith.constant 0 : index
    %3 = vector.load %arg0[%c0_5, %c0_6] : memref<64x128xf32, #tpu.memory_space<vmem>>, vector<64x128xf32>
    %4 = math.tanh %3 : vector<64x128xf32>
    %5 = arith.truncf %4 : vector<64x128xf32> to vector<64x128xbf16>
    %cst = arith.constant dense<0.000000e+00> : vector<64x512xf32>
    %6 = tpu.matmul %5, %0, %cst {dimension_numbers = #tpu.dot_dimension_numbers<[1], [0], [0], [1], [0, 0, 1, 1], [], []>} : vector<64x128xbf16>, vector<128x512xbf16>, vector<64x512xf32> -> vector<64x512xf32>
    %7 = vector.broadcast %2 : vector<1x512xf32> to vector<64x512xf32>
    %8 = arith.addf %6, %7 : vector<64x512xf32>
    %c0_7 = arith.constant 0 : index
    %c0_8 = arith.constant 0 : index
    %9 = vector.load %arg10[%c0_7, %c0_8] : memref<64x512xf32, #tpu.memory_space<vmem>>, vector<64x512xf32>
    tpu.vector_store %arg10[%c0_7, %c0_8], %8 {strides = array<i32>} : memref<64x512xf32, #tpu.memory_space<vmem>>, vector<64x512xf32>,
    %c0_9 = arith.constant 0 : index
    %c0_10 = arith.constant 0 : index
    %10 = vector.load %arg10[%c0_9, %c0_10] : memref<64x512xf32, #tpu.memory_space<vmem>>, vector<8x512xf32>
    %cst_11 = arith.constant 0.000000e+00 : f32
    %11 = vector.broadcast %cst_11 : f32 to vector<8x128xf32>
    %12 = vector.extract_strided_slice %10 {offsets = [0, 0], sizes = [8, 128], strides = [1, 1]} : vector<8x512xf32> to vector<8x128xf32>
    %13 = arith.negf %12 : vector<8x128xf32>
    %14 = math.exp %13 : vector<8x128xf32>
    %cst_12 = arith.constant 1.000000e+00 : f32
    %15 = vector.broadcast %cst_12 : f32 to vector<8x128xf32>
    %16 = arith.addf %15, %14 : vector<8x128xf32>
    %17 = arith.divf %15, %16 : vector<8x128xf32>
    %18 = vector.extract_strided_slice %10 {offsets = [0, 128], sizes = [8, 128], strides = [1, 1]} : vector<8x512xf32> to vector<8x128xf32>
    %19 = arith.negf %18 : vector<8x128xf32>
    %20 = math.exp %19 : vector<8x128xf32>
    %cst_13 = arith.constant 1.000000e+00 : f32
    %21 = vector.broadcast %cst_13 : f32 to vector<8x128xf32>
    %22 = arith.addf %21, %20 : vector<8x128xf32>
    %23 = arith.divf %21, %22 : vector<8x128xf32>
    %24 = vector.extract_strided_slice %10 {offsets = [0, 256], sizes = [8, 128], strides = [1, 1]} : vector<8x512xf32> to vector<8x128xf32>
    %25 = math.tanh %24 : vector<8x128xf32>
    %26 = vector.extract_strided_slice %10 {offsets = [0, 384], sizes = [8, 128], strides = [1, 1]} : vector<8x512xf32> to vector<8x128xf32>
    %27 = arith.negf %26 : vector<8x128xf32>
    %28 = math.exp %27 : vector<8x128xf32>
    %cst_14 = arith.constant 1.000000e+00 : f32
    %29 = vector.broadcast %cst_14 : f32 to vector<8x128xf32>
    %30 = arith.addf %29, %28 : vector<8x128xf32>
    %31 = arith.divf %29, %30 : vector<8x128xf32>
    %32 = arith.mulf %23, %11 : vector<8x128xf32>
    %33 = arith.mulf %17, %25 : vector<8x128xf32>
    %34 = arith.addf %32, %33 : vector<8x128xf32>
    %35 = math.tanh %34 : vector<8x128xf32>
    %36 = arith.mulf %31, %35 : vector<8x128xf32>
    %c0_15 = arith.constant 0 : index
    %c0_16 = arith.constant 0 : index
    %37 = vector.load %arg11[%c0_15, %c0_16] : memref<64x128xf32, #tpu.memory_space<vmem>>, vector<8x128xf32>
    tpu.vector_store %arg11[%c0_15, %c0_16], %36 {strides = array<i32>} : memref<64x128xf32, #tpu.memory_space<vmem>>, vector<8x128xf32>,
    %c8 = arith.constant 8 : index
    %c0_17 = arith.constant 0 : index
    %38 = vector.load %arg10[%c8, %c0_17] : memref<64x512xf32, #tpu.memory_space<vmem>>, vector<8x512xf32>
    %39 = arith.truncf %36 : vector<8x128xf32> to vector<8x128xbf16>
    %cst_18 = arith.constant dense<0.000000e+00> : vector<8x512xf32>
    %40 = tpu.matmul %39, %1, %cst_18 {dimension_numbers = #tpu.dot_dimension_numbers<[1], [0], [0], [1], [0, 0, 1, 1], [], []>} : vector<8x128xbf16>, vector<128x512xbf16>, vector<8x512xf32> -> vector<8x512xf32>
    %41 = arith.addf %38, %40 : vector<8x512xf32>
    %42 = vector.extract_strided_slice %41 {offsets = [0, 0], sizes = [8, 128], strides = [1, 1]} : vector<8x512xf32> to vector<8x128xf32>
    %43 = arith.negf %42 : vector<8x128xf32>
    %44 = math.exp %43 : vector<8x128xf32>
    %cst_19 = arith.constant 1.000000e+00 : f32
    %45 = vector.broadcast %cst_19 : f32 to vector<8x128xf32>
    %46 = arith.addf %45, %44 : vector<8x128xf32>
    %47 = arith.divf %45, %46 : vector<8x128xf32>
    %48 = vector.extract_strided_slice %41 {offsets = [0, 128], sizes = [8, 128], strides = [1, 1]} : vector<8x512xf32> to vector<8x128xf32>
    %49 = arith.negf %48 : vector<8x128xf32>
    %50 = math.exp %49 : vector<8x128xf32>
    %cst_20 = arith.constant 1.000000e+00 : f32
    %51 = vector.broadcast %cst_20 : f32 to vector<8x128xf32>
    %52 = arith.addf %51, %50 : vector<8x128xf32>
    %53 = arith.divf %51, %52 : vector<8x128xf32>
    %54 = vector.extract_strided_slice %41 {offsets = [0, 256], sizes = [8, 128], strides = [1, 1]} : vector<8x512xf32> to vector<8x128xf32>
    %55 = math.tanh %54 : vector<8x128xf32>
    %56 = vector.extract_strided_slice %41 {offsets = [0, 384], sizes = [8, 128], strides = [1, 1]} : vector<8x512xf32> to vector<8x128xf32>
    %57 = arith.negf %56 : vector<8x128xf32>
    %58 = math.exp %57 : vector<8x128xf32>
    %cst_21 = arith.constant 1.000000e+00 : f32
    %59 = vector.broadcast %cst_21 : f32 to vector<8x128xf32>
    %60 = arith.addf %59, %58 : vector<8x128xf32>
    %61 = arith.divf %59, %60 : vector<8x128xf32>
    %62 = arith.mulf %53, %34 : vector<8x128xf32>
    %63 = arith.mulf %47, %55 : vector<8x128xf32>
    %64 = arith.addf %62, %63 : vector<8x128xf32>
    %65 = math.tanh %64 : vector<8x128xf32>
    %66 = arith.mulf %61, %65 : vector<8x128xf32>
    %c8_22 = arith.constant 8 : index
    %c0_23 = arith.constant 0 : index
    %67 = vector.load %arg11[%c8_22, %c0_23] : memref<64x128xf32, #tpu.memory_space<vmem>>, vector<8x128xf32>
    tpu.vector_store %arg11[%c8_22, %c0_23], %66 {strides = array<i32>} : memref<64x128xf32, #tpu.memory_space<vmem>>, vector<8x128xf32>,
    %c16 = arith.constant 16 : index
    %c0_24 = arith.constant 0 : index
    %68 = vector.load %arg10[%c16, %c0_24] : memref<64x512xf32, #tpu.memory_space<vmem>>, vector<8x512xf32>
    %69 = arith.truncf %66 : vector<8x128xf32> to vector<8x128xbf16>
    %cst_25 = arith.constant dense<0.000000e+00> : vector<8x512xf32>
    %70 = tpu.matmul %69, %1, %cst_25 {dimension_numbers = #tpu.dot_dimension_numbers<[1], [0], [0], [1], [0, 0, 1, 1], [], []>} : vector<8x128xbf16>, vector<128x512xbf16>, vector<8x512xf32> -> vector<8x512xf32>
    %71 = arith.addf %68, %70 : vector<8x512xf32>
    %72 = vector.extract_strided_slice %71 {offsets = [0, 0], sizes = [8, 128], strides = [1, 1]} : vector<8x512xf32> to vector<8x128xf32>
    %73 = arith.negf %72 : vector<8x128xf32>
    %74 = math.exp %73 : vector<8x128xf32>
    %cst_26 = arith.constant 1.000000e+00 : f32
    %75 = vector.broadcast %cst_26 : f32 to vector<8x128xf32>
    %76 = arith.addf %75, %74 : vector<8x128xf32>
    %77 = arith.divf %75, %76 : vector<8x128xf32>
    %78 = vector.extract_strided_slice %71 {offsets = [0, 128], sizes = [8, 128], strides = [1, 1]} : vector<8x512xf32> to vector<8x128xf32>
    %79 = arith.negf %78 : vector<8x128xf32>
    %80 = math.exp %79 : vector<8x128xf32>
    %cst_27 = arith.constant 1.000000e+00 : f32
    %81 = vector.broadcast %cst_27 : f32 to vector<8x128xf32>
    %82 = arith.addf %81, %80 : vector<8x128xf32>
    %83 = arith.divf %81, %82 : vector<8x128xf32>
    %84 = vector.extract_strided_slice %71 {offsets = [0, 256], sizes = [8, 128], strides = [1, 1]} : vector<8x512xf32> to vector<8x128xf32>
    %85 = math.tanh %84 : vector<8x128xf32>
    %86 = vector.extract_strided_slice %71 {offsets = [0, 384], sizes = [8, 128], strides = [1, 1]} : vector<8x512xf32> to vector<8x128xf32>
    %87 = arith.negf %86 : vector<8x128xf32>
    %88 = math.exp %87 : vector<8x128xf32>
    %cst_28 = arith.constant 1.000000e+00 : f32
    %89 = vector.broadcast %cst_28 : f32 to vector<8x128xf32>
    %90 = arith.addf %89, %88 : vector<8x128xf32>
    %91 = arith.divf %89, %90 : vector<8x128xf32>
    %92 = arith.mulf %83, %64 : vector<8x128xf32>
    %93 = arith.mulf %77, %85 : vector<8x128xf32>
    %94 = arith.addf %92, %93 : vector<8x128xf32>
    %95 = math.tanh %94 : vector<8x128xf32>
    %96 = arith.mulf %91, %95 : vector<8x128xf32>
    %c16_29 = arith.constant 16 : index
    %c0_30 = arith.constant 0 : index
    %97 = vector.load %arg11[%c16_29, %c0_30] : memref<64x128xf32, #tpu.memory_space<vmem>>, vector<8x128xf32>
    tpu.vector_store %arg11[%c16_29, %c0_30], %96 {strides = array<i32>} : memref<64x128xf32, #tpu.memory_space<vmem>>, vector<8x128xf32>,
    %c24 = arith.constant 24 : index
    %c0_31 = arith.constant 0 : index
    %98 = vector.load %arg10[%c24, %c0_31] : memref<64x512xf32, #tpu.memory_space<vmem>>, vector<8x512xf32>
    %99 = arith.truncf %96 : vector<8x128xf32> to vector<8x128xbf16>
    %cst_32 = arith.constant dense<0.000000e+00> : vector<8x512xf32>
    %100 = tpu.matmul %99, %1, %cst_32 {dimension_numbers = #tpu.dot_dimension_numbers<[1], [0], [0], [1], [0, 0, 1, 1], [], []>} : vector<8x128xbf16>, vector<128x512xbf16>, vector<8x512xf32> -> vector<8x512xf32>
    %101 = arith.addf %98, %100 : vector<8x512xf32>
    %102 = vector.extract_strided_slice %101 {offsets = [0, 0], sizes = [8, 128], strides = [1, 1]} : vector<8x512xf32> to vector<8x128xf32>
    %103 = arith.negf %102 : vector<8x128xf32>
    %104 = math.exp %103 : vector<8x128xf32>
    %cst_33 = arith.constant 1.000000e+00 : f32
    %105 = vector.broadcast %cst_33 : f32 to vector<8x128xf32>
    %106 = arith.addf %105, %104 : vector<8x128xf32>
    %107 = arith.divf %105, %106 : vector<8x128xf32>
    %108 = vector.extract_strided_slice %101 {offsets = [0, 128], sizes = [8, 128], strides = [1, 1]} : vector<8x512xf32> to vector<8x128xf32>
    %109 = arith.negf %108 : vector<8x128xf32>
    %110 = math.exp %109 : vector<8x128xf32>
    %cst_34 = arith.constant 1.000000e+00 : f32
    %111 = vector.broadcast %cst_34 : f32 to vector<8x128xf32>
    %112 = arith.addf %111, %110 : vector<8x128xf32>
    %113 = arith.divf %111, %112 : vector<8x128xf32>
    %114 = vector.extract_strided_slice %101 {offsets = [0, 256], sizes = [8, 128], strides = [1, 1]} : vector<8x512xf32> to vector<8x128xf32>
    %115 = math.tanh %114 : vector<8x128xf32>
    %116 = vector.extract_strided_slice %101 {offsets = [0, 384], sizes = [8, 128], strides = [1, 1]} : vector<8x512xf32> to vector<8x128xf32>
    %117 = arith.negf %116 : vector<8x128xf32>
    %118 = math.exp %117 : vector<8x128xf32>
    %cst_35 = arith.constant 1.000000e+00 : f32
    %119 = vector.broadcast %cst_35 : f32 to vector<8x128xf32>
    %120 = arith.addf %119, %118 : vector<8x128xf32>
    %121 = arith.divf %119, %120 : vector<8x128xf32>
    %122 = arith.mulf %113, %94 : vector<8x128xf32>
    %123 = arith.mulf %107, %115 : vector<8x128xf32>
    %124 = arith.addf %122, %123 : vector<8x128xf32>
    %125 = math.tanh %124 : vector<8x128xf32>
    %126 = arith.mulf %121, %125 : vector<8x128xf32>
    %c24_36 = arith.constant 24 : index
    %c0_37 = arith.constant 0 : index
    %127 = vector.load %arg11[%c24_36, %c0_37] : memref<64x128xf32, #tpu.memory_space<vmem>>, vector<8x128xf32>
    tpu.vector_store %arg11[%c24_36, %c0_37], %126 {strides = array<i32>} : memref<64x128xf32, #tpu.memory_space<vmem>>, vector<8x128xf32>,
    %c32 = arith.constant 32 : index
    %c0_38 = arith.constant 0 : index
    %128 = vector.load %arg10[%c32, %c0_38] : memref<64x512xf32, #tpu.memory_space<vmem>>, vector<8x512xf32>
    %129 = arith.truncf %126 : vector<8x128xf32> to vector<8x128xbf16>
    %cst_39 = arith.constant dense<0.000000e+00> : vector<8x512xf32>
    %130 = tpu.matmul %129, %1, %cst_39 {dimension_numbers = #tpu.dot_dimension_numbers<[1], [0], [0], [1], [0, 0, 1, 1], [], []>} : vector<8x128xbf16>, vector<128x512xbf16>, vector<8x512xf32> -> vector<8x512xf32>
    %131 = arith.addf %128, %130 : vector<8x512xf32>
    %132 = vector.extract_strided_slice %131 {offsets = [0, 0], sizes = [8, 128], strides = [1, 1]} : vector<8x512xf32> to vector<8x128xf32>
    %133 = arith.negf %132 : vector<8x128xf32>
    %134 = math.exp %133 : vector<8x128xf32>
    %cst_40 = arith.constant 1.000000e+00 : f32
    %135 = vector.broadcast %cst_40 : f32 to vector<8x128xf32>
    %136 = arith.addf %135, %134 : vector<8x128xf32>
    %137 = arith.divf %135, %136 : vector<8x128xf32>
    %138 = vector.extract_strided_slice %131 {offsets = [0, 128], sizes = [8, 128], strides = [1, 1]} : vector<8x512xf32> to vector<8x128xf32>
    %139 = arith.negf %138 : vector<8x128xf32>
    %140 = math.exp %139 : vector<8x128xf32>
    %cst_41 = arith.constant 1.000000e+00 : f32
    %141 = vector.broadcast %cst_41 : f32 to vector<8x128xf32>
    %142 = arith.addf %141, %140 : vector<8x128xf32>
    %143 = arith.divf %141, %142 : vector<8x128xf32>
    %144 = vector.extract_strided_slice %131 {offsets = [0, 256], sizes = [8, 128], strides = [1, 1]} : vector<8x512xf32> to vector<8x128xf32>
    %145 = math.tanh %144 : vector<8x128xf32>
    %146 = vector.extract_strided_slice %131 {offsets = [0, 384], sizes = [8, 128], strides = [1, 1]} : vector<8x512xf32> to vector<8x128xf32>
    %147 = arith.negf %146 : vector<8x128xf32>
    %148 = math.exp %147 : vector<8x128xf32>
    %cst_42 = arith.constant 1.000000e+00 : f32
    %149 = vector.broadcast %cst_42 : f32 to vector<8x128xf32>
    %150 = arith.addf %149, %148 : vector<8x128xf32>
    %151 = arith.divf %149, %150 : vector<8x128xf32>
    %152 = arith.mulf %143, %124 : vector<8x128xf32>
    %153 = arith.mulf %137, %145 : vector<8x128xf32>
    %154 = arith.addf %152, %153 : vector<8x128xf32>
    %155 = math.tanh %154 : vector<8x128xf32>
    %156 = arith.mulf %151, %155 : vector<8x128xf32>
    %c32_43 = arith.constant 32 : index
    %c0_44 = arith.constant 0 : index
    %157 = vector.load %arg11[%c32_43, %c0_44] : memref<64x128xf32, #tpu.memory_space<vmem>>, vector<8x128xf32>
    tpu.vector_store %arg11[%c32_43, %c0_44], %156 {strides = array<i32>} : memref<64x128xf32, #tpu.memory_space<vmem>>, vector<8x128xf32>,
    %c40 = arith.constant 40 : index
    %c0_45 = arith.constant 0 : index
    %158 = vector.load %arg10[%c40, %c0_45] : memref<64x512xf32, #tpu.memory_space<vmem>>, vector<8x512xf32>
    %159 = arith.truncf %156 : vector<8x128xf32> to vector<8x128xbf16>
    %cst_46 = arith.constant dense<0.000000e+00> : vector<8x512xf32>
    %160 = tpu.matmul %159, %1, %cst_46 {dimension_numbers = #tpu.dot_dimension_numbers<[1], [0], [0], [1], [0, 0, 1, 1], [], []>} : vector<8x128xbf16>, vector<128x512xbf16>, vector<8x512xf32> -> vector<8x512xf32>
    %161 = arith.addf %158, %160 : vector<8x512xf32>
    %162 = vector.extract_strided_slice %161 {offsets = [0, 0], sizes = [8, 128], strides = [1, 1]} : vector<8x512xf32> to vector<8x128xf32>
    %163 = arith.negf %162 : vector<8x128xf32>
    %164 = math.exp %163 : vector<8x128xf32>
    %cst_47 = arith.constant 1.000000e+00 : f32
    %165 = vector.broadcast %cst_47 : f32 to vector<8x128xf32>
    %166 = arith.addf %165, %164 : vector<8x128xf32>
    %167 = arith.divf %165, %166 : vector<8x128xf32>
    %168 = vector.extract_strided_slice %161 {offsets = [0, 128], sizes = [8, 128], strides = [1, 1]} : vector<8x512xf32> to vector<8x128xf32>
    %169 = arith.negf %168 : vector<8x128xf32>
    %170 = math.exp %169 : vector<8x128xf32>
    %cst_48 = arith.constant 1.000000e+00 : f32
    %171 = vector.broadcast %cst_48 : f32 to vector<8x128xf32>
    %172 = arith.addf %171, %170 : vector<8x128xf32>
    %173 = arith.divf %171, %172 : vector<8x128xf32>
    %174 = vector.extract_strided_slice %161 {offsets = [0, 256], sizes = [8, 128], strides = [1, 1]} : vector<8x512xf32> to vector<8x128xf32>
    %175 = math.tanh %174 : vector<8x128xf32>
    %176 = vector.extract_strided_slice %161 {offsets = [0, 384], sizes = [8, 128], strides = [1, 1]} : vector<8x512xf32> to vector<8x128xf32>
    %177 = arith.negf %176 : vector<8x128xf32>
    %178 = math.exp %177 : vector<8x128xf32>
    %cst_49 = arith.constant 1.000000e+00 : f32
    %179 = vector.broadcast %cst_49 : f32 to vector<8x128xf32>
    %180 = arith.addf %179, %178 : vector<8x128xf32>
    %181 = arith.divf %179, %180 : vector<8x128xf32>
    %182 = arith.mulf %173, %154 : vector<8x128xf32>
    %183 = arith.mulf %167, %175 : vector<8x128xf32>
    %184 = arith.addf %182, %183 : vector<8x128xf32>
    %185 = math.tanh %184 : vector<8x128xf32>
    %186 = arith.mulf %181, %185 : vector<8x128xf32>
    %c40_50 = arith.constant 40 : index
    %c0_51 = arith.constant 0 : index
    %187 = vector.load %arg11[%c40_50, %c0_51] : memref<64x128xf32, #tpu.memory_space<vmem>>, vector<8x128xf32>
    tpu.vector_store %arg11[%c40_50, %c0_51], %186 {strides = array<i32>} : memref<64x128xf32, #tpu.memory_space<vmem>>, vector<8x128xf32>,
    %c48 = arith.constant 48 : index
    %c0_52 = arith.constant 0 : index
    %188 = vector.load %arg10[%c48, %c0_52] : memref<64x512xf32, #tpu.memory_space<vmem>>, vector<8x512xf32>
    %189 = arith.truncf %186 : vector<8x128xf32> to vector<8x128xbf16>
    %cst_53 = arith.constant dense<0.000000e+00> : vector<8x512xf32>
    %190 = tpu.matmul %189, %1, %cst_53 {dimension_numbers = #tpu.dot_dimension_numbers<[1], [0], [0], [1], [0, 0, 1, 1], [], []>} : vector<8x128xbf16>, vector<128x512xbf16>, vector<8x512xf32> -> vector<8x512xf32>
    %191 = arith.addf %188, %190 : vector<8x512xf32>
    %192 = vector.extract_strided_slice %191 {offsets = [0, 0], sizes = [8, 128], strides = [1, 1]} : vector<8x512xf32> to vector<8x128xf32>
    %193 = arith.negf %192 : vector<8x128xf32>
    %194 = math.exp %193 : vector<8x128xf32>
    %cst_54 = arith.constant 1.000000e+00 : f32
    %195 = vector.broadcast %cst_54 : f32 to vector<8x128xf32>
    %196 = arith.addf %195, %194 : vector<8x128xf32>
    %197 = arith.divf %195, %196 : vector<8x128xf32>
    %198 = vector.extract_strided_slice %191 {offsets = [0, 128], sizes = [8, 128], strides = [1, 1]} : vector<8x512xf32> to vector<8x128xf32>
    %199 = arith.negf %198 : vector<8x128xf32>
    %200 = math.exp %199 : vector<8x128xf32>
    %cst_55 = arith.constant 1.000000e+00 : f32
    %201 = vector.broadcast %cst_55 : f32 to vector<8x128xf32>
    %202 = arith.addf %201, %200 : vector<8x128xf32>
    %203 = arith.divf %201, %202 : vector<8x128xf32>
    %204 = vector.extract_strided_slice %191 {offsets = [0, 256], sizes = [8, 128], strides = [1, 1]} : vector<8x512xf32> to vector<8x128xf32>
    %205 = math.tanh %204 : vector<8x128xf32>
    %206 = vector.extract_strided_slice %191 {offsets = [0, 384], sizes = [8, 128], strides = [1, 1]} : vector<8x512xf32> to vector<8x128xf32>
    %207 = arith.negf %206 : vector<8x128xf32>
    %208 = math.exp %207 : vector<8x128xf32>
    %cst_56 = arith.constant 1.000000e+00 : f32
    %209 = vector.broadcast %cst_56 : f32 to vector<8x128xf32>
    %210 = arith.addf %209, %208 : vector<8x128xf32>
    %211 = arith.divf %209, %210 : vector<8x128xf32>
    %212 = arith.mulf %203, %184 : vector<8x128xf32>
    %213 = arith.mulf %197, %205 : vector<8x128xf32>
    %214 = arith.addf %212, %213 : vector<8x128xf32>
    %215 = math.tanh %214 : vector<8x128xf32>
    %216 = arith.mulf %211, %215 : vector<8x128xf32>
    %c48_57 = arith.constant 48 : index
    %c0_58 = arith.constant 0 : index
    %217 = vector.load %arg11[%c48_57, %c0_58] : memref<64x128xf32, #tpu.memory_space<vmem>>, vector<8x128xf32>
    tpu.vector_store %arg11[%c48_57, %c0_58], %216 {strides = array<i32>} : memref<64x128xf32, #tpu.memory_space<vmem>>, vector<8x128xf32>,
    %c56 = arith.constant 56 : index
    %c0_59 = arith.constant 0 : index
    %218 = vector.load %arg10[%c56, %c0_59] : memref<64x512xf32, #tpu.memory_space<vmem>>, vector<8x512xf32>
    %219 = arith.truncf %216 : vector<8x128xf32> to vector<8x128xbf16>
    %cst_60 = arith.constant dense<0.000000e+00> : vector<8x512xf32>
    %220 = tpu.matmul %219, %1, %cst_60 {dimension_numbers = #tpu.dot_dimension_numbers<[1], [0], [0], [1], [0, 0, 1, 1], [], []>} : vector<8x128xbf16>, vector<128x512xbf16>, vector<8x512xf32> -> vector<8x512xf32>
    %221 = arith.addf %218, %220 : vector<8x512xf32>
    %222 = vector.extract_strided_slice %221 {offsets = [0, 0], sizes = [8, 128], strides = [1, 1]} : vector<8x512xf32> to vector<8x128xf32>
    %223 = arith.negf %222 : vector<8x128xf32>
    %224 = math.exp %223 : vector<8x128xf32>
    %cst_61 = arith.constant 1.000000e+00 : f32
    %225 = vector.broadcast %cst_61 : f32 to vector<8x128xf32>
    %226 = arith.addf %225, %224 : vector<8x128xf32>
    %227 = arith.divf %225, %226 : vector<8x128xf32>
    %228 = vector.extract_strided_slice %221 {offsets = [0, 128], sizes = [8, 128], strides = [1, 1]} : vector<8x512xf32> to vector<8x128xf32>
    %229 = arith.negf %228 : vector<8x128xf32>
    %230 = math.exp %229 : vector<8x128xf32>
    %cst_62 = arith.constant 1.000000e+00 : f32
    %231 = vector.broadcast %cst_62 : f32 to vector<8x128xf32>
    %232 = arith.addf %231, %230 : vector<8x128xf32>
    %233 = arith.divf %231, %232 : vector<8x128xf32>
    %234 = vector.extract_strided_slice %221 {offsets = [0, 256], sizes = [8, 128], strides = [1, 1]} : vector<8x512xf32> to vector<8x128xf32>
    %235 = math.tanh %234 : vector<8x128xf32>
    %236 = vector.extract_strided_slice %221 {offsets = [0, 384], sizes = [8, 128], strides = [1, 1]} : vector<8x512xf32> to vector<8x128xf32>
    %237 = arith.negf %236 : vector<8x128xf32>
    %238 = math.exp %237 : vector<8x128xf32>
    %cst_63 = arith.constant 1.000000e+00 : f32
    %239 = vector.broadcast %cst_63 : f32 to vector<8x128xf32>
    %240 = arith.addf %239, %238 : vector<8x128xf32>
    %241 = arith.divf %239, %240 : vector<8x128xf32>
    %242 = arith.mulf %233, %214 : vector<8x128xf32>
    %243 = arith.mulf %227, %235 : vector<8x128xf32>
    %244 = arith.addf %242, %243 : vector<8x128xf32>
    %245 = math.tanh %244 : vector<8x128xf32>
    %246 = arith.mulf %241, %245 : vector<8x128xf32>
    %c56_64 = arith.constant 56 : index
    %c0_65 = arith.constant 0 : index
    %247 = vector.load %arg11[%c56_64, %c0_65] : memref<64x128xf32, #tpu.memory_space<vmem>>, vector<8x128xf32>
    tpu.vector_store %arg11[%c56_64, %c0_65], %246 {strides = array<i32>} : memref<64x128xf32, #tpu.memory_space<vmem>>, vector<8x128xf32>,
    %c0_66 = arith.constant 0 : index
    %c0_67 = arith.constant 0 : index
    %248 = vector.load %arg4[%c0_66, %c0_67] : memref<128x512xbf16, #tpu.memory_space<vmem>>, vector<128x512xbf16>
    %c0_68 = arith.constant 0 : index
    %c0_69 = arith.constant 0 : index
    %249 = vector.load %arg5[%c0_68, %c0_69] : memref<128x512xbf16, #tpu.memory_space<vmem>>, vector<128x512xbf16>
    %c0_70 = arith.constant 0 : index
    %c0_71 = arith.constant 0 : index
    %250 = vector.load %arg6[%c0_70, %c0_71] : memref<1x512xf32, #tpu.memory_space<vmem>>, vector<1x512xf32>
    %c0_72 = arith.constant 0 : index
    %c0_73 = arith.constant 0 : index
    %251 = vector.load %arg11[%c0_72, %c0_73] : memref<64x128xf32, #tpu.memory_space<vmem>>, vector<64x128xf32>
    %252 = arith.truncf %251 : vector<64x128xf32> to vector<64x128xbf16>
    %cst_74 = arith.constant dense<0.000000e+00> : vector<64x512xf32>
    %253 = tpu.matmul %252, %248, %cst_74 {dimension_numbers = #tpu.dot_dimension_numbers<[1], [0], [0], [1], [0, 0, 1, 1], [], []>} : vector<64x128xbf16>, vector<128x512xbf16>, vector<64x512xf32> -> vector<64x512xf32>
    %254 = vector.broadcast %250 : vector<1x512xf32> to vector<64x512xf32>
    %255 = arith.addf %253, %254 : vector<64x512xf32>
    %c0_75 = arith.constant 0 : index
    %c0_76 = arith.constant 0 : index
    %256 = vector.load %arg10[%c0_75, %c0_76] : memref<64x512xf32, #tpu.memory_space<vmem>>, vector<64x512xf32>
    tpu.vector_store %arg10[%c0_75, %c0_76], %255 {strides = array<i32>} : memref<64x512xf32, #tpu.memory_space<vmem>>, vector<64x512xf32>,
    %c0_77 = arith.constant 0 : index
    %c0_78 = arith.constant 0 : index
    %257 = vector.load %arg10[%c0_77, %c0_78] : memref<64x512xf32, #tpu.memory_space<vmem>>, vector<8x512xf32>
    %cst_79 = arith.constant 0.000000e+00 : f32
    %258 = vector.broadcast %cst_79 : f32 to vector<8x128xf32>
    %259 = vector.extract_strided_slice %257 {offsets = [0, 0], sizes = [8, 128], strides = [1, 1]} : vector<8x512xf32> to vector<8x128xf32>
    %260 = arith.negf %259 : vector<8x128xf32>
    %261 = math.exp %260 : vector<8x128xf32>
    %cst_80 = arith.constant 1.000000e+00 : f32
    %262 = vector.broadcast %cst_80 : f32 to vector<8x128xf32>
    %263 = arith.addf %262, %261 : vector<8x128xf32>
    %264 = arith.divf %262, %263 : vector<8x128xf32>
    %265 = vector.extract_strided_slice %257 {offsets = [0, 128], sizes = [8, 128], strides = [1, 1]} : vector<8x512xf32> to vector<8x128xf32>
    %266 = arith.negf %265 : vector<8x128xf32>
    %267 = math.exp %266 : vector<8x128xf32>
    %cst_81 = arith.constant 1.000000e+00 : f32
    %268 = vector.broadcast %cst_81 : f32 to vector<8x128xf32>
    %269 = arith.addf %268, %267 : vector<8x128xf32>
    %270 = arith.divf %268, %269 : vector<8x128xf32>
    %271 = vector.extract_strided_slice %257 {offsets = [0, 256], sizes = [8, 128], strides = [1, 1]} : vector<8x512xf32> to vector<8x128xf32>
    %272 = math.tanh %271 : vector<8x128xf32>
    %273 = vector.extract_strided_slice %257 {offsets = [0, 384], sizes = [8, 128], strides = [1, 1]} : vector<8x512xf32> to vector<8x128xf32>
    %274 = arith.negf %273 : vector<8x128xf32>
    %275 = math.exp %274 : vector<8x128xf32>
    %cst_82 = arith.constant 1.000000e+00 : f32
    %276 = vector.broadcast %cst_82 : f32 to vector<8x128xf32>
    %277 = arith.addf %276, %275 : vector<8x128xf32>
    %278 = arith.divf %276, %277 : vector<8x128xf32>
    %279 = arith.mulf %270, %258 : vector<8x128xf32>
    %280 = arith.mulf %264, %272 : vector<8x128xf32>
    %281 = arith.addf %279, %280 : vector<8x128xf32>
    %282 = math.tanh %281 : vector<8x128xf32>
    %283 = arith.mulf %278, %282 : vector<8x128xf32>
    %c8_83 = arith.constant 8 : index
    %c0_84 = arith.constant 0 : index
    %284 = vector.load %arg10[%c8_83, %c0_84] : memref<64x512xf32, #tpu.memory_space<vmem>>, vector<8x512xf32>
    %285 = arith.truncf %283 : vector<8x128xf32> to vector<8x128xbf16>
    %cst_85 = arith.constant dense<0.000000e+00> : vector<8x512xf32>
    %286 = tpu.matmul %285, %249, %cst_85 {dimension_numbers = #tpu.dot_dimension_numbers<[1], [0], [0], [1], [0, 0, 1, 1], [], []>} : vector<8x128xbf16>, vector<128x512xbf16>, vector<8x512xf32> -> vector<8x512xf32>
    %287 = arith.addf %284, %286 : vector<8x512xf32>
    %288 = vector.extract_strided_slice %287 {offsets = [0, 0], sizes = [8, 128], strides = [1, 1]} : vector<8x512xf32> to vector<8x128xf32>
    %289 = arith.negf %288 : vector<8x128xf32>
    %290 = math.exp %289 : vector<8x128xf32>
    %cst_86 = arith.constant 1.000000e+00 : f32
    %291 = vector.broadcast %cst_86 : f32 to vector<8x128xf32>
    %292 = arith.addf %291, %290 : vector<8x128xf32>
    %293 = arith.divf %291, %292 : vector<8x128xf32>
    %294 = vector.extract_strided_slice %287 {offsets = [0, 128], sizes = [8, 128], strides = [1, 1]} : vector<8x512xf32> to vector<8x128xf32>
    %295 = arith.negf %294 : vector<8x128xf32>
    %296 = math.exp %295 : vector<8x128xf32>
    %cst_87 = arith.constant 1.000000e+00 : f32
    %297 = vector.broadcast %cst_87 : f32 to vector<8x128xf32>
    %298 = arith.addf %297, %296 : vector<8x128xf32>
    %299 = arith.divf %297, %298 : vector<8x128xf32>
    %300 = vector.extract_strided_slice %287 {offsets = [0, 256], sizes = [8, 128], strides = [1, 1]} : vector<8x512xf32> to vector<8x128xf32>
    %301 = math.tanh %300 : vector<8x128xf32>
    %302 = vector.extract_strided_slice %287 {offsets = [0, 384], sizes = [8, 128], strides = [1, 1]} : vector<8x512xf32> to vector<8x128xf32>
    %303 = arith.negf %302 : vector<8x128xf32>
    %304 = math.exp %303 : vector<8x128xf32>
    %cst_88 = arith.constant 1.000000e+00 : f32
    %305 = vector.broadcast %cst_88 : f32 to vector<8x128xf32>
    %306 = arith.addf %305, %304 : vector<8x128xf32>
    %307 = arith.divf %305, %306 : vector<8x128xf32>
    %308 = arith.mulf %299, %281 : vector<8x128xf32>
    %309 = arith.mulf %293, %301 : vector<8x128xf32>
    %310 = arith.addf %308, %309 : vector<8x128xf32>
    %311 = math.tanh %310 : vector<8x128xf32>
    %312 = arith.mulf %307, %311 : vector<8x128xf32>
    %c16_89 = arith.constant 16 : index
    %c0_90 = arith.constant 0 : index
    %313 = vector.load %arg10[%c16_89, %c0_90] : memref<64x512xf32, #tpu.memory_space<vmem>>, vector<8x512xf32>
    %314 = arith.truncf %312 : vector<8x128xf32> to vector<8x128xbf16>
    %cst_91 = arith.constant dense<0.000000e+00> : vector<8x512xf32>
    %315 = tpu.matmul %314, %249, %cst_91 {dimension_numbers = #tpu.dot_dimension_numbers<[1], [0], [0], [1], [0, 0, 1, 1], [], []>} : vector<8x128xbf16>, vector<128x512xbf16>, vector<8x512xf32> -> vector<8x512xf32>
    %316 = arith.addf %313, %315 : vector<8x512xf32>
    %317 = vector.extract_strided_slice %316 {offsets = [0, 0], sizes = [8, 128], strides = [1, 1]} : vector<8x512xf32> to vector<8x128xf32>
    %318 = arith.negf %317 : vector<8x128xf32>
    %319 = math.exp %318 : vector<8x128xf32>
    %cst_92 = arith.constant 1.000000e+00 : f32
    %320 = vector.broadcast %cst_92 : f32 to vector<8x128xf32>
    %321 = arith.addf %320, %319 : vector<8x128xf32>
    %322 = arith.divf %320, %321 : vector<8x128xf32>
    %323 = vector.extract_strided_slice %316 {offsets = [0, 128], sizes = [8, 128], strides = [1, 1]} : vector<8x512xf32> to vector<8x128xf32>
    %324 = arith.negf %323 : vector<8x128xf32>
    %325 = math.exp %324 : vector<8x128xf32>
    %cst_93 = arith.constant 1.000000e+00 : f32
    %326 = vector.broadcast %cst_93 : f32 to vector<8x128xf32>
    %327 = arith.addf %326, %325 : vector<8x128xf32>
    %328 = arith.divf %326, %327 : vector<8x128xf32>
    %329 = vector.extract_strided_slice %316 {offsets = [0, 256], sizes = [8, 128], strides = [1, 1]} : vector<8x512xf32> to vector<8x128xf32>
    %330 = math.tanh %329 : vector<8x128xf32>
    %331 = vector.extract_strided_slice %316 {offsets = [0, 384], sizes = [8, 128], strides = [1, 1]} : vector<8x512xf32> to vector<8x128xf32>
    %332 = arith.negf %331 : vector<8x128xf32>
    %333 = math.exp %332 : vector<8x128xf32>
    %cst_94 = arith.constant 1.000000e+00 : f32
    %334 = vector.broadcast %cst_94 : f32 to vector<8x128xf32>
    %335 = arith.addf %334, %333 : vector<8x128xf32>
    %336 = arith.divf %334, %335 : vector<8x128xf32>
    %337 = arith.mulf %328, %310 : vector<8x128xf32>
    %338 = arith.mulf %322, %330 : vector<8x128xf32>
    %339 = arith.addf %337, %338 : vector<8x128xf32>
    %340 = math.tanh %339 : vector<8x128xf32>
    %341 = arith.mulf %336, %340 : vector<8x128xf32>
    %c24_95 = arith.constant 24 : index
    %c0_96 = arith.constant 0 : index
    %342 = vector.load %arg10[%c24_95, %c0_96] : memref<64x512xf32, #tpu.memory_space<vmem>>, vector<8x512xf32>
    %343 = arith.truncf %341 : vector<8x128xf32> to vector<8x128xbf16>
    %cst_97 = arith.constant dense<0.000000e+00> : vector<8x512xf32>
    %344 = tpu.matmul %343, %249, %cst_97 {dimension_numbers = #tpu.dot_dimension_numbers<[1], [0], [0], [1], [0, 0, 1, 1], [], []>} : vector<8x128xbf16>, vector<128x512xbf16>, vector<8x512xf32> -> vector<8x512xf32>
    %345 = arith.addf %342, %344 : vector<8x512xf32>
    %346 = vector.extract_strided_slice %345 {offsets = [0, 0], sizes = [8, 128], strides = [1, 1]} : vector<8x512xf32> to vector<8x128xf32>
    %347 = arith.negf %346 : vector<8x128xf32>
    %348 = math.exp %347 : vector<8x128xf32>
    %cst_98 = arith.constant 1.000000e+00 : f32
    %349 = vector.broadcast %cst_98 : f32 to vector<8x128xf32>
    %350 = arith.addf %349, %348 : vector<8x128xf32>
    %351 = arith.divf %349, %350 : vector<8x128xf32>
    %352 = vector.extract_strided_slice %345 {offsets = [0, 128], sizes = [8, 128], strides = [1, 1]} : vector<8x512xf32> to vector<8x128xf32>
    %353 = arith.negf %352 : vector<8x128xf32>
    %354 = math.exp %353 : vector<8x128xf32>
    %cst_99 = arith.constant 1.000000e+00 : f32
    %355 = vector.broadcast %cst_99 : f32 to vector<8x128xf32>
    %356 = arith.addf %355, %354 : vector<8x128xf32>
    %357 = arith.divf %355, %356 : vector<8x128xf32>
    %358 = vector.extract_strided_slice %345 {offsets = [0, 256], sizes = [8, 128], strides = [1, 1]} : vector<8x512xf32> to vector<8x128xf32>
    %359 = math.tanh %358 : vector<8x128xf32>
    %360 = vector.extract_strided_slice %345 {offsets = [0, 384], sizes = [8, 128], strides = [1, 1]} : vector<8x512xf32> to vector<8x128xf32>
    %361 = arith.negf %360 : vector<8x128xf32>
    %362 = math.exp %361 : vector<8x128xf32>
    %cst_100 = arith.constant 1.000000e+00 : f32
    %363 = vector.broadcast %cst_100 : f32 to vector<8x128xf32>
    %364 = arith.addf %363, %362 : vector<8x128xf32>
    %365 = arith.divf %363, %364 : vector<8x128xf32>
    %366 = arith.mulf %357, %339 : vector<8x128xf32>
    %367 = arith.mulf %351, %359 : vector<8x128xf32>
    %368 = arith.addf %366, %367 : vector<8x128xf32>
    %369 = math.tanh %368 : vector<8x128xf32>
    %370 = arith.mulf %365, %369 : vector<8x128xf32>
    %c32_101 = arith.constant 32 : index
    %c0_102 = arith.constant 0 : index
    %371 = vector.load %arg10[%c32_101, %c0_102] : memref<64x512xf32, #tpu.memory_space<vmem>>, vector<8x512xf32>
    %372 = arith.truncf %370 : vector<8x128xf32> to vector<8x128xbf16>
    %cst_103 = arith.constant dense<0.000000e+00> : vector<8x512xf32>
    %373 = tpu.matmul %372, %249, %cst_103 {dimension_numbers = #tpu.dot_dimension_numbers<[1], [0], [0], [1], [0, 0, 1, 1], [], []>} : vector<8x128xbf16>, vector<128x512xbf16>, vector<8x512xf32> -> vector<8x512xf32>
    %374 = arith.addf %371, %373 : vector<8x512xf32>
    %375 = vector.extract_strided_slice %374 {offsets = [0, 0], sizes = [8, 128], strides = [1, 1]} : vector<8x512xf32> to vector<8x128xf32>
    %376 = arith.negf %375 : vector<8x128xf32>
    %377 = math.exp %376 : vector<8x128xf32>
    %cst_104 = arith.constant 1.000000e+00 : f32
    %378 = vector.broadcast %cst_104 : f32 to vector<8x128xf32>
    %379 = arith.addf %378, %377 : vector<8x128xf32>
    %380 = arith.divf %378, %379 : vector<8x128xf32>
    %381 = vector.extract_strided_slice %374 {offsets = [0, 128], sizes = [8, 128], strides = [1, 1]} : vector<8x512xf32> to vector<8x128xf32>
    %382 = arith.negf %381 : vector<8x128xf32>
    %383 = math.exp %382 : vector<8x128xf32>
    %cst_105 = arith.constant 1.000000e+00 : f32
    %384 = vector.broadcast %cst_105 : f32 to vector<8x128xf32>
    %385 = arith.addf %384, %383 : vector<8x128xf32>
    %386 = arith.divf %384, %385 : vector<8x128xf32>
    %387 = vector.extract_strided_slice %374 {offsets = [0, 256], sizes = [8, 128], strides = [1, 1]} : vector<8x512xf32> to vector<8x128xf32>
    %388 = math.tanh %387 : vector<8x128xf32>
    %389 = vector.extract_strided_slice %374 {offsets = [0, 384], sizes = [8, 128], strides = [1, 1]} : vector<8x512xf32> to vector<8x128xf32>
    %390 = arith.negf %389 : vector<8x128xf32>
    %391 = math.exp %390 : vector<8x128xf32>
    %cst_106 = arith.constant 1.000000e+00 : f32
    %392 = vector.broadcast %cst_106 : f32 to vector<8x128xf32>
    %393 = arith.addf %392, %391 : vector<8x128xf32>
    %394 = arith.divf %392, %393 : vector<8x128xf32>
    %395 = arith.mulf %386, %368 : vector<8x128xf32>
    %396 = arith.mulf %380, %388 : vector<8x128xf32>
    %397 = arith.addf %395, %396 : vector<8x128xf32>
    %398 = math.tanh %397 : vector<8x128xf32>
    %399 = arith.mulf %394, %398 : vector<8x128xf32>
    %c40_107 = arith.constant 40 : index
    %c0_108 = arith.constant 0 : index
    %400 = vector.load %arg10[%c40_107, %c0_108] : memref<64x512xf32, #tpu.memory_space<vmem>>, vector<8x512xf32>
    %401 = arith.truncf %399 : vector<8x128xf32> to vector<8x128xbf16>
    %cst_109 = arith.constant dense<0.000000e+00> : vector<8x512xf32>
    %402 = tpu.matmul %401, %249, %cst_109 {dimension_numbers = #tpu.dot_dimension_numbers<[1], [0], [0], [1], [0, 0, 1, 1], [], []>} : vector<8x128xbf16>, vector<128x512xbf16>, vector<8x512xf32> -> vector<8x512xf32>
    %403 = arith.addf %400, %402 : vector<8x512xf32>
    %404 = vector.extract_strided_slice %403 {offsets = [0, 0], sizes = [8, 128], strides = [1, 1]} : vector<8x512xf32> to vector<8x128xf32>
    %405 = arith.negf %404 : vector<8x128xf32>
    %406 = math.exp %405 : vector<8x128xf32>
    %cst_110 = arith.constant 1.000000e+00 : f32
    %407 = vector.broadcast %cst_110 : f32 to vector<8x128xf32>
    %408 = arith.addf %407, %406 : vector<8x128xf32>
    %409 = arith.divf %407, %408 : vector<8x128xf32>
    %410 = vector.extract_strided_slice %403 {offsets = [0, 128], sizes = [8, 128], strides = [1, 1]} : vector<8x512xf32> to vector<8x128xf32>
    %411 = arith.negf %410 : vector<8x128xf32>
    %412 = math.exp %411 : vector<8x128xf32>
    %cst_111 = arith.constant 1.000000e+00 : f32
    %413 = vector.broadcast %cst_111 : f32 to vector<8x128xf32>
    %414 = arith.addf %413, %412 : vector<8x128xf32>
    %415 = arith.divf %413, %414 : vector<8x128xf32>
    %416 = vector.extract_strided_slice %403 {offsets = [0, 256], sizes = [8, 128], strides = [1, 1]} : vector<8x512xf32> to vector<8x128xf32>
    %417 = math.tanh %416 : vector<8x128xf32>
    %418 = vector.extract_strided_slice %403 {offsets = [0, 384], sizes = [8, 128], strides = [1, 1]} : vector<8x512xf32> to vector<8x128xf32>
    %419 = arith.negf %418 : vector<8x128xf32>
    %420 = math.exp %419 : vector<8x128xf32>
    %cst_112 = arith.constant 1.000000e+00 : f32
    %421 = vector.broadcast %cst_112 : f32 to vector<8x128xf32>
    %422 = arith.addf %421, %420 : vector<8x128xf32>
    %423 = arith.divf %421, %422 : vector<8x128xf32>
    %424 = arith.mulf %415, %397 : vector<8x128xf32>
    %425 = arith.mulf %409, %417 : vector<8x128xf32>
    %426 = arith.addf %424, %425 : vector<8x128xf32>
    %427 = math.tanh %426 : vector<8x128xf32>
    %428 = arith.mulf %423, %427 : vector<8x128xf32>
    %c48_113 = arith.constant 48 : index
    %c0_114 = arith.constant 0 : index
    %429 = vector.load %arg10[%c48_113, %c0_114] : memref<64x512xf32, #tpu.memory_space<vmem>>, vector<8x512xf32>
    %430 = arith.truncf %428 : vector<8x128xf32> to vector<8x128xbf16>
    %cst_115 = arith.constant dense<0.000000e+00> : vector<8x512xf32>
    %431 = tpu.matmul %430, %249, %cst_115 {dimension_numbers = #tpu.dot_dimension_numbers<[1], [0], [0], [1], [0, 0, 1, 1], [], []>} : vector<8x128xbf16>, vector<128x512xbf16>, vector<8x512xf32> -> vector<8x512xf32>
    %432 = arith.addf %429, %431 : vector<8x512xf32>
    %433 = vector.extract_strided_slice %432 {offsets = [0, 0], sizes = [8, 128], strides = [1, 1]} : vector<8x512xf32> to vector<8x128xf32>
    %434 = arith.negf %433 : vector<8x128xf32>
    %435 = math.exp %434 : vector<8x128xf32>
    %cst_116 = arith.constant 1.000000e+00 : f32
    %436 = vector.broadcast %cst_116 : f32 to vector<8x128xf32>
    %437 = arith.addf %436, %435 : vector<8x128xf32>
    %438 = arith.divf %436, %437 : vector<8x128xf32>
    %439 = vector.extract_strided_slice %432 {offsets = [0, 128], sizes = [8, 128], strides = [1, 1]} : vector<8x512xf32> to vector<8x128xf32>
    %440 = arith.negf %439 : vector<8x128xf32>
    %441 = math.exp %440 : vector<8x128xf32>
    %cst_117 = arith.constant 1.000000e+00 : f32
    %442 = vector.broadcast %cst_117 : f32 to vector<8x128xf32>
    %443 = arith.addf %442, %441 : vector<8x128xf32>
    %444 = arith.divf %442, %443 : vector<8x128xf32>
    %445 = vector.extract_strided_slice %432 {offsets = [0, 256], sizes = [8, 128], strides = [1, 1]} : vector<8x512xf32> to vector<8x128xf32>
    %446 = math.tanh %445 : vector<8x128xf32>
    %447 = vector.extract_strided_slice %432 {offsets = [0, 384], sizes = [8, 128], strides = [1, 1]} : vector<8x512xf32> to vector<8x128xf32>
    %448 = arith.negf %447 : vector<8x128xf32>
    %449 = math.exp %448 : vector<8x128xf32>
    %cst_118 = arith.constant 1.000000e+00 : f32
    %450 = vector.broadcast %cst_118 : f32 to vector<8x128xf32>
    %451 = arith.addf %450, %449 : vector<8x128xf32>
    %452 = arith.divf %450, %451 : vector<8x128xf32>
    %453 = arith.mulf %444, %426 : vector<8x128xf32>
    %454 = arith.mulf %438, %446 : vector<8x128xf32>
    %455 = arith.addf %453, %454 : vector<8x128xf32>
    %456 = math.tanh %455 : vector<8x128xf32>
    %457 = arith.mulf %452, %456 : vector<8x128xf32>
    %c56_119 = arith.constant 56 : index
    %c0_120 = arith.constant 0 : index
    %458 = vector.load %arg10[%c56_119, %c0_120] : memref<64x512xf32, #tpu.memory_space<vmem>>, vector<8x512xf32>
    %459 = arith.truncf %457 : vector<8x128xf32> to vector<8x128xbf16>
    %cst_121 = arith.constant dense<0.000000e+00> : vector<8x512xf32>
    %460 = tpu.matmul %459, %249, %cst_121 {dimension_numbers = #tpu.dot_dimension_numbers<[1], [0], [0], [1], [0, 0, 1, 1], [], []>} : vector<8x128xbf16>, vector<128x512xbf16>, vector<8x512xf32> -> vector<8x512xf32>
    %461 = arith.addf %458, %460 : vector<8x512xf32>
    %462 = vector.extract_strided_slice %461 {offsets = [0, 0], sizes = [8, 128], strides = [1, 1]} : vector<8x512xf32> to vector<8x128xf32>
    %463 = arith.negf %462 : vector<8x128xf32>
    %464 = math.exp %463 : vector<8x128xf32>
    %cst_122 = arith.constant 1.000000e+00 : f32
    %465 = vector.broadcast %cst_122 : f32 to vector<8x128xf32>
    %466 = arith.addf %465, %464 : vector<8x128xf32>
    %467 = arith.divf %465, %466 : vector<8x128xf32>
    %468 = vector.extract_strided_slice %461 {offsets = [0, 128], sizes = [8, 128], strides = [1, 1]} : vector<8x512xf32> to vector<8x128xf32>
    %469 = arith.negf %468 : vector<8x128xf32>
    %470 = math.exp %469 : vector<8x128xf32>
    %cst_123 = arith.constant 1.000000e+00 : f32
    %471 = vector.broadcast %cst_123 : f32 to vector<8x128xf32>
    %472 = arith.addf %471, %470 : vector<8x128xf32>
    %473 = arith.divf %471, %472 : vector<8x128xf32>
    %474 = vector.extract_strided_slice %461 {offsets = [0, 256], sizes = [8, 128], strides = [1, 1]} : vector<8x512xf32> to vector<8x128xf32>
    %475 = math.tanh %474 : vector<8x128xf32>
    %476 = vector.extract_strided_slice %461 {offsets = [0, 384], sizes = [8, 128], strides = [1, 1]} : vector<8x512xf32> to vector<8x128xf32>
    %477 = arith.negf %476 : vector<8x128xf32>
    %478 = math.exp %477 : vector<8x128xf32>
    %cst_124 = arith.constant 1.000000e+00 : f32
    %479 = vector.broadcast %cst_124 : f32 to vector<8x128xf32>
    %480 = arith.addf %479, %478 : vector<8x128xf32>
    %481 = arith.divf %479, %480 : vector<8x128xf32>
    %482 = arith.mulf %473, %455 : vector<8x128xf32>
    %483 = arith.mulf %467, %475 : vector<8x128xf32>
    %484 = arith.addf %482, %483 : vector<8x128xf32>
    %485 = math.tanh %484 : vector<8x128xf32>
    %486 = arith.mulf %481, %485 : vector<8x128xf32>
    %487 = math.tanh %246 : vector<8x128xf32>
    %488 = math.tanh %244 : vector<8x128xf32>
    %489 = math.tanh %486 : vector<8x128xf32>
    %490 = math.tanh %484 : vector<8x128xf32>
    %491 = tpu.concatenate %487, %488, %489, %490 in 1 : vector<8x128xf32>, vector<8x128xf32>, vector<8x128xf32>, vector<8x128xf32> -> vector<8x512xf32>
    %492 = arith.truncf %491 : vector<8x512xf32> to vector<8x512xbf16>
    %c0_125 = arith.constant 0 : index
    %c0_126 = arith.constant 0 : index
    %493 = vector.load %arg7[%c0_125, %c0_126] : memref<512x128xbf16, #tpu.memory_space<vmem>>, vector<512x128xbf16>
    %cst_127 = arith.constant dense<0.000000e+00> : vector<8x128xf32>
    %494 = tpu.matmul %492, %493, %cst_127 {dimension_numbers = #tpu.dot_dimension_numbers<[1], [0], [0], [1], [0, 0, 1, 1], [], []>} : vector<8x512xbf16>, vector<512x128xbf16>, vector<8x128xf32> -> vector<8x128xf32>
    %c0_128 = arith.constant 0 : index
    %c0_129 = arith.constant 0 : index
    %495 = vector.load %arg8[%c0_128, %c0_129] : memref<1x128xf32, #tpu.memory_space<vmem>>, vector<1x128xf32>
    %496 = vector.broadcast %495 : vector<1x128xf32> to vector<8x128xf32>
    %497 = arith.addf %494, %496 : vector<8x128xf32>
    %c0_130 = arith.constant 0 : index
    %c0_131 = arith.constant 0 : index
    %498 = vector.load %arg9[%c0_130, %c0_131] : memref<8x128xf32, #tpu.memory_space<vmem>>, vector<8x128xf32>
    tpu.vector_store %arg9[%c0_130, %c0_131], %497 {strides = array<i32>} : memref<8x128xf32, #tpu.memory_space<vmem>>, vector<8x128xf32>,
    return
  }
}

</mosaic_0001>

<llo_original>
// kernel: tpu_custom_call.1
$region0: #{tpu_custom_call.1}
  #allocation0 [shape = 'u32[]', space=smem, size = 0x4, offset = 0x4, fixed_abs, tag = 'smem constant byte address 0x4 - core index']
  #allocation1 [shape = 'u32[144,128]{1,0:T(1,128)}', space=vmem, size = 0x12000, scoped, tag = 'internal scratch']
  #allocation2 [shape = 'f32[64,512]{1,0:T(8,128)}', space=vmem, size = 0x20000, scoped, tag = 'scratch operand']
  #allocation3 [shape = 'f32[64,128]{1,0:T(8,128)}', space=vmem, size = 0x8000, scoped, tag = 'scratch operand']
  %s0 = inlined_call_operand.hbm [shape: f32[64,128], index: 0, kind: input, shape index: {}]
  %s1 = inlined_call_operand.hbm [shape: bf16[128,512], index: 1, kind: input, shape index: {}]
  %s2 = inlined_call_operand.hbm [shape: bf16[128,512], index: 2, kind: input, shape index: {}]
  %s3 = inlined_call_operand.vmem [shape: f32[1,512], index: 3, kind: input, shape index: {}]
  %s4 = inlined_call_operand.hbm [shape: bf16[128,512], index: 4, kind: input, shape index: {}]
  %s5 = inlined_call_operand.hbm [shape: bf16[128,512], index: 5, kind: input, shape index: {}]
  %s6 = inlined_call_operand.vmem [shape: f32[1,512], index: 6, kind: input, shape index: {}]
  %s7 = inlined_call_operand.hbm [shape: bf16[512,128], index: 7, kind: input, shape index: {}]
  %s8 = inlined_call_operand.vmem [shape: f32[1,128], index: 8, kind: input, shape index: {}]
  %s9 = inlined_call_operand.hbm [shape: f32[8,128], index: 9, kind: output, shape index: {}]
  %s10 = sld [smem:[#allocation0]]
  $region70: #{tpu_custom_call.1} parent=0
    _
  %s12 = ssub.s32 1, %s10
  %s13 = scalar_select 0, %s12, %s10
  $region1: #{tpu_custom_call.1} parent=0
    #allocation4 [shape = 'u8[32768]{0}', space=vmem, size = 0x8000, scoped, tag = 'input window, operand 0, single buffered']
    #allocation5 [shape = 's32[1]{0}', space=sflag, size = 0x4, scoped, tag = 'scoped memory for tpu_custom_call.1']
    #allocation6 [shape = 's32[1]{0}', space=sflag, size = 0x4, scoped, tag = 'scoped memory for tpu_custom_call.1']
    #allocation7 [shape = 'u8[131072]{0}', space=vmem, size = 0x20000, scoped, tag = 'input window, operand 1, single buffered']
    #allocation8 [shape = 's32[1]{0}', space=sflag, size = 0x4, scoped, tag = 'scoped memory for tpu_custom_call.1']
    #allocation9 [shape = 'u8[131072]{0}', space=vmem, size = 0x20000, scoped, tag = 'input window, operand 2, single buffered']
    #allocation10 [shape = 'u8[131072]{0}', space=vmem, size = 0x20000, scoped, tag = 'input window, operand 4, single buffered']
    #allocation11 [shape = 's32[1]{0}', space=sflag, size = 0x4, scoped, tag = 'scoped memory for tpu_custom_call.1']
    #allocation12 [shape = 'u8[131072]{0}', space=vmem, size = 0x20000, scoped, tag = 'input window, operand 5, single buffered']
    #allocation13 [shape = 'u8[131072]{0}', space=vmem, size = 0x20000, scoped, tag = 'input window, operand 7, single buffered']
    #allocation14 [shape = 's32[1]{0}', space=sflag, size = 0x4, scoped, tag = 'scoped memory for tpu_custom_call.1']
    #allocation15 [shape = 'u8[4096]{0}', space=vmem, size = 0x1000, scoped, tag = 'output window, operand 0, single buffered']
    %14 = vsyncpa [#allocation5], 0
    %15 = vsyncpa [#allocation8], 0
    %16 = vsyncpa [#allocation11], 0
    %17 = vsyncpa [#allocation14], 0
    %18 = vsyncpa [#allocation6], 0
    // Predicated region
    $region2: #{tpu_custom_call.1} parent=1 // pred_check
      _
    $region3: #{tpu_custom_call.1} parent=1 // pred_check_branch
      %20 = sbr.rel (0) target = $region5
    $region4: #{tpu_custom_call.1} parent=1 // pred_region
      %s22 = ssub.s32 1024, 1024
      %23 = vsyncadd [#allocation5], %s22
      %s24 = sshll.u32 [#allocation4], 4
      %s25 = int_to_ptr.vmem [resolvable:$true] %s24
      %30 = dma.hbm_to_vmem [thread:$0]  %s0, 1024, %s25, [#allocation5], 128, 128, 8
    $region5: #{tpu_custom_call.1} parent=1 // pred_fallthru
      _
    // Predicated region
    $region6: #{tpu_custom_call.1} parent=1 // pred_check
      _
    $region7: #{tpu_custom_call.1} parent=1 // pred_check_branch
      %32 = sbr.rel (0) target = $region9
    $region8: #{tpu_custom_call.1} parent=1 // pred_region
      %s34 = ssub.s32 4096, 4096
      %35 = vsyncadd [#allocation8], %s34
      %s36 = sshll.u32 [#allocation7], 4
      %s37 = int_to_ptr.vmem [resolvable:$true] %s36
      %42 = dma.hbm_to_vmem [thread:$0]  %s1, 4096, %s37, [#allocation8], 256, 256, 16
    $region9: #{tpu_custom_call.1} parent=1 // pred_fallthru
      _
    // Predicated region
    $region10: #{tpu_custom_call.1} parent=1 // pred_check
      _
    $region11: #{tpu_custom_call.1} parent=1 // pred_check_branch
      %44 = sbr.rel (0) target = $region13
    $region12: #{tpu_custom_call.1} parent=1 // pred_region
      %s46 = ssub.s32 4096, 4096
      %47 = vsyncadd [#allocation8], %s46
      %s48 = sshll.u32 [#allocation9], 4
      %s49 = int_to_ptr.vmem [resolvable:$true] %s48
      %54 = dma.hbm_to_vmem [thread:$0]  %s2, 4096, %s49, [#allocation8], 256, 256, 16
    $region13: #{tpu_custom_call.1} parent=1 // pred_fallthru
      _
    // Predicated region
    $region14: #{tpu_custom_call.1} parent=1 // pred_check
      _
    $region15: #{tpu_custom_call.1} parent=1 // pred_check_branch
      %56 = sbr.rel (0) target = $region17
    $region16: #{tpu_custom_call.1} parent=1 // pred_region
      _
    $region17: #{tpu_custom_call.1} parent=1 // pred_fallthru
      _
    // Predicated region
    $region18: #{tpu_custom_call.1} parent=1 // pred_check
      _
    $region19: #{tpu_custom_call.1} parent=1 // pred_check_branch
      %58 = sbr.rel (0) target = $region21
    $region20: #{tpu_custom_call.1} parent=1 // pred_region
      %s60 = ssub.s32 4096, 4096
      %61 = vsyncadd [#allocation11], %s60
      %s62 = sshll.u32 [#allocation10], 4
      %s63 = int_to_ptr.vmem [resolvable:$true] %s62
      %68 = dma.hbm_to_vmem [thread:$0]  %s4, 4096, %s63, [#allocation11], 256, 256, 16
    $region21: #{tpu_custom_call.1} parent=1 // pred_fallthru
      _
    // Predicated region
    $region22: #{tpu_custom_call.1} parent=1 // pred_check
      _
    $region23: #{tpu_custom_call.1} parent=1 // pred_check_branch
      %70 = sbr.rel (0) target = $region25
    $region24: #{tpu_custom_call.1} parent=1 // pred_region
      %s72 = ssub.s32 4096, 4096
      %73 = vsyncadd [#allocation11], %s72
      %s74 = sshll.u32 [#allocation12], 4
      %s75 = int_to_ptr.vmem [resolvable:$true] %s74
      %80 = dma.hbm_to_vmem [thread:$0]  %s5, 4096, %s75, [#allocation11], 256, 256, 16
    $region25: #{tpu_custom_call.1} parent=1 // pred_fallthru
      _
    // Predicated region
    $region26: #{tpu_custom_call.1} parent=1 // pred_check
      _
    $region27: #{tpu_custom_call.1} parent=1 // pred_check_branch
      %82 = sbr.rel (0) target = $region29
    $region28: #{tpu_custom_call.1} parent=1 // pred_region
      _
    $region29: #{tpu_custom_call.1} parent=1 // pred_fallthru
      _
    // Predicated region
    $region30: #{tpu_custom_call.1} parent=1 // pred_check
      _
    $region31: #{tpu_custom_call.1} parent=1 // pred_check_branch
      %84 = sbr.rel (0) target = $region33
    $region32: #{tpu_custom_call.1} parent=1 // pred_region
      %s86 = ssub.s32 4096, 4096
      %87 = vsyncadd [#allocation14], %s86
      %s88 = sshll.u32 [#allocation13], 4
      %s89 = int_to_ptr.vmem [resolvable:$true] %s88
      %94 = dma.hbm_to_vmem [thread:$0]  %s7, 4096, %s89, [#allocation14], 64, 64, 4
    $region33: #{tpu_custom_call.1} parent=1 // pred_fallthru
      _
    // Predicated region
    $region34: #{tpu_custom_call.1} parent=1 // pred_check
      _
    $region35: #{tpu_custom_call.1} parent=1 // pred_check_branch
      %96 = sbr.rel (0) target = $region37
    $region36: #{tpu_custom_call.1} parent=1 // pred_region
      _
    $region37: #{tpu_custom_call.1} parent=1 // pred_fallthru
      _
    // Predicated region
    $region38: #{tpu_custom_call.1} parent=1 // pred_check
      _
    $region39: #{tpu_custom_call.1} parent=1 // pred_check_branch
      %98 = sbr.rel (0) target = $region41
    $region40: #{tpu_custom_call.1} parent=1 // pred_region
      %99 = dma.done [#allocation5], 1024
    $region41: #{tpu_custom_call.1} parent=1 // pred_fallthru
      _
    // Predicated region
    $region42: #{tpu_custom_call.1} parent=1 // pred_check
      _
    $region43: #{tpu_custom_call.1} parent=1 // pred_check_branch
      %101 = sbr.rel (0) target = $region45
    $region44: #{tpu_custom_call.1} parent=1 // pred_region
      %102 = dma.done [#allocation8], 4096
    $region45: #{tpu_custom_call.1} parent=1 // pred_fallthru
      _
    // Predicated region
    $region46: #{tpu_custom_call.1} parent=1 // pred_check
      _
    $region47: #{tpu_custom_call.1} parent=1 // pred_check_branch
      %104 = sbr.rel (0) target = $region49
    $region48: #{tpu_custom_call.1} parent=1 // pred_region
      %105 = dma.done [#allocation8], 4096
    $region49: #{tpu_custom_call.1} parent=1 // pred_fallthru
      _
    // Predicated region
    $region50: #{tpu_custom_call.1} parent=1 // pred_check
      _
    $region51: #{tpu_custom_call.1} parent=1 // pred_check_branch
      %107 = sbr.rel (0) target = $region53
    $region52: #{tpu_custom_call.1} parent=1 // pred_region
      %108 = dma.done [#allocation11], 4096
    $region53: #{tpu_custom_call.1} parent=1 // pred_fallthru
      _
    // Predicated region
    $region54: #{tpu_custom_call.1} parent=1 // pred_check
      _
    $region55: #{tpu_custom_call.1} parent=1 // pred_check_branch
      %110 = sbr.rel (0) target = $region57
    $region56: #{tpu_custom_call.1} parent=1 // pred_region
      %111 = dma.done [#allocation11], 4096
    $region57: #{tpu_custom_call.1} parent=1 // pred_fallthru
      _
    // Predicated region
    $region58: #{tpu_custom_call.1} parent=1 // pred_check
      _
    $region59: #{tpu_custom_call.1} parent=1 // pred_check_branch
      %113 = sbr.rel (0) target = $region61
    $region60: #{tpu_custom_call.1} parent=1 // pred_region
      %114 = dma.done [#allocation14], 4096
    $region61: #{tpu_custom_call.1} parent=1 // pred_fallthru
      _
    %v116 = vld [vmem:[#allocation7] sm:$0xff]
    %v117 = vld [vmem:[#allocation7 + $0x8] sm:$0xff]
    %v118 = vld [vmem:[#allocation7 + $0x10] sm:$0xff]
    %v119 = vld [vmem:[#allocation7 + $0x18] sm:$0xff]
    %v120 = vld [vmem:[#allocation7 + $0x20] sm:$0xff]
    %v121 = vld [vmem:[#allocation7 + $0x28] sm:$0xff]
    %v122 = vld [vmem:[#allocation7 + $0x30] sm:$0xff]
    %v123 = vld [vmem:[#allocation7 + $0x38] sm:$0xff]
    %v124 = vld [vmem:[#allocation7 + $0x40] sm:$0xff]
    %v125 = vld [vmem:[#allocation7 + $0x48] sm:$0xff]
    %v126 = vld [vmem:[#allocation7 + $0x50] sm:$0xff]
    %v127 = vld [vmem:[#allocation7 + $0x58] sm:$0xff]
    %v128 = vld [vmem:[#allocation7 + $0x60] sm:$0xff]
    %v129 = vld [vmem:[#allocation7 + $0x68] sm:$0xff]
    %v130 = vld [vmem:[#allocation7 + $0x70] sm:$0xff]
    %v131 = vld [vmem:[#allocation7 + $0x78] sm:$0xff]
    %v132 = vld [vmem:[#allocation7 + $0x80] sm:$0xff]
    %v133 = vld [vmem:[#allocation7 + $0x88] sm:$0xff]
    %v134 = vld [vmem:[#allocation7 + $0x90] sm:$0xff]
    %v135 = vld [vmem:[#allocation7 + $0x98] sm:$0xff]
    %v136 = vld [vmem:[#allocation7 + $0xa0] sm:$0xff]
    %v137 = vld [vmem:[#allocation7 + $0xa8] sm:$0xff]
    %v138 = vld [vmem:[#allocation7 + $0xb0] sm:$0xff]
    %v139 = vld [vmem:[#allocation7 + $0xb8] sm:$0xff]
    %v140 = vld [vmem:[#allocation7 + $0xc0] sm:$0xff]
    %v141 = vld [vmem:[#allocation7 + $0xc8] sm:$0xff]
    %v142 = vld [vmem:[#allocation7 + $0xd0] sm:$0xff]
    %v143 = vld [vmem:[#allocation7 + $0xd8] sm:$0xff]
    %v144 = vld [vmem:[#allocation7 + $0xe0] sm:$0xff]
    %v145 = vld [vmem:[#allocation7 + $0xe8] sm:$0xff]
    %v146 = vld [vmem:[#allocation7 + $0xf0] sm:$0xff]
    %v147 = vld [vmem:[#allocation7 + $0xf8] sm:$0xff]
    %v148 = vld [vmem:[#allocation9] sm:$0xff]
    %v149 = vld [vmem:[#allocation9 + $0x8] sm:$0xff]
    %v150 = vld [vmem:[#allocation9 + $0x10] sm:$0xff]
    %v151 = vld [vmem:[#allocation9 + $0x18] sm:$0xff]
    %v152 = vld [vmem:[#allocation9 + $0x20] sm:$0xff]
    %v153 = vld [vmem:[#allocation9 + $0x28] sm:$0xff]
    %v154 = vld [vmem:[#allocation9 + $0x30] sm:$0xff]
    %v155 = vld [vmem:[#allocation9 + $0x38] sm:$0xff]
    %v156 = vld [vmem:[#allocation9 + $0x40] sm:$0xff]
    %v157 = vld [vmem:[#allocation9 + $0x48] sm:$0xff]
    %v158 = vld [vmem:[#allocation9 + $0x50] sm:$0xff]
    %v159 = vld [vmem:[#allocation9 + $0x58] sm:$0xff]
    %v160 = vld [vmem:[#allocation9 + $0x60] sm:$0xff]
    %v161 = vld [vmem:[#allocation9 + $0x68] sm:$0xff]
    %v162 = vld [vmem:[#allocation9 + $0x70] sm:$0xff]
    %v163 = vld [vmem:[#allocation9 + $0x78] sm:$0xff]
    %v164 = vld [vmem:[#allocation9 + $0x80] sm:$0xff]
    %v165 = vld [vmem:[#allocation9 + $0x88] sm:$0xff]
    %v166 = vld [vmem:[#allocation9 + $0x90] sm:$0xff]
    %v167 = vld [vmem:[#allocation9 + $0x98] sm:$0xff]
    %v168 = vld [vmem:[#allocation9 + $0xa0] sm:$0xff]
    %v169 = vld [vmem:[#allocation9 + $0xa8] sm:$0xff]
    %v170 = vld [vmem:[#allocation9 + $0xb0] sm:$0xff]
    %v171 = vld [vmem:[#allocation9 + $0xb8] sm:$0xff]
    %v172 = vld [vmem:[#allocation9 + $0xc0] sm:$0xff]
    %v173 = vld [vmem:[#allocation9 + $0xc8] sm:$0xff]
    %v174 = vld [vmem:[#allocation9 + $0xd0] sm:$0xff]
    %v175 = vld [vmem:[#allocation9 + $0xd8] sm:$0xff]
    %v176 = vld [vmem:[#allocation9 + $0xe0] sm:$0xff]
    %v177 = vld [vmem:[#allocation9 + $0xe8] sm:$0xff]
    %v178 = vld [vmem:[#allocation9 + $0xf0] sm:$0xff]
    %v179 = vld [vmem:[#allocation9 + $0xf8] sm:$0xff]
    %v180 = vld [vmem:[%s3] sm:$0xf]
    %v181 = vld [vmem:[#allocation4] sm:$0xff]
    %v182 = vld [vmem:[#allocation4 + $0x8] sm:$0xff]
    %v183 = vld [vmem:[#allocation4 + $0x10] sm:$0xff]
    %v184 = vld [vmem:[#allocation4 + $0x18] sm:$0xff]
    %v185 = vld [vmem:[#allocation4 + $0x20] sm:$0xff]
    %v186 = vld [vmem:[#allocation4 + $0x28] sm:$0xff]
    %v187 = vld [vmem:[#allocation4 + $0x30] sm:$0xff]
    %v188 = vld [vmem:[#allocation4 + $0x38] sm:$0xff]
    %v189 = vtanh.pop %v181
    %v190 = vtanh.pop %v182
    %v191 = vtanh.pop %v183
    %v192 = vtanh.pop %v184
    %v193 = vtanh.pop %v185
    %v194 = vtanh.pop %v186
    %v195 = vtanh.pop %v187
    %v196 = vtanh.pop %v188
    %v197 = vpack.c.bf16 %v190, %v189
    %v198 = vpack.c.bf16 %v192, %v191
    %v199 = vpack.c.bf16 %v194, %v193
    %v200 = vpack.c.bf16 %v196, %v195
    %v202 = vlaneseq
    %v203 = vshrl.u32 %v202, 7
    %v204 = vsub.s32 0, %v203
    %v205 = vrot.slane %v180, %v204
    %v206 = vlaneseq
    %v207 = vshrl.u32 %v206, 7
    %v208 = vsub.s32 1, %v207
    %v209 = vrot.slane %v180, %v208
    %v210 = vlaneseq
    %v211 = vshrl.u32 %v210, 7
    %v212 = vsub.s32 2, %v211
    %v213 = vrot.slane %v180, %v212
    %v214 = vlaneseq
    %v215 = vshrl.u32 %v214, 7
    %v216 = vsub.s32 3, %v215
    %v217 = vrot.slane %v180, %v216
    %v254 = vunpack.c.l.b16 %v116
    %v255 = vunpack.c.h.b16 %v116
    %v256 = vunpack.c.l.b16 %v117
    %v257 = vunpack.c.h.b16 %v117
    %v258 = vunpack.c.l.b16 %v118
    %v259 = vunpack.c.h.b16 %v118
    %v260 = vunpack.c.l.b16 %v119
    %v261 = vunpack.c.h.b16 %v119
    %v262 = vunpack.c.l.b16 %v120
    %v263 = vunpack.c.h.b16 %v120
    %v264 = vunpack.c.l.b16 %v121
    %v265 = vunpack.c.h.b16 %v121
    %v266 = vunpack.c.l.b16 %v122
    %v267 = vunpack.c.h.b16 %v122
    %v268 = vunpack.c.l.b16 %v123
    %v269 = vunpack.c.h.b16 %v123
    %v270 = vunpack.c.l.b16 %v124
    %v271 = vunpack.c.h.b16 %v124
    %v272 = vunpack.c.l.b16 %v125
    %v273 = vunpack.c.h.b16 %v125
    %v274 = vunpack.c.l.b16 %v126
    %v275 = vunpack.c.h.b16 %v126
    %v276 = vunpack.c.l.b16 %v127
    %v277 = vunpack.c.h.b16 %v127
    %v278 = vunpack.c.l.b16 %v128
    %v279 = vunpack.c.h.b16 %v128
    %v280 = vunpack.c.l.b16 %v129
    %v281 = vunpack.c.h.b16 %v129
    %v282 = vunpack.c.l.b16 %v130
    %v283 = vunpack.c.h.b16 %v130
    %v284 = vunpack.c.l.b16 %v131
    %v285 = vunpack.c.h.b16 %v131
    %v286 = vunpack.c.l.b16 %v132
    %v287 = vunpack.c.h.b16 %v132
    %v288 = vunpack.c.l.b16 %v133
    %v289 = vunpack.c.h.b16 %v133
    %v290 = vunpack.c.l.b16 %v134
    %v291 = vunpack.c.h.b16 %v134
    %v292 = vunpack.c.l.b16 %v135
    %v293 = vunpack.c.h.b16 %v135
    %v294 = vunpack.c.l.b16 %v136
    %v295 = vunpack.c.h.b16 %v136
    %v296 = vunpack.c.l.b16 %v137
    %v297 = vunpack.c.h.b16 %v137
    %v298 = vunpack.c.l.b16 %v138
    %v299 = vunpack.c.h.b16 %v138
    %v300 = vunpack.c.l.b16 %v139
    %v301 = vunpack.c.h.b16 %v139
    %v302 = vunpack.c.l.b16 %v140
    %v303 = vunpack.c.h.b16 %v140
    %v304 = vunpack.c.l.b16 %v141
    %v305 = vunpack.c.h.b16 %v141
    %v306 = vunpack.c.l.b16 %v142
    %v307 = vunpack.c.h.b16 %v142
    %v308 = vunpack.c.l.b16 %v143
    %v309 = vunpack.c.h.b16 %v143
    %v310 = vunpack.c.l.b16 %v144
    %v311 = vunpack.c.h.b16 %v144
    %v312 = vunpack.c.l.b16 %v145
    %v313 = vunpack.c.h.b16 %v145
    %v314 = vunpack.c.l.b16 %v146
    %v315 = vunpack.c.h.b16 %v146
    %v316 = vunpack.c.l.b16 %v147
    %v317 = vunpack.c.h.b16 %v147
    %v318 = vpack.c.b16 %v258, %v254
    %v319 = vpack.c.b16 %v259, %v255
    %v320 = vpack.c.b16 %v260, %v256
    %v321 = vpack.c.b16 %v261, %v257
    %v322 = vpack.c.b16 %v266, %v262
    %v323 = vpack.c.b16 %v267, %v263
    %v324 = vpack.c.b16 %v268, %v264
    %v325 = vpack.c.b16 %v269, %v265
    %v326 = vpack.c.b16 %v274, %v270
    %v327 = vpack.c.b16 %v275, %v271
    %v328 = vpack.c.b16 %v276, %v272
    %v329 = vpack.c.b16 %v277, %v273
    %v330 = vpack.c.b16 %v282, %v278
    %v331 = vpack.c.b16 %v283, %v279
    %v332 = vpack.c.b16 %v284, %v280
    %v333 = vpack.c.b16 %v285, %v281
    %v334 = vpack.c.b16 %v290, %v286
    %v335 = vpack.c.b16 %v291, %v287
    %v336 = vpack.c.b16 %v292, %v288
    %v337 = vpack.c.b16 %v293, %v289
    %v338 = vpack.c.b16 %v298, %v294
    %v339 = vpack.c.b16 %v299, %v295
    %v340 = vpack.c.b16 %v300, %v296
    %v341 = vpack.c.b16 %v301, %v297
    %v342 = vpack.c.b16 %v306, %v302
    %v343 = vpack.c.b16 %v307, %v303
    %v344 = vpack.c.b16 %v308, %v304
    %v345 = vpack.c.b16 %v309, %v305
    %v346 = vpack.c.b16 %v314, %v310
    %v347 = vpack.c.b16 %v315, %v311
    %v348 = vpack.c.b16 %v316, %v312
    %v349 = vpack.c.b16 %v317, %v313
    %382 = vmatprep.subr.bf16.mxu0 %v347
    %383 = vmatpush1.bf16.msra.mxu0 %v346
    %384 = vmatprep.subr.bf16.mxu0 %v343
    %385 = vmatpush1.bf16.msra.mxu0 %v342
    %386 = vmatprep.subr.bf16.mxu0 %v339
    %387 = vmatpush1.bf16.msra.mxu0 %v338
    %388 = vmatprep.subr.bf16.mxu0 %v335
    %389 = vmatpush1.bf16.msra.mxu0 %v334
    %390 = vmatprep.subr.bf16.mxu0 %v331
    %391 = vmatpush1.bf16.msra.mxu0 %v330
    %392 = vmatprep.subr.bf16.mxu0 %v327
    %393 = vmatpush1.bf16.msra.mxu0 %v326
    %394 = vmatprep.subr.bf16.mxu0 %v323
    %395 = vmatpush1.bf16.msra.mxu0 %v322
    %396 = vmatprep.subr.bf16.mxu0 %v319
    %397 = vmatpush1.bf16.msra.mxu0 %v318
    %398 = vmatprep.subr.bf16.mxu0 0
    %399 = vmatpush2.bf16.msra.mxu0 0
    %400 = vmatprep.subr.bf16.mxu0 0
    %401 = vmatpush2.bf16.msra.mxu0 0
    %402 = vmatprep.subr.bf16.mxu0 0
    %403 = vmatpush2.bf16.msra.mxu0 0
    %404 = vmatprep.subr.bf16.mxu0 0
    %405 = vmatpush2.bf16.msra.mxu0 0
    %406 = vmatprep.subr.bf16.mxu0 0
    %407 = vmatpush2.bf16.msra.mxu0 0
    %408 = vmatprep.subr.bf16.mxu0 0
    %409 = vmatpush2.bf16.msra.mxu0 0
    %410 = vmatprep.subr.bf16.mxu0 0
    %411 = vmatpush2.bf16.msra.mxu0 0
    %412 = vmatprep.subr.bf16.mxu0 0
    %413 = vmatpush2.bf16.msra.mxu0 0
    %414 = vmatprep.mubr.bf16.mxu0 0
    %415 = vmatmul.mubr.bf16.gmra.mxu0 %v197
    %v416 = vpop.f32.mrf.mxu0
    %v417 = vadd.f32 %v205, %v416
    %v418 = vpop.f32.mrf.mxu0
    %v419 = vadd.f32 %v209, %v418
    %v420 = vpop.f32.mrf.mxu0
    %v421 = vadd.f32 %v205, %v420
    %v422 = vpop.f32.mrf.mxu0
    %v423 = vadd.f32 %v209, %v422
    %424 = vmatprep.mubr.bf16.mxu0 0
    %425 = vmatmul.mubr.bf16.gmra.mxu0 %v198
    %v426 = vpop.f32.mrf.mxu0
    %v427 = vadd.f32 %v205, %v426
    %v428 = vpop.f32.mrf.mxu0
    %v429 = vadd.f32 %v209, %v428
    %v430 = vpop.f32.mrf.mxu0
    %v431 = vadd.f32 %v205, %v430
    %v432 = vpop.f32.mrf.mxu0
    %v433 = vadd.f32 %v209, %v432
    %434 = vmatprep.mubr.bf16.mxu0 0
    %435 = vmatmul.mubr.bf16.gmra.mxu0 %v199
    %v436 = vpop.f32.mrf.mxu0
    %v437 = vadd.f32 %v205, %v436
    %v438 = vpop.f32.mrf.mxu0
    %v439 = vadd.f32 %v209, %v438
    %v440 = vpop.f32.mrf.mxu0
    %v441 = vadd.f32 %v205, %v440
    %v442 = vpop.f32.mrf.mxu0
    %v443 = vadd.f32 %v209, %v442
    %444 = vmatprep.mubr.bf16.mxu0 0
    %445 = vmatmul.mubr.bf16.gmra.mxu0 %v200
    %v446 = vpop.f32.mrf.mxu0
    %v447 = vadd.f32 %v205, %v446
    %v448 = vpop.f32.mrf.mxu0
    %v449 = vadd.f32 %v209, %v448
    %v450 = vpop.f32.mrf.mxu0
    %v451 = vadd.f32 %v205, %v450
    %v452 = vpop.f32.mrf.mxu0
    %v453 = vadd.f32 %v209, %v452
    %454 = vdwg.mxu0
    %455 = vmatprep.subr.bf16.mxu0 %v349
    %456 = vmatpush1.bf16.msra.mxu0 %v348
    %457 = vmatprep.subr.bf16.mxu0 %v345
    %458 = vmatpush1.bf16.msra.mxu0 %v344
    %459 = vmatprep.subr.bf16.mxu0 %v341
    %460 = vmatpush1.bf16.msra.mxu0 %v340
    %461 = vmatprep.subr.bf16.mxu0 %v337
    %462 = vmatpush1.bf16.msra.mxu0 %v336
    %463 = vmatprep.subr.bf16.mxu0 %v333
    %464 = vmatpush1.bf16.msra.mxu0 %v332
    %465 = vmatprep.subr.bf16.mxu0 %v329
    %466 = vmatpush1.bf16.msra.mxu0 %v328
    %467 = vmatprep.subr.bf16.mxu0 %v325
    %468 = vmatpush1.bf16.msra.mxu0 %v324
    %469 = vmatprep.subr.bf16.mxu0 %v321
    %470 = vmatpush1.bf16.msra.mxu0 %v320
    %471 = vmatprep.subr.bf16.mxu0 0
    %472 = vmatpush2.bf16.msra.mxu0 0
    %473 = vmatprep.subr.bf16.mxu0 0
    %474 = vmatpush2.bf16.msra.mxu0 0
    %475 = vmatprep.subr.bf16.mxu0 0
    %476 = vmatpush2.bf16.msra.mxu0 0
    %477 = vmatprep.subr.bf16.mxu0 0
    %478 = vmatpush2.bf16.msra.mxu0 0
    %479 = vmatprep.subr.bf16.mxu0 0
    %480 = vmatpush2.bf16.msra.mxu0 0
    %481 = vmatprep.subr.bf16.mxu0 0
    %482 = vmatpush2.bf16.msra.mxu0 0
    %483 = vmatprep.subr.bf16.mxu0 0
    %484 = vmatpush2.bf16.msra.mxu0 0
    %485 = vmatprep.subr.bf16.mxu0 0
    %486 = vmatpush2.bf16.msra.mxu0 0
    %487 = vmatprep.mubr.bf16.mxu0 0
    %488 = vmatmul.mubr.bf16.gmra.mxu0 %v197
    %v489 = vpop.f32.mrf.mxu0
    %v490 = vadd.f32 %v213, %v489
    %v491 = vpop.f32.mrf.mxu0
    %v492 = vadd.f32 %v217, %v491
    %v493 = vpop.f32.mrf.mxu0
    %v494 = vadd.f32 %v213, %v493
    %v495 = vpop.f32.mrf.mxu0
    %v496 = vadd.f32 %v217, %v495
    %497 = vmatprep.mubr.bf16.mxu0 0
    %498 = vmatmul.mubr.bf16.gmra.mxu0 %v198
    %v499 = vpop.f32.mrf.mxu0
    %v500 = vadd.f32 %v213, %v499
    %v501 = vpop.f32.mrf.mxu0
    %v502 = vadd.f32 %v217, %v501
    %v503 = vpop.f32.mrf.mxu0
    %v504 = vadd.f32 %v213, %v503
    %v505 = vpop.f32.mrf.mxu0
    %v506 = vadd.f32 %v217, %v505
    %507 = vmatprep.mubr.bf16.mxu0 0
    %508 = vmatmul.mubr.bf16.gmra.mxu0 %v199
    %v509 = vpop.f32.mrf.mxu0
    %v510 = vadd.f32 %v213, %v509
    %v511 = vpop.f32.mrf.mxu0
    %v512 = vadd.f32 %v217, %v511
    %v513 = vpop.f32.mrf.mxu0
    %v514 = vadd.f32 %v213, %v513
    %v515 = vpop.f32.mrf.mxu0
    %v516 = vadd.f32 %v217, %v515
    %517 = vmatprep.mubr.bf16.mxu0 0
    %518 = vmatmul.mubr.bf16.gmra.mxu0 %v200
    %v519 = vpop.f32.mrf.mxu0
    %v520 = vadd.f32 %v213, %v519
    %v521 = vpop.f32.mrf.mxu0
    %v522 = vadd.f32 %v217, %v521
    %v523 = vpop.f32.mrf.mxu0
    %v524 = vadd.f32 %v213, %v523
    %v525 = vpop.f32.mrf.mxu0
    %v526 = vadd.f32 %v217, %v525
    %527 = vdwg.mxu0
    %528 = vst [vmem:[#allocation2] sm:$0xff] %v417
    %529 = vst [vmem:[#allocation2 + $0x8] sm:$0xff] %v419
    %530 = vst [vmem:[#allocation2 + $0x10] sm:$0xff] %v490
    %531 = vst [vmem:[#allocation2 + $0x18] sm:$0xff] %v492
    %532 = vst [vmem:[#allocation2 + $0x20] sm:$0xff] %v421
    %533 = vst [vmem:[#allocation2 + $0x28] sm:$0xff] %v423
    %534 = vst [vmem:[#allocation2 + $0x30] sm:$0xff] %v494
    %535 = vst [vmem:[#allocation2 + $0x38] sm:$0xff] %v496
    %536 = vst [vmem:[#allocation2 + $0x40] sm:$0xff] %v427
    %537 = vst [vmem:[#allocation2 + $0x48] sm:$0xff] %v429
    %538 = vst [vmem:[#allocation2 + $0x50] sm:$0xff] %v500
    %539 = vst [vmem:[#allocation2 + $0x58] sm:$0xff] %v502
    %540 = vst [vmem:[#allocation2 + $0x60] sm:$0xff] %v431
    %541 = vst [vmem:[#allocation2 + $0x68] sm:$0xff] %v433
    %542 = vst [vmem:[#allocation2 + $0x70] sm:$0xff] %v504
    %543 = vst [vmem:[#allocation2 + $0x78] sm:$0xff] %v506
    %544 = vst [vmem:[#allocation2 + $0x80] sm:$0xff] %v437
    %545 = vst [vmem:[#allocation2 + $0x88] sm:$0xff] %v439
    %546 = vst [vmem:[#allocation2 + $0x90] sm:$0xff] %v510
    %547 = vst [vmem:[#allocation2 + $0x98] sm:$0xff] %v512
    %548 = vst [vmem:[#allocation2 + $0xa0] sm:$0xff] %v441
    %549 = vst [vmem:[#allocation2 + $0xa8] sm:$0xff] %v443
    %550 = vst [vmem:[#allocation2 + $0xb0] sm:$0xff] %v514
    %551 = vst [vmem:[#allocation2 + $0xb8] sm:$0xff] %v516
    %552 = vst [vmem:[#allocation2 + $0xc0] sm:$0xff] %v447
    %553 = vst [vmem:[#allocation2 + $0xc8] sm:$0xff] %v449
    %554 = vst [vmem:[#allocation2 + $0xd0] sm:$0xff] %v520
    %555 = vst [vmem:[#allocation2 + $0xd8] sm:$0xff] %v522
    %556 = vst [vmem:[#allocation2 + $0xe0] sm:$0xff] %v451
    %557 = vst [vmem:[#allocation2 + $0xe8] sm:$0xff] %v453
    %558 = vst [vmem:[#allocation2 + $0xf0] sm:$0xff] %v524
    %559 = vst [vmem:[#allocation2 + $0xf8] sm:$0xff] %v526
    %v560 = vld [vmem:[#allocation2] sm:$0xff]
    %v561 = vld [vmem:[#allocation2 + $0x8] sm:$0xff]
    %v562 = vld [vmem:[#allocation2 + $0x10] sm:$0xff]
    %v563 = vld [vmem:[#allocation2 + $0x18] sm:$0xff]
    %v564 = vxor.u32 %v560, 2147483648
    %v565 = vmul.f32 %v564, 1.442695
    %v566 = vpow.pop %v565
    %v567 = vadd.f32 %v566, 1.0
    %v568 = vrcp.pop %v567
    %v569 = vmul.f32 1.0, %v568
    %v570 = vxor.u32 %v561, 2147483648
    %v571 = vmul.f32 %v570, 1.442695
    %v572 = vpow.pop %v571
    %v573 = vadd.f32 %v572, 1.0
    %v574 = vrcp.pop %v573
    %v575 = vmul.f32 1.0, %v574
    %v576 = vtanh.pop %v562
    %v577 = vxor.u32 %v563, 2147483648
    %v578 = vmul.f32 %v577, 1.442695
    %v579 = vpow.pop %v578
    %v580 = vadd.f32 %v579, 1.0
    %v581 = vrcp.pop %v580
    %v582 = vmul.f32 1.0, %v581
    %v583 = vmul.f32 %v575, 0.0
    %v584 = vmul.f32 %v569, %v576
    %v585 = vadd.f32 %v583, %v584
    %v586 = vtanh.pop %v585
    %v587 = vmul.f32 %v582, %v586
    %588 = vst [vmem:[#allocation3] sm:$0xff] %v587
    %v589 = vld [vmem:[#allocation2 + $0x20] sm:$0xff]
    %v590 = vld [vmem:[#allocation2 + $0x28] sm:$0xff]
    %v591 = vld [vmem:[#allocation2 + $0x30] sm:$0xff]
    %v592 = vld [vmem:[#allocation2 + $0x38] sm:$0xff]
    %v593 = vpack.c.bf16 %v587, %v587
    %v626 = vunpack.c.l.b16 %v148
    %v627 = vunpack.c.h.b16 %v148
    %v628 = vunpack.c.l.b16 %v149
    %v629 = vunpack.c.h.b16 %v149
    %v630 = vunpack.c.l.b16 %v150
    %v631 = vunpack.c.h.b16 %v150
    %v632 = vunpack.c.l.b16 %v151
    %v633 = vunpack.c.h.b16 %v151
    %v634 = vunpack.c.l.b16 %v152
    %v635 = vunpack.c.h.b16 %v152
    %v636 = vunpack.c.l.b16 %v153
    %v637 = vunpack.c.h.b16 %v153
    %v638 = vunpack.c.l.b16 %v154
    %v639 = vunpack.c.h.b16 %v154
    %v640 = vunpack.c.l.b16 %v155
    %v641 = vunpack.c.h.b16 %v155
    %v642 = vunpack.c.l.b16 %v156
    %v643 = vunpack.c.h.b16 %v156
    %v644 = vunpack.c.l.b16 %v157
    %v645 = vunpack.c.h.b16 %v157
    %v646 = vunpack.c.l.b16 %v158
    %v647 = vunpack.c.h.b16 %v158
    %v648 = vunpack.c.l.b16 %v159
    %v649 = vunpack.c.h.b16 %v159
    %v650 = vunpack.c.l.b16 %v160
    %v651 = vunpack.c.h.b16 %v160
    %v652 = vunpack.c.l.b16 %v161
    %v653 = vunpack.c.h.b16 %v161
    %v654 = vunpack.c.l.b16 %v162
    %v655 = vunpack.c.h.b16 %v162
    %v656 = vunpack.c.l.b16 %v163
    %v657 = vunpack.c.h.b16 %v163
    %v658 = vunpack.c.l.b16 %v164
    %v659 = vunpack.c.h.b16 %v164
    %v660 = vunpack.c.l.b16 %v165
    %v661 = vunpack.c.h.b16 %v165
    %v662 = vunpack.c.l.b16 %v166
    %v663 = vunpack.c.h.b16 %v166
    %v664 = vunpack.c.l.b16 %v167
    %v665 = vunpack.c.h.b16 %v167
    %v666 = vunpack.c.l.b16 %v168
    %v667 = vunpack.c.h.b16 %v168
    %v668 = vunpack.c.l.b16 %v169
    %v669 = vunpack.c.h.b16 %v169
    %v670 = vunpack.c.l.b16 %v170
    %v671 = vunpack.c.h.b16 %v170
    %v672 = vunpack.c.l.b16 %v171
    %v673 = vunpack.c.h.b16 %v171
    %v674 = vunpack.c.l.b16 %v172
    %v675 = vunpack.c.h.b16 %v172
    %v676 = vunpack.c.l.b16 %v173
    %v677 = vunpack.c.h.b16 %v173
    %v678 = vunpack.c.l.b16 %v174
    %v679 = vunpack.c.h.b16 %v174
    %v680 = vunpack.c.l.b16 %v175
    %v681 = vunpack.c.h.b16 %v175
    %v682 = vunpack.c.l.b16 %v176
    %v683 = vunpack.c.h.b16 %v176
    %v684 = vunpack.c.l.b16 %v177
    %v685 = vunpack.c.h.b16 %v177
    %v686 = vunpack.c.l.b16 %v178
    %v687 = vunpack.c.h.b16 %v178
    %v688 = vunpack.c.l.b16 %v179
    %v689 = vunpack.c.h.b16 %v179
    %v690 = vpack.c.b16 %v630, %v626
    %v691 = vpack.c.b16 %v631, %v627
    %v692 = vpack.c.b16 %v632, %v628
    %v693 = vpack.c.b16 %v633, %v629
    %v694 = vpack.c.b16 %v638, %v634
    %v695 = vpack.c.b16 %v639, %v635
    %v696 = vpack.c.b16 %v640, %v636
    %v697 = vpack.c.b16 %v641, %v637
    %v698 = vpack.c.b16 %v646, %v642
    %v699 = vpack.c.b16 %v647, %v643
    %v700 = vpack.c.b16 %v648, %v644
    %v701 = vpack.c.b16 %v649, %v645
    %v702 = vpack.c.b16 %v654, %v650
    %v703 = vpack.c.b16 %v655, %v651
    %v704 = vpack.c.b16 %v656, %v652
    %v705 = vpack.c.b16 %v657, %v653
    %v706 = vpack.c.b16 %v662, %v658
    %v707 = vpack.c.b16 %v663, %v659
    %v708 = vpack.c.b16 %v664, %v660
    %v709 = vpack.c.b16 %v665, %v661
    %v710 = vpack.c.b16 %v670, %v666
    %v711 = vpack.c.b16 %v671, %v667
    %v712 = vpack.c.b16 %v672, %v668
    %v713 = vpack.c.b16 %v673, %v669
    %v714 = vpack.c.b16 %v678, %v674
    %v715 = vpack.c.b16 %v679, %v675
    %v716 = vpack.c.b16 %v680, %v676
    %v717 = vpack.c.b16 %v681, %v677
    %v718 = vpack.c.b16 %v686, %v682
    %v719 = vpack.c.b16 %v687, %v683
    %v720 = vpack.c.b16 %v688, %v684
    %v721 = vpack.c.b16 %v689, %v685
    %754 = vmatprep.subr.bf16.mxu0 %v719
    %755 = vmatpush1.bf16.msra.mxu0 %v718
    %756 = vmatprep.subr.bf16.mxu0 %v715
    %757 = vmatpush1.bf16.msra.mxu0 %v714
    %758 = vmatprep.subr.bf16.mxu0 %v711
    %759 = vmatpush1.bf16.msra.mxu0 %v710
    %760 = vmatprep.subr.bf16.mxu0 %v707
    %761 = vmatpush1.bf16.msra.mxu0 %v706
    %762 = vmatprep.subr.bf16.mxu0 %v703
    %763 = vmatpush1.bf16.msra.mxu0 %v702
    %764 = vmatprep.subr.bf16.mxu0 %v699
    %765 = vmatpush1.bf16.msra.mxu0 %v698
    %766 = vmatprep.subr.bf16.mxu0 %v695
    %767 = vmatpush1.bf16.msra.mxu0 %v694
    %768 = vmatprep.subr.bf16.mxu0 %v691
    %769 = vmatpush1.bf16.msra.mxu0 %v690
    %770 = vmatprep.subr.bf16.mxu0 0
    %771 = vmatpush2.bf16.msra.mxu0 0
    %772 = vmatprep.subr.bf16.mxu0 0
    %773 = vmatpush2.bf16.msra.mxu0 0
    %774 = vmatprep.subr.bf16.mxu0 0
    %775 = vmatpush2.bf16.msra.mxu0 0
    %776 = vmatprep.subr.bf16.mxu0 0
    %777 = vmatpush2.bf16.msra.mxu0 0
    %778 = vmatprep.subr.bf16.mxu0 0
    %779 = vmatpush2.bf16.msra.mxu0 0
    %780 = vmatprep.subr.bf16.mxu0 0
    %781 = vmatpush2.bf16.msra.mxu0 0
    %782 = vmatprep.subr.bf16.mxu0 0
    %783 = vmatpush2.bf16.msra.mxu0 0
    %784 = vmatprep.subr.bf16.mxu0 0
    %785 = vmatpush2.bf16.msra.mxu0 0
    %786 = vmatprep.mubr.bf16.mxu0 0
    %787 = vmatmul.mubr.bf16.gmra.mxu0 %v593
    %v788 = vpop.f32.mrf.mxu0
    %v789 = vadd.f32 0.0, %v788
    %v790 = vpop.f32.mrf.mxu0
    %v791 = vadd.f32 0.0, %v790
    %v792 = vpop.f32.mrf.mxu0
    %v793 = vpop.f32.mrf.mxu0
    %794 = vdwg.mxu0
    %795 = vmatprep.subr.bf16.mxu0 %v721
    %796 = vmatpush1.bf16.msra.mxu0 %v720
    %797 = vmatprep.subr.bf16.mxu0 %v717
    %798 = vmatpush1.bf16.msra.mxu0 %v716
    %799 = vmatprep.subr.bf16.mxu0 %v713
    %800 = vmatpush1.bf16.msra.mxu0 %v712
    %801 = vmatprep.subr.bf16.mxu0 %v709
    %802 = vmatpush1.bf16.msra.mxu0 %v708
    %803 = vmatprep.subr.bf16.mxu0 %v705
    %804 = vmatpush1.bf16.msra.mxu0 %v704
    %805 = vmatprep.subr.bf16.mxu0 %v701
    %806 = vmatpush1.bf16.msra.mxu0 %v700
    %807 = vmatprep.subr.bf16.mxu0 %v697
    %808 = vmatpush1.bf16.msra.mxu0 %v696
    %809 = vmatprep.subr.bf16.mxu0 %v693
    %810 = vmatpush1.bf16.msra.mxu0 %v692
    %811 = vmatprep.subr.bf16.mxu0 0
    %812 = vmatpush2.bf16.msra.mxu0 0
    %813 = vmatprep.subr.bf16.mxu0 0
    %814 = vmatpush2.bf16.msra.mxu0 0
    %815 = vmatprep.subr.bf16.mxu0 0
    %816 = vmatpush2.bf16.msra.mxu0 0
    %817 = vmatprep.subr.bf16.mxu0 0
    %818 = vmatpush2.bf16.msra.mxu0 0
    %819 = vmatprep.subr.bf16.mxu0 0
    %820 = vmatpush2.bf16.msra.mxu0 0
    %821 = vmatprep.subr.bf16.mxu0 0
    %822 = vmatpush2.bf16.msra.mxu0 0
    %823 = vmatprep.subr.bf16.mxu0 0
    %824 = vmatpush2.bf16.msra.mxu0 0
    %825 = vmatprep.subr.bf16.mxu0 0
    %826 = vmatpush2.bf16.msra.mxu0 0
    %827 = vmatprep.mubr.bf16.mxu0 0
    %828 = vmatmul.mubr.bf16.gmra.mxu0 %v593
    %v829 = vpop.f32.mrf.mxu0
    %v830 = vadd.f32 0.0, %v829
    %v831 = vpop.f32.mrf.mxu0
    %v832 = vadd.f32 0.0, %v831
    %v833 = vpop.f32.mrf.mxu0
    %v834 = vpop.f32.mrf.mxu0
    %835 = vdwg.mxu0
    %v836 = vadd.f32 %v589, %v789
    %v837 = vadd.f32 %v590, %v791
    %v838 = vadd.f32 %v591, %v830
    %v839 = vadd.f32 %v592, %v832
    %v840 = vxor.u32 %v836, 2147483648
    %v841 = vmul.f32 %v840, 1.442695
    %v842 = vpow.pop %v841
    %v843 = vadd.f32 %v842, 1.0
    %v844 = vrcp.pop %v843
    %v845 = vmul.f32 1.0, %v844
    %v846 = vxor.u32 %v837, 2147483648
    %v847 = vmul.f32 %v846, 1.442695
    %v848 = vpow.pop %v847
    %v849 = vadd.f32 %v848, 1.0
    %v850 = vrcp.pop %v849
    %v851 = vmul.f32 1.0, %v850
    %v852 = vtanh.pop %v838
    %v853 = vxor.u32 %v839, 2147483648
    %v854 = vmul.f32 %v853, 1.442695
    %v855 = vpow.pop %v854
    %v856 = vadd.f32 %v855, 1.0
    %v857 = vrcp.pop %v856
    %v858 = vmul.f32 1.0, %v857
    %v859 = vmul.f32 %v851, %v585
    %v860 = vmul.f32 %v845, %v852
    %v861 = vadd.f32 %v859, %v860
    %v862 = vtanh.pop %v861
    %v863 = vmul.f32 %v858, %v862
    %864 = vst [vmem:[#allocation3 + $0x8] sm:$0xff] %v863
    %v865 = vld [vmem:[#allocation2 + $0x40] sm:$0xff]
    %v866 = vld [vmem:[#allocation2 + $0x48] sm:$0xff]
    %v867 = vld [vmem:[#allocation2 + $0x50] sm:$0xff]
    %v868 = vld [vmem:[#allocation2 + $0x58] sm:$0xff]
    %v869 = vpack.c.bf16 %v863, %v863
    %870 = vmatprep.subr.bf16.mxu0 %v719
    %871 = vmatpush1.bf16.msra.mxu0 %v718
    %872 = vmatprep.subr.bf16.mxu0 %v715
    %873 = vmatpush1.bf16.msra.mxu0 %v714
    %874 = vmatprep.subr.bf16.mxu0 %v711
    %875 = vmatpush1.bf16.msra.mxu0 %v710
    %876 = vmatprep.subr.bf16.mxu0 %v707
    %877 = vmatpush1.bf16.msra.mxu0 %v706
    %878 = vmatprep.subr.bf16.mxu0 %v703
    %879 = vmatpush1.bf16.msra.mxu0 %v702
    %880 = vmatprep.subr.bf16.mxu0 %v699
    %881 = vmatpush1.bf16.msra.mxu0 %v698
    %882 = vmatprep.subr.bf16.mxu0 %v695
    %883 = vmatpush1.bf16.msra.mxu0 %v694
    %884 = vmatprep.subr.bf16.mxu0 %v691
    %885 = vmatpush1.bf16.msra.mxu0 %v690
    %886 = vmatprep.subr.bf16.mxu0 0
    %887 = vmatpush2.bf16.msra.mxu0 0
    %888 = vmatprep.subr.bf16.mxu0 0
    %889 = vmatpush2.bf16.msra.mxu0 0
    %890 = vmatprep.subr.bf16.mxu0 0
    %891 = vmatpush2.bf16.msra.mxu0 0
    %892 = vmatprep.subr.bf16.mxu0 0
    %893 = vmatpush2.bf16.msra.mxu0 0
    %894 = vmatprep.subr.bf16.mxu0 0
    %895 = vmatpush2.bf16.msra.mxu0 0
    %896 = vmatprep.subr.bf16.mxu0 0
    %897 = vmatpush2.bf16.msra.mxu0 0
    %898 = vmatprep.subr.bf16.mxu0 0
    %899 = vmatpush2.bf16.msra.mxu0 0
    %900 = vmatprep.subr.bf16.mxu0 0
    %901 = vmatpush2.bf16.msra.mxu0 0
    %902 = vmatprep.mubr.bf16.mxu0 0
    %903 = vmatmul.mubr.bf16.gmra.mxu0 %v869
    %v904 = vpop.f32.mrf.mxu0
    %v905 = vadd.f32 0.0, %v904
    %v906 = vpop.f32.mrf.mxu0
    %v907 = vadd.f32 0.0, %v906
    %v908 = vpop.f32.mrf.mxu0
    %v909 = vpop.f32.mrf.mxu0
    %910 = vdwg.mxu0
    %911 = vmatprep.subr.bf16.mxu0 %v721
    %912 = vmatpush1.bf16.msra.mxu0 %v720
    %913 = vmatprep.subr.bf16.mxu0 %v717
    %914 = vmatpush1.bf16.msra.mxu0 %v716
    %915 = vmatprep.subr.bf16.mxu0 %v713
    %916 = vmatpush1.bf16.msra.mxu0 %v712
    %917 = vmatprep.subr.bf16.mxu0 %v709
    %918 = vmatpush1.bf16.msra.mxu0 %v708
    %919 = vmatprep.subr.bf16.mxu0 %v705
    %920 = vmatpush1.bf16.msra.mxu0 %v704
    %921 = vmatprep.subr.bf16.mxu0 %v701
    %922 = vmatpush1.bf16.msra.mxu0 %v700
    %923 = vmatprep.subr.bf16.mxu0 %v697
    %924 = vmatpush1.bf16.msra.mxu0 %v696
    %925 = vmatprep.subr.bf16.mxu0 %v693
    %926 = vmatpush1.bf16.msra.mxu0 %v692
    %927 = vmatprep.subr.bf16.mxu0 0
    %928 = vmatpush2.bf16.msra.mxu0 0
    %929 = vmatprep.subr.bf16.mxu0 0
    %930 = vmatpush2.bf16.msra.mxu0 0
    %931 = vmatprep.subr.bf16.mxu0 0
    %932 = vmatpush2.bf16.msra.mxu0 0
    %933 = vmatprep.subr.bf16.mxu0 0
    %934 = vmatpush2.bf16.msra.mxu0 0
    %935 = vmatprep.subr.bf16.mxu0 0
    %936 = vmatpush2.bf16.msra.mxu0 0
    %937 = vmatprep.subr.bf16.mxu0 0
    %938 = vmatpush2.bf16.msra.mxu0 0
    %939 = vmatprep.subr.bf16.mxu0 0
    %940 = vmatpush2.bf16.msra.mxu0 0
    %941 = vmatprep.subr.bf16.mxu0 0
    %942 = vmatpush2.bf16.msra.mxu0 0
    %943 = vmatprep.mubr.bf16.mxu0 0
    %944 = vmatmul.mubr.bf16.gmra.mxu0 %v869
    %v945 = vpop.f32.mrf.mxu0
    %v946 = vadd.f32 0.0, %v945
    %v947 = vpop.f32.mrf.mxu0
    %v948 = vadd.f32 0.0, %v947
    %v949 = vpop.f32.mrf.mxu0
    %v950 = vpop.f32.mrf.mxu0
    %951 = vdwg.mxu0
    %v952 = vadd.f32 %v865, %v905
    %v953 = vadd.f32 %v866, %v907
    %v954 = vadd.f32 %v867, %v946
    %v955 = vadd.f32 %v868, %v948
    %v956 = vxor.u32 %v952, 2147483648
    %v957 = vmul.f32 %v956, 1.442695
    %v958 = vpow.pop %v957
    %v959 = vadd.f32 %v958, 1.0
    %v960 = vrcp.pop %v959
    %v961 = vmul.f32 1.0, %v960
    %v962 = vxor.u32 %v953, 2147483648
    %v963 = vmul.f32 %v962, 1.442695
    %v964 = vpow.pop %v963
    %v965 = vadd.f32 %v964, 1.0
    %v966 = vrcp.pop %v965
    %v967 = vmul.f32 1.0, %v966
    %v968 = vtanh.pop %v954
    %v969 = vxor.u32 %v955, 2147483648
    %v970 = vmul.f32 %v969, 1.442695
    %v971 = vpow.pop %v970
    %v972 = vadd.f32 %v971, 1.0
    %v973 = vrcp.pop %v972
    %v974 = vmul.f32 1.0, %v973
    %v975 = vmul.f32 %v967, %v861
    %v976 = vmul.f32 %v961, %v968
    %v977 = vadd.f32 %v975, %v976
    %v978 = vtanh.pop %v977
    %v979 = vmul.f32 %v974, %v978
    %980 = vst [vmem:[#allocation3 + $0x10] sm:$0xff] %v979
    %v981 = vld [vmem:[#allocation2 + $0x60] sm:$0xff]
    %v982 = vld [vmem:[#allocation2 + $0x68] sm:$0xff]
    %v983 = vld [vmem:[#allocation2 + $0x70] sm:$0xff]
    %v984 = vld [vmem:[#allocation2 + $0x78] sm:$0xff]
    %v985 = vpack.c.bf16 %v979, %v979
    %986 = vmatprep.subr.bf16.mxu0 %v719
    %987 = vmatpush1.bf16.msra.mxu0 %v718
    %988 = vmatprep.subr.bf16.mxu0 %v715
    %989 = vmatpush1.bf16.msra.mxu0 %v714
    %990 = vmatprep.subr.bf16.mxu0 %v711
    %991 = vmatpush1.bf16.msra.mxu0 %v710
    %992 = vmatprep.subr.bf16.mxu0 %v707
    %993 = vmatpush1.bf16.msra.mxu0 %v706
    %994 = vmatprep.subr.bf16.mxu0 %v703
    %995 = vmatpush1.bf16.msra.mxu0 %v702
    %996 = vmatprep.subr.bf16.mxu0 %v699
    %997 = vmatpush1.bf16.msra.mxu0 %v698
    %998 = vmatprep.subr.bf16.mxu0 %v695
    %999 = vmatpush1.bf16.msra.mxu0 %v694
    %1000 = vmatprep.subr.bf16.mxu0 %v691
    %1001 = vmatpush1.bf16.msra.mxu0 %v690
    %1002 = vmatprep.subr.bf16.mxu0 0
    %1003 = vmatpush2.bf16.msra.mxu0 0
    %1004 = vmatprep.subr.bf16.mxu0 0
    %1005 = vmatpush2.bf16.msra.mxu0 0
    %1006 = vmatprep.subr.bf16.mxu0 0
    %1007 = vmatpush2.bf16.msra.mxu0 0
    %1008 = vmatprep.subr.bf16.mxu0 0
    %1009 = vmatpush2.bf16.msra.mxu0 0
    %1010 = vmatprep.subr.bf16.mxu0 0
    %1011 = vmatpush2.bf16.msra.mxu0 0
    %1012 = vmatprep.subr.bf16.mxu0 0
    %1013 = vmatpush2.bf16.msra.mxu0 0
    %1014 = vmatprep.subr.bf16.mxu0 0
    %1015 = vmatpush2.bf16.msra.mxu0 0
    %1016 = vmatprep.subr.bf16.mxu0 0
    %1017 = vmatpush2.bf16.msra.mxu0 0
    %1018 = vmatprep.mubr.bf16.mxu0 0
    %1019 = vmatmul.mubr.bf16.gmra.mxu0 %v985
    %v1020 = vpop.f32.mrf.mxu0
    %v1021 = vadd.f32 0.0, %v1020
    %v1022 = vpop.f32.mrf.mxu0
    %v1023 = vadd.f32 0.0, %v1022
    %v1024 = vpop.f32.mrf.mxu0
    %v1025 = vpop.f32.mrf.mxu0
    %1026 = vdwg.mxu0
    %1027 = vmatprep.subr.bf16.mxu0 %v721
    %1028 = vmatpush1.bf16.msra.mxu0 %v720
    %1029 = vmatprep.subr.bf16.mxu0 %v717
    %1030 = vmatpush1.bf16.msra.mxu0 %v716
    %1031 = vmatprep.subr.bf16.mxu0 %v713
    %1032 = vmatpush1.bf16.msra.mxu0 %v712
    %1033 = vmatprep.subr.bf16.mxu0 %v709
    %1034 = vmatpush1.bf16.msra.mxu0 %v708
    %1035 = vmatprep.subr.bf16.mxu0 %v705
    %1036 = vmatpush1.bf16.msra.mxu0 %v704
    %1037 = vmatprep.subr.bf16.mxu0 %v701
    %1038 = vmatpush1.bf16.msra.mxu0 %v700
    %1039 = vmatprep.subr.bf16.mxu0 %v697
    %1040 = vmatpush1.bf16.msra.mxu0 %v696
    %1041 = vmatprep.subr.bf16.mxu0 %v693
    %1042 = vmatpush1.bf16.msra.mxu0 %v692
    %1043 = vmatprep.subr.bf16.mxu0 0
    %1044 = vmatpush2.bf16.msra.mxu0 0
    %1045 = vmatprep.subr.bf16.mxu0 0
    %1046 = vmatpush2.bf16.msra.mxu0 0
    %1047 = vmatprep.subr.bf16.mxu0 0
    %1048 = vmatpush2.bf16.msra.mxu0 0
    %1049 = vmatprep.subr.bf16.mxu0 0
    %1050 = vmatpush2.bf16.msra.mxu0 0
    %1051 = vmatprep.subr.bf16.mxu0 0
    %1052 = vmatpush2.bf16.msra.mxu0 0
    %1053 = vmatprep.subr.bf16.mxu0 0
    %1054 = vmatpush2.bf16.msra.mxu0 0
    %1055 = vmatprep.subr.bf16.mxu0 0
    %1056 = vmatpush2.bf16.msra.mxu0 0
    %1057 = vmatprep.subr.bf16.mxu0 0
    %1058 = vmatpush2.bf16.msra.mxu0 0
    %1059 = vmatprep.mubr.bf16.mxu0 0
    %1060 = vmatmul.mubr.bf16.gmra.mxu0 %v985
    %v1061 = vpop.f32.mrf.mxu0
    %v1062 = vadd.f32 0.0, %v1061
    %v1063 = vpop.f32.mrf.mxu0
    %v1064 = vadd.f32 0.0, %v1063
    %v1065 = vpop.f32.mrf.mxu0
    %v1066 = vpop.f32.mrf.mxu0
    %1067 = vdwg.mxu0
    %v1068 = vadd.f32 %v981, %v1021
    %v1069 = vadd.f32 %v982, %v1023
    %v1070 = vadd.f32 %v983, %v1062
    %v1071 = vadd.f32 %v984, %v1064
    %v1072 = vxor.u32 %v1068, 2147483648
    %v1073 = vmul.f32 %v1072, 1.442695
    %v1074 = vpow.pop %v1073
    %v1075 = vadd.f32 %v1074, 1.0
    %v1076 = vrcp.pop %v1075
    %v1077 = vmul.f32 1.0, %v1076
    %v1078 = vxor.u32 %v1069, 2147483648
    %v1079 = vmul.f32 %v1078, 1.442695
    %v1080 = vpow.pop %v1079
    %v1081 = vadd.f32 %v1080, 1.0
    %v1082 = vrcp.pop %v1081
    %v1083 = vmul.f32 1.0, %v1082
    %v1084 = vtanh.pop %v1070
    %v1085 = vxor.u32 %v1071, 2147483648
    %v1086 = vmul.f32 %v1085, 1.442695
    %v1087 = vpow.pop %v1086
    %v1088 = vadd.f32 %v1087, 1.0
    %v1089 = vrcp.pop %v1088
    %v1090 = vmul.f32 1.0, %v1089
    %v1091 = vmul.f32 %v1083, %v977
    %v1092 = vmul.f32 %v1077, %v1084
    %v1093 = vadd.f32 %v1091, %v1092
    %v1094 = vtanh.pop %v1093
    %v1095 = vmul.f32 %v1090, %v1094
    %1096 = vst [vmem:[#allocation3 + $0x18] sm:$0xff] %v1095
    %v1097 = vld [vmem:[#allocation2 + $0x80] sm:$0xff]
    %v1098 = vld [vmem:[#allocation2 + $0x88] sm:$0xff]
    %v1099 = vld [vmem:[#allocation2 + $0x90] sm:$0xff]
    %v1100 = vld [vmem:[#allocation2 + $0x98] sm:$0xff]
    %v1101 = vpack.c.bf16 %v1095, %v1095
    %1102 = vmatprep.subr.bf16.mxu0 %v719
    %1103 = vmatpush1.bf16.msra.mxu0 %v718
    %1104 = vmatprep.subr.bf16.mxu0 %v715
    %1105 = vmatpush1.bf16.msra.mxu0 %v714
    %1106 = vmatprep.subr.bf16.mxu0 %v711
    %1107 = vmatpush1.bf16.msra.mxu0 %v710
    %1108 = vmatprep.subr.bf16.mxu0 %v707
    %1109 = vmatpush1.bf16.msra.mxu0 %v706
    %1110 = vmatprep.subr.bf16.mxu0 %v703
    %1111 = vmatpush1.bf16.msra.mxu0 %v702
    %1112 = vmatprep.subr.bf16.mxu0 %v699
    %1113 = vmatpush1.bf16.msra.mxu0 %v698
    %1114 = vmatprep.subr.bf16.mxu0 %v695
    %1115 = vmatpush1.bf16.msra.mxu0 %v694
    %1116 = vmatprep.subr.bf16.mxu0 %v691
    %1117 = vmatpush1.bf16.msra.mxu0 %v690
    %1118 = vmatprep.subr.bf16.mxu0 0
    %1119 = vmatpush2.bf16.msra.mxu0 0
    %1120 = vmatprep.subr.bf16.mxu0 0
    %1121 = vmatpush2.bf16.msra.mxu0 0
    %1122 = vmatprep.subr.bf16.mxu0 0
    %1123 = vmatpush2.bf16.msra.mxu0 0
    %1124 = vmatprep.subr.bf16.mxu0 0
    %1125 = vmatpush2.bf16.msra.mxu0 0
    %1126 = vmatprep.subr.bf16.mxu0 0
    %1127 = vmatpush2.bf16.msra.mxu0 0
    %1128 = vmatprep.subr.bf16.mxu0 0
    %1129 = vmatpush2.bf16.msra.mxu0 0
    %1130 = vmatprep.subr.bf16.mxu0 0
    %1131 = vmatpush2.bf16.msra.mxu0 0
    %1132 = vmatprep.subr.bf16.mxu0 0
    %1133 = vmatpush2.bf16.msra.mxu0 0
    %1134 = vmatprep.mubr.bf16.mxu0 0
    %1135 = vmatmul.mubr.bf16.gmra.mxu0 %v1101
    %v1136 = vpop.f32.mrf.mxu0
    %v1137 = vadd.f32 0.0, %v1136
    %v1138 = vpop.f32.mrf.mxu0
    %v1139 = vadd.f32 0.0, %v1138
    %v1140 = vpop.f32.mrf.mxu0
    %v1141 = vpop.f32.mrf.mxu0
    %1142 = vdwg.mxu0
    %1143 = vmatprep.subr.bf16.mxu0 %v721
    %1144 = vmatpush1.bf16.msra.mxu0 %v720
    %1145 = vmatprep.subr.bf16.mxu0 %v717
    %1146 = vmatpush1.bf16.msra.mxu0 %v716
    %1147 = vmatprep.subr.bf16.mxu0 %v713
    %1148 = vmatpush1.bf16.msra.mxu0 %v712
    %1149 = vmatprep.subr.bf16.mxu0 %v709
    %1150 = vmatpush1.bf16.msra.mxu0 %v708
    %1151 = vmatprep.subr.bf16.mxu0 %v705
    %1152 = vmatpush1.bf16.msra.mxu0 %v704
    %1153 = vmatprep.subr.bf16.mxu0 %v701
    %1154 = vmatpush1.bf16.msra.mxu0 %v700
    %1155 = vmatprep.subr.bf16.mxu0 %v697
    %1156 = vmatpush1.bf16.msra.mxu0 %v696
    %1157 = vmatprep.subr.bf16.mxu0 %v693
    %1158 = vmatpush1.bf16.msra.mxu0 %v692
    %1159 = vmatprep.subr.bf16.mxu0 0
    %1160 = vmatpush2.bf16.msra.mxu0 0
    %1161 = vmatprep.subr.bf16.mxu0 0
    %1162 = vmatpush2.bf16.msra.mxu0 0
    %1163 = vmatprep.subr.bf16.mxu0 0
    %1164 = vmatpush2.bf16.msra.mxu0 0
    %1165 = vmatprep.subr.bf16.mxu0 0
    %1166 = vmatpush2.bf16.msra.mxu0 0
    %1167 = vmatprep.subr.bf16.mxu0 0
    %1168 = vmatpush2.bf16.msra.mxu0 0
    %1169 = vmatprep.subr.bf16.mxu0 0
    %1170 = vmatpush2.bf16.msra.mxu0 0
    %1171 = vmatprep.subr.bf16.mxu0 0
    %1172 = vmatpush2.bf16.msra.mxu0 0
    %1173 = vmatprep.subr.bf16.mxu0 0
    %1174 = vmatpush2.bf16.msra.mxu0 0
    %1175 = vmatprep.mubr.bf16.mxu0 0
    %1176 = vmatmul.mubr.bf16.gmra.mxu0 %v1101
    %v1177 = vpop.f32.mrf.mxu0
    %v1178 = vadd.f32 0.0, %v1177
    %v1179 = vpop.f32.mrf.mxu0
    %v1180 = vadd.f32 0.0, %v1179
    %v1181 = vpop.f32.mrf.mxu0
    %v1182 = vpop.f32.mrf.mxu0
    %1183 = vdwg.mxu0
    %v1184 = vadd.f32 %v1097, %v1137
    %v1185 = vadd.f32 %v1098, %v1139
    %v1186 = vadd.f32 %v1099, %v1178
    %v1187 = vadd.f32 %v1100, %v1180
    %v1188 = vxor.u32 %v1184, 2147483648
    %v1189 = vmul.f32 %v1188, 1.442695
    %v1190 = vpow.pop %v1189
    %v1191 = vadd.f32 %v1190, 1.0
    %v1192 = vrcp.pop %v1191
    %v1193 = vmul.f32 1.0, %v1192
    %v1194 = vxor.u32 %v1185, 2147483648
    %v1195 = vmul.f32 %v1194, 1.442695
    %v1196 = vpow.pop %v1195
    %v1197 = vadd.f32 %v1196, 1.0
    %v1198 = vrcp.pop %v1197
    %v1199 = vmul.f32 1.0, %v1198
    %v1200 = vtanh.pop %v1186
    %v1201 = vxor.u32 %v1187, 2147483648
    %v1202 = vmul.f32 %v1201, 1.442695
    %v1203 = vpow.pop %v1202
    %v1204 = vadd.f32 %v1203, 1.0
    %v1205 = vrcp.pop %v1204
    %v1206 = vmul.f32 1.0, %v1205
    %v1207 = vmul.f32 %v1199, %v1093
    %v1208 = vmul.f32 %v1193, %v1200
    %v1209 = vadd.f32 %v1207, %v1208
    %v1210 = vtanh.pop %v1209
    %v1211 = vmul.f32 %v1206, %v1210
    %1212 = vst [vmem:[#allocation3 + $0x20] sm:$0xff] %v1211
    %v1213 = vld [vmem:[#allocation2 + $0xa0] sm:$0xff]
    %v1214 = vld [vmem:[#allocation2 + $0xa8] sm:$0xff]
    %v1215 = vld [vmem:[#allocation2 + $0xb0] sm:$0xff]
    %v1216 = vld [vmem:[#allocation2 + $0xb8] sm:$0xff]
    %v1217 = vpack.c.bf16 %v1211, %v1211
    %1218 = vmatprep.subr.bf16.mxu0 %v719
    %1219 = vmatpush1.bf16.msra.mxu0 %v718
    %1220 = vmatprep.subr.bf16.mxu0 %v715
    %1221 = vmatpush1.bf16.msra.mxu0 %v714
    %1222 = vmatprep.subr.bf16.mxu0 %v711
    %1223 = vmatpush1.bf16.msra.mxu0 %v710
    %1224 = vmatprep.subr.bf16.mxu0 %v707
    %1225 = vmatpush1.bf16.msra.mxu0 %v706
    %1226 = vmatprep.subr.bf16.mxu0 %v703
    %1227 = vmatpush1.bf16.msra.mxu0 %v702
    %1228 = vmatprep.subr.bf16.mxu0 %v699
    %1229 = vmatpush1.bf16.msra.mxu0 %v698
    %1230 = vmatprep.subr.bf16.mxu0 %v695
    %1231 = vmatpush1.bf16.msra.mxu0 %v694
    %1232 = vmatprep.subr.bf16.mxu0 %v691
    %1233 = vmatpush1.bf16.msra.mxu0 %v690
    %1234 = vmatprep.subr.bf16.mxu0 0
    %1235 = vmatpush2.bf16.msra.mxu0 0
    %1236 = vmatprep.subr.bf16.mxu0 0
    %1237 = vmatpush2.bf16.msra.mxu0 0
    %1238 = vmatprep.subr.bf16.mxu0 0
    %1239 = vmatpush2.bf16.msra.mxu0 0
    %1240 = vmatprep.subr.bf16.mxu0 0
    %1241 = vmatpush2.bf16.msra.mxu0 0
    %1242 = vmatprep.subr.bf16.mxu0 0
    %1243 = vmatpush2.bf16.msra.mxu0 0
    %1244 = vmatprep.subr.bf16.mxu0 0
    %1245 = vmatpush2.bf16.msra.mxu0 0
    %1246 = vmatprep.subr.bf16.mxu0 0
    %1247 = vmatpush2.bf16.msra.mxu0 0
    %1248 = vmatprep.subr.bf16.mxu0 0
    %1249 = vmatpush2.bf16.msra.mxu0 0
    %1250 = vmatprep.mubr.bf16.mxu0 0
    %1251 = vmatmul.mubr.bf16.gmra.mxu0 %v1217
    %v1252 = vpop.f32.mrf.mxu0
    %v1253 = vadd.f32 0.0, %v1252
    %v1254 = vpop.f32.mrf.mxu0
    %v1255 = vadd.f32 0.0, %v1254
    %v1256 = vpop.f32.mrf.mxu0
    %v1257 = vpop.f32.mrf.mxu0
    %1258 = vdwg.mxu0
    %1259 = vmatprep.subr.bf16.mxu0 %v721
    %1260 = vmatpush1.bf16.msra.mxu0 %v720
    %1261 = vmatprep.subr.bf16.mxu0 %v717
    %1262 = vmatpush1.bf16.msra.mxu0 %v716
    %1263 = vmatprep.subr.bf16.mxu0 %v713
    %1264 = vmatpush1.bf16.msra.mxu0 %v712
    %1265 = vmatprep.subr.bf16.mxu0 %v709
    %1266 = vmatpush1.bf16.msra.mxu0 %v708
    %1267 = vmatprep.subr.bf16.mxu0 %v705
    %1268 = vmatpush1.bf16.msra.mxu0 %v704
    %1269 = vmatprep.subr.bf16.mxu0 %v701
    %1270 = vmatpush1.bf16.msra.mxu0 %v700
    %1271 = vmatprep.subr.bf16.mxu0 %v697
    %1272 = vmatpush1.bf16.msra.mxu0 %v696
    %1273 = vmatprep.subr.bf16.mxu0 %v693
    %1274 = vmatpush1.bf16.msra.mxu0 %v692
    %1275 = vmatprep.subr.bf16.mxu0 0
    %1276 = vmatpush2.bf16.msra.mxu0 0
    %1277 = vmatprep.subr.bf16.mxu0 0
    %1278 = vmatpush2.bf16.msra.mxu0 0
    %1279 = vmatprep.subr.bf16.mxu0 0
    %1280 = vmatpush2.bf16.msra.mxu0 0
    %1281 = vmatprep.subr.bf16.mxu0 0
    %1282 = vmatpush2.bf16.msra.mxu0 0
    %1283 = vmatprep.subr.bf16.mxu0 0
    %1284 = vmatpush2.bf16.msra.mxu0 0
    %1285 = vmatprep.subr.bf16.mxu0 0
    %1286 = vmatpush2.bf16.msra.mxu0 0
    %1287 = vmatprep.subr.bf16.mxu0 0
    %1288 = vmatpush2.bf16.msra.mxu0 0
    %1289 = vmatprep.subr.bf16.mxu0 0
    %1290 = vmatpush2.bf16.msra.mxu0 0
    %1291 = vmatprep.mubr.bf16.mxu0 0
    %1292 = vmatmul.mubr.bf16.gmra.mxu0 %v1217
    %v1293 = vpop.f32.mrf.mxu0
    %v1294 = vadd.f32 0.0, %v1293
    %v1295 = vpop.f32.mrf.mxu0
    %v1296 = vadd.f32 0.0, %v1295
    %v1297 = vpop.f32.mrf.mxu0
    %v1298 = vpop.f32.mrf.mxu0
    %1299 = vdwg.mxu0
    %v1300 = vadd.f32 %v1213, %v1253
    %v1301 = vadd.f32 %v1214, %v1255
    %v1302 = vadd.f32 %v1215, %v1294
    %v1303 = vadd.f32 %v1216, %v1296
    %v1304 = vxor.u32 %v1300, 2147483648
    %v1305 = vmul.f32 %v1304, 1.442695
    %v1306 = vpow.pop %v1305
    %v1307 = vadd.f32 %v1306, 1.0
    %v1308 = vrcp.pop %v1307
    %v1309 = vmul.f32 1.0, %v1308
    %v1310 = vxor.u32 %v1301, 2147483648
    %v1311 = vmul.f32 %v1310, 1.442695
    %v1312 = vpow.pop %v1311
    %v1313 = vadd.f32 %v1312, 1.0
    %v1314 = vrcp.pop %v1313
    %v1315 = vmul.f32 1.0, %v1314
    %v1316 = vtanh.pop %v1302
    %v1317 = vxor.u32 %v1303, 2147483648
    %v1318 = vmul.f32 %v1317, 1.442695
    %v1319 = vpow.pop %v1318
    %v1320 = vadd.f32 %v1319, 1.0
    %v1321 = vrcp.pop %v1320
    %v1322 = vmul.f32 1.0, %v1321
    %v1323 = vmul.f32 %v1315, %v1209
    %v1324 = vmul.f32 %v1309, %v1316
    %v1325 = vadd.f32 %v1323, %v1324
    %v1326 = vtanh.pop %v1325
    %v1327 = vmul.f32 %v1322, %v1326
    %1328 = vst [vmem:[#allocation3 + $0x28] sm:$0xff] %v1327
    %v1329 = vld [vmem:[#allocation2 + $0xc0] sm:$0xff]
    %v1330 = vld [vmem:[#allocation2 + $0xc8] sm:$0xff]
    %v1331 = vld [vmem:[#allocation2 + $0xd0] sm:$0xff]
    %v1332 = vld [vmem:[#allocation2 + $0xd8] sm:$0xff]
    %v1333 = vpack.c.bf16 %v1327, %v1327
    %1334 = vmatprep.subr.bf16.mxu0 %v719
    %1335 = vmatpush1.bf16.msra.mxu0 %v718
    %1336 = vmatprep.subr.bf16.mxu0 %v715
    %1337 = vmatpush1.bf16.msra.mxu0 %v714
    %1338 = vmatprep.subr.bf16.mxu0 %v711
    %1339 = vmatpush1.bf16.msra.mxu0 %v710
    %1340 = vmatprep.subr.bf16.mxu0 %v707
    %1341 = vmatpush1.bf16.msra.mxu0 %v706
    %1342 = vmatprep.subr.bf16.mxu0 %v703
    %1343 = vmatpush1.bf16.msra.mxu0 %v702
    %1344 = vmatprep.subr.bf16.mxu0 %v699
    %1345 = vmatpush1.bf16.msra.mxu0 %v698
    %1346 = vmatprep.subr.bf16.mxu0 %v695
    %1347 = vmatpush1.bf16.msra.mxu0 %v694
    %1348 = vmatprep.subr.bf16.mxu0 %v691
    %1349 = vmatpush1.bf16.msra.mxu0 %v690
    %1350 = vmatprep.subr.bf16.mxu0 0
    %1351 = vmatpush2.bf16.msra.mxu0 0
    %1352 = vmatprep.subr.bf16.mxu0 0
    %1353 = vmatpush2.bf16.msra.mxu0 0
    %1354 = vmatprep.subr.bf16.mxu0 0
    %1355 = vmatpush2.bf16.msra.mxu0 0
    %1356 = vmatprep.subr.bf16.mxu0 0
    %1357 = vmatpush2.bf16.msra.mxu0 0
    %1358 = vmatprep.subr.bf16.mxu0 0
    %1359 = vmatpush2.bf16.msra.mxu0 0
    %1360 = vmatprep.subr.bf16.mxu0 0
    %1361 = vmatpush2.bf16.msra.mxu0 0
    %1362 = vmatprep.subr.bf16.mxu0 0
    %1363 = vmatpush2.bf16.msra.mxu0 0
    %1364 = vmatprep.subr.bf16.mxu0 0
    %1365 = vmatpush2.bf16.msra.mxu0 0
    %1366 = vmatprep.mubr.bf16.mxu0 0
    %1367 = vmatmul.mubr.bf16.gmra.mxu0 %v1333
    %v1368 = vpop.f32.mrf.mxu0
    %v1369 = vadd.f32 0.0, %v1368
    %v1370 = vpop.f32.mrf.mxu0
    %v1371 = vadd.f32 0.0, %v1370
    %v1372 = vpop.f32.mrf.mxu0
    %v1373 = vpop.f32.mrf.mxu0
    %1374 = vdwg.mxu0
    %1375 = vmatprep.subr.bf16.mxu0 %v721
    %1376 = vmatpush1.bf16.msra.mxu0 %v720
    %1377 = vmatprep.subr.bf16.mxu0 %v717
    %1378 = vmatpush1.bf16.msra.mxu0 %v716
    %1379 = vmatprep.subr.bf16.mxu0 %v713
    %1380 = vmatpush1.bf16.msra.mxu0 %v712
    %1381 = vmatprep.subr.bf16.mxu0 %v709
    %1382 = vmatpush1.bf16.msra.mxu0 %v708
    %1383 = vmatprep.subr.bf16.mxu0 %v705
    %1384 = vmatpush1.bf16.msra.mxu0 %v704
    %1385 = vmatprep.subr.bf16.mxu0 %v701
    %1386 = vmatpush1.bf16.msra.mxu0 %v700
    %1387 = vmatprep.subr.bf16.mxu0 %v697
    %1388 = vmatpush1.bf16.msra.mxu0 %v696
    %1389 = vmatprep.subr.bf16.mxu0 %v693
    %1390 = vmatpush1.bf16.msra.mxu0 %v692
    %1391 = vmatprep.subr.bf16.mxu0 0
    %1392 = vmatpush2.bf16.msra.mxu0 0
    %1393 = vmatprep.subr.bf16.mxu0 0
    %1394 = vmatpush2.bf16.msra.mxu0 0
    %1395 = vmatprep.subr.bf16.mxu0 0
    %1396 = vmatpush2.bf16.msra.mxu0 0
    %1397 = vmatprep.subr.bf16.mxu0 0
    %1398 = vmatpush2.bf16.msra.mxu0 0
    %1399 = vmatprep.subr.bf16.mxu0 0
    %1400 = vmatpush2.bf16.msra.mxu0 0
    %1401 = vmatprep.subr.bf16.mxu0 0
    %1402 = vmatpush2.bf16.msra.mxu0 0
    %1403 = vmatprep.subr.bf16.mxu0 0
    %1404 = vmatpush2.bf16.msra.mxu0 0
    %1405 = vmatprep.subr.bf16.mxu0 0
    %1406 = vmatpush2.bf16.msra.mxu0 0
    %1407 = vmatprep.mubr.bf16.mxu0 0
    %1408 = vmatmul.mubr.bf16.gmra.mxu0 %v1333
    %v1409 = vpop.f32.mrf.mxu0
    %v1410 = vadd.f32 0.0, %v1409
    %v1411 = vpop.f32.mrf.mxu0
    %v1412 = vadd.f32 0.0, %v1411
    %v1413 = vpop.f32.mrf.mxu0
    %v1414 = vpop.f32.mrf.mxu0
    %1415 = vdwg.mxu0
    %v1416 = vadd.f32 %v1329, %v1369
    %v1417 = vadd.f32 %v1330, %v1371
    %v1418 = vadd.f32 %v1331, %v1410
    %v1419 = vadd.f32 %v1332, %v1412
    %v1420 = vxor.u32 %v1416, 2147483648
    %v1421 = vmul.f32 %v1420, 1.442695
    %v1422 = vpow.pop %v1421
    %v1423 = vadd.f32 %v1422, 1.0
    %v1424 = vrcp.pop %v1423
    %v1425 = vmul.f32 1.0, %v1424
    %v1426 = vxor.u32 %v1417, 2147483648
    %v1427 = vmul.f32 %v1426, 1.442695
    %v1428 = vpow.pop %v1427
    %v1429 = vadd.f32 %v1428, 1.0
    %v1430 = vrcp.pop %v1429
    %v1431 = vmul.f32 1.0, %v1430
    %v1432 = vtanh.pop %v1418
    %v1433 = vxor.u32 %v1419, 2147483648
    %v1434 = vmul.f32 %v1433, 1.442695
    %v1435 = vpow.pop %v1434
    %v1436 = vadd.f32 %v1435, 1.0
    %v1437 = vrcp.pop %v1436
    %v1438 = vmul.f32 1.0, %v1437
    %v1439 = vmul.f32 %v1431, %v1325
    %v1440 = vmul.f32 %v1425, %v1432
    %v1441 = vadd.f32 %v1439, %v1440
    %v1442 = vtanh.pop %v1441
    %v1443 = vmul.f32 %v1438, %v1442
    %1444 = vst [vmem:[#allocation3 + $0x30] sm:$0xff] %v1443
    %v1445 = vld [vmem:[#allocation2 + $0xe0] sm:$0xff]
    %v1446 = vld [vmem:[#allocation2 + $0xe8] sm:$0xff]
    %v1447 = vld [vmem:[#allocation2 + $0xf0] sm:$0xff]
    %v1448 = vld [vmem:[#allocation2 + $0xf8] sm:$0xff]
    %v1449 = vpack.c.bf16 %v1443, %v1443
    %1450 = vmatprep.subr.bf16.mxu0 %v719
    %1451 = vmatpush1.bf16.msra.mxu0 %v718
    %1452 = vmatprep.subr.bf16.mxu0 %v715
    %1453 = vmatpush1.bf16.msra.mxu0 %v714
    %1454 = vmatprep.subr.bf16.mxu0 %v711
    %1455 = vmatpush1.bf16.msra.mxu0 %v710
    %1456 = vmatprep.subr.bf16.mxu0 %v707
    %1457 = vmatpush1.bf16.msra.mxu0 %v706
    %1458 = vmatprep.subr.bf16.mxu0 %v703
    %1459 = vmatpush1.bf16.msra.mxu0 %v702
    %1460 = vmatprep.subr.bf16.mxu0 %v699
    %1461 = vmatpush1.bf16.msra.mxu0 %v698
    %1462 = vmatprep.subr.bf16.mxu0 %v695
    %1463 = vmatpush1.bf16.msra.mxu0 %v694
    %1464 = vmatprep.subr.bf16.mxu0 %v691
    %1465 = vmatpush1.bf16.msra.mxu0 %v690
    %1466 = vmatprep.subr.bf16.mxu0 0
    %1467 = vmatpush2.bf16.msra.mxu0 0
    %1468 = vmatprep.subr.bf16.mxu0 0
    %1469 = vmatpush2.bf16.msra.mxu0 0
    %1470 = vmatprep.subr.bf16.mxu0 0
    %1471 = vmatpush2.bf16.msra.mxu0 0
    %1472 = vmatprep.subr.bf16.mxu0 0
    %1473 = vmatpush2.bf16.msra.mxu0 0
    %1474 = vmatprep.subr.bf16.mxu0 0
    %1475 = vmatpush2.bf16.msra.mxu0 0
    %1476 = vmatprep.subr.bf16.mxu0 0
    %1477 = vmatpush2.bf16.msra.mxu0 0
    %1478 = vmatprep.subr.bf16.mxu0 0
    %1479 = vmatpush2.bf16.msra.mxu0 0
    %1480 = vmatprep.subr.bf16.mxu0 0
    %1481 = vmatpush2.bf16.msra.mxu0 0
    %1482 = vmatprep.mubr.bf16.mxu0 0
    %1483 = vmatmul.mubr.bf16.gmra.mxu0 %v1449
    %v1484 = vpop.f32.mrf.mxu0
    %v1485 = vadd.f32 0.0, %v1484
    %v1486 = vpop.f32.mrf.mxu0
    %v1487 = vadd.f32 0.0, %v1486
    %v1488 = vpop.f32.mrf.mxu0
    %v1489 = vpop.f32.mrf.mxu0
    %1490 = vdwg.mxu0
    %1491 = vmatprep.subr.bf16.mxu0 %v721
    %1492 = vmatpush1.bf16.msra.mxu0 %v720
    %1493 = vmatprep.subr.bf16.mxu0 %v717
    %1494 = vmatpush1.bf16.msra.mxu0 %v716
    %1495 = vmatprep.subr.bf16.mxu0 %v713
    %1496 = vmatpush1.bf16.msra.mxu0 %v712
    %1497 = vmatprep.subr.bf16.mxu0 %v709
    %1498 = vmatpush1.bf16.msra.mxu0 %v708
    %1499 = vmatprep.subr.bf16.mxu0 %v705
    %1500 = vmatpush1.bf16.msra.mxu0 %v704
    %1501 = vmatprep.subr.bf16.mxu0 %v701
    %1502 = vmatpush1.bf16.msra.mxu0 %v700
    %1503 = vmatprep.subr.bf16.mxu0 %v697
    %1504 = vmatpush1.bf16.msra.mxu0 %v696
    %1505 = vmatprep.subr.bf16.mxu0 %v693
    %1506 = vmatpush1.bf16.msra.mxu0 %v692
    %1507 = vmatprep.subr.bf16.mxu0 0
    %1508 = vmatpush2.bf16.msra.mxu0 0
    %1509 = vmatprep.subr.bf16.mxu0 0
    %1510 = vmatpush2.bf16.msra.mxu0 0
    %1511 = vmatprep.subr.bf16.mxu0 0
    %1512 = vmatpush2.bf16.msra.mxu0 0
    %1513 = vmatprep.subr.bf16.mxu0 0
    %1514 = vmatpush2.bf16.msra.mxu0 0
    %1515 = vmatprep.subr.bf16.mxu0 0
    %1516 = vmatpush2.bf16.msra.mxu0 0
    %1517 = vmatprep.subr.bf16.mxu0 0
    %1518 = vmatpush2.bf16.msra.mxu0 0
    %1519 = vmatprep.subr.bf16.mxu0 0
    %1520 = vmatpush2.bf16.msra.mxu0 0
    %1521 = vmatprep.subr.bf16.mxu0 0
    %1522 = vmatpush2.bf16.msra.mxu0 0
    %1523 = vmatprep.mubr.bf16.mxu0 0
    %1524 = vmatmul.mubr.bf16.gmra.mxu0 %v1449
    %v1525 = vpop.f32.mrf.mxu0
    %v1526 = vadd.f32 0.0, %v1525
    %v1527 = vpop.f32.mrf.mxu0
    %v1528 = vadd.f32 0.0, %v1527
    %v1529 = vpop.f32.mrf.mxu0
    %v1530 = vpop.f32.mrf.mxu0
    %1531 = vdwg.mxu0
    %v1532 = vadd.f32 %v1445, %v1485
    %v1533 = vadd.f32 %v1446, %v1487
    %v1534 = vadd.f32 %v1447, %v1526
    %v1535 = vadd.f32 %v1448, %v1528
    %v1536 = vxor.u32 %v1532, 2147483648
    %v1537 = vmul.f32 %v1536, 1.442695
    %v1538 = vpow.pop %v1537
    %v1539 = vadd.f32 %v1538, 1.0
    %v1540 = vrcp.pop %v1539
    %v1541 = vmul.f32 1.0, %v1540
    %v1542 = vxor.u32 %v1533, 2147483648
    %v1543 = vmul.f32 %v1542, 1.442695
    %v1544 = vpow.pop %v1543
    %v1545 = vadd.f32 %v1544, 1.0
    %v1546 = vrcp.pop %v1545
    %v1547 = vmul.f32 1.0, %v1546
    %v1548 = vtanh.pop %v1534
    %v1549 = vxor.u32 %v1535, 2147483648
    %v1550 = vmul.f32 %v1549, 1.442695
    %v1551 = vpow.pop %v1550
    %v1552 = vadd.f32 %v1551, 1.0
    %v1553 = vrcp.pop %v1552
    %v1554 = vmul.f32 1.0, %v1553
    %v1555 = vmul.f32 %v1547, %v1441
    %v1556 = vmul.f32 %v1541, %v1548
    %v1557 = vadd.f32 %v1555, %v1556
    %v1558 = vtanh.pop %v1557
    %v1559 = vmul.f32 %v1554, %v1558
    %1560 = vst [vmem:[#allocation3 + $0x38] sm:$0xff] %v1559
    %v1561 = vld [vmem:[#allocation10] sm:$0xff]
    %v1562 = vld [vmem:[#allocation10 + $0x8] sm:$0xff]
    %v1563 = vld [vmem:[#allocation10 + $0x10] sm:$0xff]
    %v1564 = vld [vmem:[#allocation10 + $0x18] sm:$0xff]
    %v1565 = vld [vmem:[#allocation10 + $0x20] sm:$0xff]
    %v1566 = vld [vmem:[#allocation10 + $0x28] sm:$0xff]
    %v1567 = vld [vmem:[#allocation10 + $0x30] sm:$0xff]
    %v1568 = vld [vmem:[#allocation10 + $0x38] sm:$0xff]
    %v1569 = vld [vmem:[#allocation10 + $0x40] sm:$0xff]
    %v1570 = vld [vmem:[#allocation10 + $0x48] sm:$0xff]
    %v1571 = vld [vmem:[#allocation10 + $0x50] sm:$0xff]
    %v1572 = vld [vmem:[#allocation10 + $0x58] sm:$0xff]
    %v1573 = vld [vmem:[#allocation10 + $0x60] sm:$0xff]
    %v1574 = vld [vmem:[#allocation10 + $0x68] sm:$0xff]
    %v1575 = vld [vmem:[#allocation10 + $0x70] sm:$0xff]
    %v1576 = vld [vmem:[#allocation10 + $0x78] sm:$0xff]
    %v1577 = vld [vmem:[#allocation10 + $0x80] sm:$0xff]
    %v1578 = vld [vmem:[#allocation10 + $0x88] sm:$0xff]
    %v1579 = vld [vmem:[#allocation10 + $0x90] sm:$0xff]
    %v1580 = vld [vmem:[#allocation10 + $0x98] sm:$0xff]
    %v1581 = vld [vmem:[#allocation10 + $0xa0] sm:$0xff]
    %v1582 = vld [vmem:[#allocation10 + $0xa8] sm:$0xff]
    %v1583 = vld [vmem:[#allocation10 + $0xb0] sm:$0xff]
    %v1584 = vld [vmem:[#allocation10 + $0xb8] sm:$0xff]
    %v1585 = vld [vmem:[#allocation10 + $0xc0] sm:$0xff]
    %v1586 = vld [vmem:[#allocation10 + $0xc8] sm:$0xff]
    %v1587 = vld [vmem:[#allocation10 + $0xd0] sm:$0xff]
    %v1588 = vld [vmem:[#allocation10 + $0xd8] sm:$0xff]
    %v1589 = vld [vmem:[#allocation10 + $0xe0] sm:$0xff]
    %v1590 = vld [vmem:[#allocation10 + $0xe8] sm:$0xff]
    %v1591 = vld [vmem:[#allocation10 + $0xf0] sm:$0xff]
    %v1592 = vld [vmem:[#allocation10 + $0xf8] sm:$0xff]
    %v1593 = vld [vmem:[#allocation12] sm:$0xff]
    %v1594 = vld [vmem:[#allocation12 + $0x8] sm:$0xff]
    %v1595 = vld [vmem:[#allocation12 + $0x10] sm:$0xff]
    %v1596 = vld [vmem:[#allocation12 + $0x18] sm:$0xff]
    %v1597 = vld [vmem:[#allocation12 + $0x20] sm:$0xff]
    %v1598 = vld [vmem:[#allocation12 + $0x28] sm:$0xff]
    %v1599 = vld [vmem:[#allocation12 + $0x30] sm:$0xff]
    %v1600 = vld [vmem:[#allocation12 + $0x38] sm:$0xff]
    %v1601 = vld [vmem:[#allocation12 + $0x40] sm:$0xff]
    %v1602 = vld [vmem:[#allocation12 + $0x48] sm:$0xff]
    %v1603 = vld [vmem:[#allocation12 + $0x50] sm:$0xff]
    %v1604 = vld [vmem:[#allocation12 + $0x58] sm:$0xff]
    %v1605 = vld [vmem:[#allocation12 + $0x60] sm:$0xff]
    %v1606 = vld [vmem:[#allocation12 + $0x68] sm:$0xff]
    %v1607 = vld [vmem:[#allocation12 + $0x70] sm:$0xff]
    %v1608 = vld [vmem:[#allocation12 + $0x78] sm:$0xff]
    %v1609 = vld [vmem:[#allocation12 + $0x80] sm:$0xff]
    %v1610 = vld [vmem:[#allocation12 + $0x88] sm:$0xff]
    %v1611 = vld [vmem:[#allocation12 + $0x90] sm:$0xff]
    %v1612 = vld [vmem:[#allocation12 + $0x98] sm:$0xff]
    %v1613 = vld [vmem:[#allocation12 + $0xa0] sm:$0xff]
    %v1614 = vld [vmem:[#allocation12 + $0xa8] sm:$0xff]
    %v1615 = vld [vmem:[#allocation12 + $0xb0] sm:$0xff]
    %v1616 = vld [vmem:[#allocation12 + $0xb8] sm:$0xff]
    %v1617 = vld [vmem:[#allocation12 + $0xc0] sm:$0xff]
    %v1618 = vld [vmem:[#allocation12 + $0xc8] sm:$0xff]
    %v1619 = vld [vmem:[#allocation12 + $0xd0] sm:$0xff]
    %v1620 = vld [vmem:[#allocation12 + $0xd8] sm:$0xff]
    %v1621 = vld [vmem:[#allocation12 + $0xe0] sm:$0xff]
    %v1622 = vld [vmem:[#allocation12 + $0xe8] sm:$0xff]
    %v1623 = vld [vmem:[#allocation12 + $0xf0] sm:$0xff]
    %v1624 = vld [vmem:[#allocation12 + $0xf8] sm:$0xff]
    %v1625 = vld [vmem:[%s6] sm:$0xf]
    %v1626 = vld [vmem:[#allocation3] sm:$0xff]
    %v1627 = vld [vmem:[#allocation3 + $0x8] sm:$0xff]
    %v1628 = vld [vmem:[#allocation3 + $0x10] sm:$0xff]
    %v1629 = vld [vmem:[#allocation3 + $0x18] sm:$0xff]
    %v1630 = vld [vmem:[#allocation3 + $0x20] sm:$0xff]
    %v1631 = vld [vmem:[#allocation3 + $0x28] sm:$0xff]
    %v1632 = vld [vmem:[#allocation3 + $0x30] sm:$0xff]
    %v1633 = vld [vmem:[#allocation3 + $0x38] sm:$0xff]
    %v1634 = vpack.c.bf16 %v1627, %v1626
    %v1635 = vpack.c.bf16 %v1629, %v1628
    %v1636 = vpack.c.bf16 %v1631, %v1630
    %v1637 = vpack.c.bf16 %v1633, %v1632
    %v1639 = vlaneseq
    %v1640 = vshrl.u32 %v1639, 7
    %v1641 = vsub.s32 0, %v1640
    %v1642 = vrot.slane %v1625, %v1641
    %v1643 = vlaneseq
    %v1644 = vshrl.u32 %v1643, 7
    %v1645 = vsub.s32 1, %v1644
    %v1646 = vrot.slane %v1625, %v1645
    %v1647 = vlaneseq
    %v1648 = vshrl.u32 %v1647, 7
    %v1649 = vsub.s32 2, %v1648
    %v1650 = vrot.slane %v1625, %v1649
    %v1651 = vlaneseq
    %v1652 = vshrl.u32 %v1651, 7
    %v1653 = vsub.s32 3, %v1652
    %v1654 = vrot.slane %v1625, %v1653
    %v1691 = vunpack.c.l.b16 %v1561
    %v1692 = vunpack.c.h.b16 %v1561
    %v1693 = vunpack.c.l.b16 %v1562
    %v1694 = vunpack.c.h.b16 %v1562
    %v1695 = vunpack.c.l.b16 %v1563
    %v1696 = vunpack.c.h.b16 %v1563
    %v1697 = vunpack.c.l.b16 %v1564
    %v1698 = vunpack.c.h.b16 %v1564
    %v1699 = vunpack.c.l.b16 %v1565
    %v1700 = vunpack.c.h.b16 %v1565
    %v1701 = vunpack.c.l.b16 %v1566
    %v1702 = vunpack.c.h.b16 %v1566
    %v1703 = vunpack.c.l.b16 %v1567
    %v1704 = vunpack.c.h.b16 %v1567
    %v1705 = vunpack.c.l.b16 %v1568
    %v1706 = vunpack.c.h.b16 %v1568
    %v1707 = vunpack.c.l.b16 %v1569
    %v1708 = vunpack.c.h.b16 %v1569
    %v1709 = vunpack.c.l.b16 %v1570
    %v1710 = vunpack.c.h.b16 %v1570
    %v1711 = vunpack.c.l.b16 %v1571
    %v1712 = vunpack.c.h.b16 %v1571
    %v1713 = vunpack.c.l.b16 %v1572
    %v1714 = vunpack.c.h.b16 %v1572
    %v1715 = vunpack.c.l.b16 %v1573
    %v1716 = vunpack.c.h.b16 %v1573
    %v1717 = vunpack.c.l.b16 %v1574
    %v1718 = vunpack.c.h.b16 %v1574
    %v1719 = vunpack.c.l.b16 %v1575
    %v1720 = vunpack.c.h.b16 %v1575
    %v1721 = vunpack.c.l.b16 %v1576
    %v1722 = vunpack.c.h.b16 %v1576
    %v1723 = vunpack.c.l.b16 %v1577
    %v1724 = vunpack.c.h.b16 %v1577
    %v1725 = vunpack.c.l.b16 %v1578
    %v1726 = vunpack.c.h.b16 %v1578
    %v1727 = vunpack.c.l.b16 %v1579
    %v1728 = vunpack.c.h.b16 %v1579
    %v1729 = vunpack.c.l.b16 %v1580
    %v1730 = vunpack.c.h.b16 %v1580
    %v1731 = vunpack.c.l.b16 %v1581
    %v1732 = vunpack.c.h.b16 %v1581
    %v1733 = vunpack.c.l.b16 %v1582
    %v1734 = vunpack.c.h.b16 %v1582
    %v1735 = vunpack.c.l.b16 %v1583
    %v1736 = vunpack.c.h.b16 %v1583
    %v1737 = vunpack.c.l.b16 %v1584
    %v1738 = vunpack.c.h.b16 %v1584
    %v1739 = vunpack.c.l.b16 %v1585
    %v1740 = vunpack.c.h.b16 %v1585
    %v1741 = vunpack.c.l.b16 %v1586
    %v1742 = vunpack.c.h.b16 %v1586
    %v1743 = vunpack.c.l.b16 %v1587
    %v1744 = vunpack.c.h.b16 %v1587
    %v1745 = vunpack.c.l.b16 %v1588
    %v1746 = vunpack.c.h.b16 %v1588
    %v1747 = vunpack.c.l.b16 %v1589
    %v1748 = vunpack.c.h.b16 %v1589
    %v1749 = vunpack.c.l.b16 %v1590
    %v1750 = vunpack.c.h.b16 %v1590
    %v1751 = vunpack.c.l.b16 %v1591
    %v1752 = vunpack.c.h.b16 %v1591
    %v1753 = vunpack.c.l.b16 %v1592
    %v1754 = vunpack.c.h.b16 %v1592
    %v1755 = vpack.c.b16 %v1695, %v1691
    %v1756 = vpack.c.b16 %v1696, %v1692
    %v1757 = vpack.c.b16 %v1697, %v1693
    %v1758 = vpack.c.b16 %v1698, %v1694
    %v1759 = vpack.c.b16 %v1703, %v1699
    %v1760 = vpack.c.b16 %v1704, %v1700
    %v1761 = vpack.c.b16 %v1705, %v1701
    %v1762 = vpack.c.b16 %v1706, %v1702
    %v1763 = vpack.c.b16 %v1711, %v1707
    %v1764 = vpack.c.b16 %v1712, %v1708
    %v1765 = vpack.c.b16 %v1713, %v1709
    %v1766 = vpack.c.b16 %v1714, %v1710
    %v1767 = vpack.c.b16 %v1719, %v1715
    %v1768 = vpack.c.b16 %v1720, %v1716
    %v1769 = vpack.c.b16 %v1721, %v1717
    %v1770 = vpack.c.b16 %v1722, %v1718
    %v1771 = vpack.c.b16 %v1727, %v1723
    %v1772 = vpack.c.b16 %v1728, %v1724
    %v1773 = vpack.c.b16 %v1729, %v1725
    %v1774 = vpack.c.b16 %v1730, %v1726
    %v1775 = vpack.c.b16 %v1735, %v1731
    %v1776 = vpack.c.b16 %v1736, %v1732
    %v1777 = vpack.c.b16 %v1737, %v1733
    %v1778 = vpack.c.b16 %v1738, %v1734
    %v1779 = vpack.c.b16 %v1743, %v1739
    %v1780 = vpack.c.b16 %v1744, %v1740
    %v1781 = vpack.c.b16 %v1745, %v1741
    %v1782 = vpack.c.b16 %v1746, %v1742
    %v1783 = vpack.c.b16 %v1751, %v1747
    %v1784 = vpack.c.b16 %v1752, %v1748
    %v1785 = vpack.c.b16 %v1753, %v1749
    %v1786 = vpack.c.b16 %v1754, %v1750
    %1819 = vmatprep.subr.bf16.mxu0 %v1784
    %1820 = vmatpush1.bf16.msra.mxu0 %v1783
    %1821 = vmatprep.subr.bf16.mxu0 %v1780
    %1822 = vmatpush1.bf16.msra.mxu0 %v1779
    %1823 = vmatprep.subr.bf16.mxu0 %v1776
    %1824 = vmatpush1.bf16.msra.mxu0 %v1775
    %1825 = vmatprep.subr.bf16.mxu0 %v1772
    %1826 = vmatpush1.bf16.msra.mxu0 %v1771
    %1827 = vmatprep.subr.bf16.mxu0 %v1768
    %1828 = vmatpush1.bf16.msra.mxu0 %v1767
    %1829 = vmatprep.subr.bf16.mxu0 %v1764
    %1830 = vmatpush1.bf16.msra.mxu0 %v1763
    %1831 = vmatprep.subr.bf16.mxu0 %v1760
    %1832 = vmatpush1.bf16.msra.mxu0 %v1759
    %1833 = vmatprep.subr.bf16.mxu0 %v1756
    %1834 = vmatpush1.bf16.msra.mxu0 %v1755
    %1835 = vmatprep.subr.bf16.mxu0 0
    %1836 = vmatpush2.bf16.msra.mxu0 0
    %1837 = vmatprep.subr.bf16.mxu0 0
    %1838 = vmatpush2.bf16.msra.mxu0 0
    %1839 = vmatprep.subr.bf16.mxu0 0
    %1840 = vmatpush2.bf16.msra.mxu0 0
    %1841 = vmatprep.subr.bf16.mxu0 0
    %1842 = vmatpush2.bf16.msra.mxu0 0
    %1843 = vmatprep.subr.bf16.mxu0 0
    %1844 = vmatpush2.bf16.msra.mxu0 0
    %1845 = vmatprep.subr.bf16.mxu0 0
    %1846 = vmatpush2.bf16.msra.mxu0 0
    %1847 = vmatprep.subr.bf16.mxu0 0
    %1848 = vmatpush2.bf16.msra.mxu0 0
    %1849 = vmatprep.subr.bf16.mxu0 0
    %1850 = vmatpush2.bf16.msra.mxu0 0
    %1851 = vmatprep.mubr.bf16.mxu0 0
    %1852 = vmatmul.mubr.bf16.gmra.mxu0 %v1634
    %v1853 = vpop.f32.mrf.mxu0
    %v1854 = vadd.f32 %v1642, %v1853
    %v1855 = vpop.f32.mrf.mxu0
    %v1856 = vadd.f32 %v1646, %v1855
    %v1857 = vpop.f32.mrf.mxu0
    %v1858 = vadd.f32 %v1642, %v1857
    %v1859 = vpop.f32.mrf.mxu0
    %v1860 = vadd.f32 %v1646, %v1859
    %1861 = vmatprep.mubr.bf16.mxu0 0
    %1862 = vmatmul.mubr.bf16.gmra.mxu0 %v1635
    %v1863 = vpop.f32.mrf.mxu0
    %v1864 = vadd.f32 %v1642, %v1863
    %v1865 = vpop.f32.mrf.mxu0
    %v1866 = vadd.f32 %v1646, %v1865
    %v1867 = vpop.f32.mrf.mxu0
    %v1868 = vadd.f32 %v1642, %v1867
    %v1869 = vpop.f32.mrf.mxu0
    %v1870 = vadd.f32 %v1646, %v1869
    %1871 = vmatprep.mubr.bf16.mxu0 0
    %1872 = vmatmul.mubr.bf16.gmra.mxu0 %v1636
    %v1873 = vpop.f32.mrf.mxu0
    %v1874 = vadd.f32 %v1642, %v1873
    %v1875 = vpop.f32.mrf.mxu0
    %v1876 = vadd.f32 %v1646, %v1875
    %v1877 = vpop.f32.mrf.mxu0
    %v1878 = vadd.f32 %v1642, %v1877
    %v1879 = vpop.f32.mrf.mxu0
    %v1880 = vadd.f32 %v1646, %v1879
    %1881 = vmatprep.mubr.bf16.mxu0 0
    %1882 = vmatmul.mubr.bf16.gmra.mxu0 %v1637
    %v1883 = vpop.f32.mrf.mxu0
    %v1884 = vadd.f32 %v1642, %v1883
    %v1885 = vpop.f32.mrf.mxu0
    %v1886 = vadd.f32 %v1646, %v1885
    %v1887 = vpop.f32.mrf.mxu0
    %v1888 = vadd.f32 %v1642, %v1887
    %v1889 = vpop.f32.mrf.mxu0
    %v1890 = vadd.f32 %v1646, %v1889
    %1891 = vdwg.mxu0
    %1892 = vmatprep.subr.bf16.mxu0 %v1786
    %1893 = vmatpush1.bf16.msra.mxu0 %v1785
    %1894 = vmatprep.subr.bf16.mxu0 %v1782
    %1895 = vmatpush1.bf16.msra.mxu0 %v1781
    %1896 = vmatprep.subr.bf16.mxu0 %v1778
    %1897 = vmatpush1.bf16.msra.mxu0 %v1777
    %1898 = vmatprep.subr.bf16.mxu0 %v1774
    %1899 = vmatpush1.bf16.msra.mxu0 %v1773
    %1900 = vmatprep.subr.bf16.mxu0 %v1770
    %1901 = vmatpush1.bf16.msra.mxu0 %v1769
    %1902 = vmatprep.subr.bf16.mxu0 %v1766
    %1903 = vmatpush1.bf16.msra.mxu0 %v1765
    %1904 = vmatprep.subr.bf16.mxu0 %v1762
    %1905 = vmatpush1.bf16.msra.mxu0 %v1761
    %1906 = vmatprep.subr.bf16.mxu0 %v1758
    %1907 = vmatpush1.bf16.msra.mxu0 %v1757
    %1908 = vmatprep.subr.bf16.mxu0 0
    %1909 = vmatpush2.bf16.msra.mxu0 0
    %1910 = vmatprep.subr.bf16.mxu0 0
    %1911 = vmatpush2.bf16.msra.mxu0 0
    %1912 = vmatprep.subr.bf16.mxu0 0
    %1913 = vmatpush2.bf16.msra.mxu0 0
    %1914 = vmatprep.subr.bf16.mxu0 0
    %1915 = vmatpush2.bf16.msra.mxu0 0
    %1916 = vmatprep.subr.bf16.mxu0 0
    %1917 = vmatpush2.bf16.msra.mxu0 0
    %1918 = vmatprep.subr.bf16.mxu0 0
    %1919 = vmatpush2.bf16.msra.mxu0 0
    %1920 = vmatprep.subr.bf16.mxu0 0
    %1921 = vmatpush2.bf16.msra.mxu0 0
    %1922 = vmatprep.subr.bf16.mxu0 0
    %1923 = vmatpush2.bf16.msra.mxu0 0
    %1924 = vmatprep.mubr.bf16.mxu0 0
    %1925 = vmatmul.mubr.bf16.gmra.mxu0 %v1634
    %v1926 = vpop.f32.mrf.mxu0
    %v1927 = vadd.f32 %v1650, %v1926
    %v1928 = vpop.f32.mrf.mxu0
    %v1929 = vadd.f32 %v1654, %v1928
    %v1930 = vpop.f32.mrf.mxu0
    %v1931 = vadd.f32 %v1650, %v1930
    %v1932 = vpop.f32.mrf.mxu0
    %v1933 = vadd.f32 %v1654, %v1932
    %1934 = vmatprep.mubr.bf16.mxu0 0
    %1935 = vmatmul.mubr.bf16.gmra.mxu0 %v1635
    %v1936 = vpop.f32.mrf.mxu0
    %v1937 = vadd.f32 %v1650, %v1936
    %v1938 = vpop.f32.mrf.mxu0
    %v1939 = vadd.f32 %v1654, %v1938
    %v1940 = vpop.f32.mrf.mxu0
    %v1941 = vadd.f32 %v1650, %v1940
    %v1942 = vpop.f32.mrf.mxu0
    %v1943 = vadd.f32 %v1654, %v1942
    %1944 = vmatprep.mubr.bf16.mxu0 0
    %1945 = vmatmul.mubr.bf16.gmra.mxu0 %v1636
    %v1946 = vpop.f32.mrf.mxu0
    %v1947 = vadd.f32 %v1650, %v1946
    %v1948 = vpop.f32.mrf.mxu0
    %v1949 = vadd.f32 %v1654, %v1948
    %v1950 = vpop.f32.mrf.mxu0
    %v1951 = vadd.f32 %v1650, %v1950
    %v1952 = vpop.f32.mrf.mxu0
    %v1953 = vadd.f32 %v1654, %v1952
    %1954 = vmatprep.mubr.bf16.mxu0 0
    %1955 = vmatmul.mubr.bf16.gmra.mxu0 %v1637
    %v1956 = vpop.f32.mrf.mxu0
    %v1957 = vadd.f32 %v1650, %v1956
    %v1958 = vpop.f32.mrf.mxu0
    %v1959 = vadd.f32 %v1654, %v1958
    %v1960 = vpop.f32.mrf.mxu0
    %v1961 = vadd.f32 %v1650, %v1960
    %v1962 = vpop.f32.mrf.mxu0
    %v1963 = vadd.f32 %v1654, %v1962
    %1964 = vdwg.mxu0
    %1965 = vst [vmem:[#allocation2] sm:$0xff] %v1854
    %1966 = vst [vmem:[#allocation2 + $0x8] sm:$0xff] %v1856
    %1967 = vst [vmem:[#allocation2 + $0x10] sm:$0xff] %v1927
    %1968 = vst [vmem:[#allocation2 + $0x18] sm:$0xff] %v1929
    %1969 = vst [vmem:[#allocation2 + $0x20] sm:$0xff] %v1858
    %1970 = vst [vmem:[#allocation2 + $0x28] sm:$0xff] %v1860
    %1971 = vst [vmem:[#allocation2 + $0x30] sm:$0xff] %v1931
    %1972 = vst [vmem:[#allocation2 + $0x38] sm:$0xff] %v1933
    %1973 = vst [vmem:[#allocation2 + $0x40] sm:$0xff] %v1864
    %1974 = vst [vmem:[#allocation2 + $0x48] sm:$0xff] %v1866
    %1975 = vst [vmem:[#allocation2 + $0x50] sm:$0xff] %v1937
    %1976 = vst [vmem:[#allocation2 + $0x58] sm:$0xff] %v1939
    %1977 = vst [vmem:[#allocation2 + $0x60] sm:$0xff] %v1868
    %1978 = vst [vmem:[#allocation2 + $0x68] sm:$0xff] %v1870
    %1979 = vst [vmem:[#allocation2 + $0x70] sm:$0xff] %v1941
    %1980 = vst [vmem:[#allocation2 + $0x78] sm:$0xff] %v1943
    %1981 = vst [vmem:[#allocation2 + $0x80] sm:$0xff] %v1874
    %1982 = vst [vmem:[#allocation2 + $0x88] sm:$0xff] %v1876
    %1983 = vst [vmem:[#allocation2 + $0x90] sm:$0xff] %v1947
    %1984 = vst [vmem:[#allocation2 + $0x98] sm:$0xff] %v1949
    %1985 = vst [vmem:[#allocation2 + $0xa0] sm:$0xff] %v1878
    %1986 = vst [vmem:[#allocation2 + $0xa8] sm:$0xff] %v1880
    %1987 = vst [vmem:[#allocation2 + $0xb0] sm:$0xff] %v1951
    %1988 = vst [vmem:[#allocation2 + $0xb8] sm:$0xff] %v1953
    %1989 = vst [vmem:[#allocation2 + $0xc0] sm:$0xff] %v1884
    %1990 = vst [vmem:[#allocation2 + $0xc8] sm:$0xff] %v1886
    %1991 = vst [vmem:[#allocation2 + $0xd0] sm:$0xff] %v1957
    %1992 = vst [vmem:[#allocation2 + $0xd8] sm:$0xff] %v1959
    %1993 = vst [vmem:[#allocation2 + $0xe0] sm:$0xff] %v1888
    %1994 = vst [vmem:[#allocation2 + $0xe8] sm:$0xff] %v1890
    %1995 = vst [vmem:[#allocation2 + $0xf0] sm:$0xff] %v1961
    %1996 = vst [vmem:[#allocation2 + $0xf8] sm:$0xff] %v1963
    %v1997 = vld [vmem:[#allocation2] sm:$0xff]
    %v1998 = vld [vmem:[#allocation2 + $0x8] sm:$0xff]
    %v1999 = vld [vmem:[#allocation2 + $0x10] sm:$0xff]
    %v2000 = vld [vmem:[#allocation2 + $0x18] sm:$0xff]
    %v2001 = vxor.u32 %v1997, 2147483648
    %v2002 = vmul.f32 %v2001, 1.442695
    %v2003 = vpow.pop %v2002
    %v2004 = vadd.f32 %v2003, 1.0
    %v2005 = vrcp.pop %v2004
    %v2006 = vmul.f32 1.0, %v2005
    %v2007 = vxor.u32 %v1998, 2147483648
    %v2008 = vmul.f32 %v2007, 1.442695
    %v2009 = vpow.pop %v2008
    %v2010 = vadd.f32 %v2009, 1.0
    %v2011 = vrcp.pop %v2010
    %v2012 = vmul.f32 1.0, %v2011
    %v2013 = vtanh.pop %v1999
    %v2014 = vxor.u32 %v2000, 2147483648
    %v2015 = vmul.f32 %v2014, 1.442695
    %v2016 = vpow.pop %v2015
    %v2017 = vadd.f32 %v2016, 1.0
    %v2018 = vrcp.pop %v2017
    %v2019 = vmul.f32 1.0, %v2018
    %v2020 = vmul.f32 %v2012, 0.0
    %v2021 = vmul.f32 %v2006, %v2013
    %v2022 = vadd.f32 %v2020, %v2021
    %v2023 = vtanh.pop %v2022
    %v2024 = vmul.f32 %v2019, %v2023
    %v2025 = vld [vmem:[#allocation2 + $0x20] sm:$0xff]
    %v2026 = vld [vmem:[#allocation2 + $0x28] sm:$0xff]
    %v2027 = vld [vmem:[#allocation2 + $0x30] sm:$0xff]
    %v2028 = vld [vmem:[#allocation2 + $0x38] sm:$0xff]
    %v2029 = vpack.c.bf16 %v2024, %v2024
    %v2062 = vunpack.c.l.b16 %v1593
    %v2063 = vunpack.c.h.b16 %v1593
    %v2064 = vunpack.c.l.b16 %v1594
    %v2065 = vunpack.c.h.b16 %v1594
    %v2066 = vunpack.c.l.b16 %v1595
    %v2067 = vunpack.c.h.b16 %v1595
    %v2068 = vunpack.c.l.b16 %v1596
    %v2069 = vunpack.c.h.b16 %v1596
    %v2070 = vunpack.c.l.b16 %v1597
    %v2071 = vunpack.c.h.b16 %v1597
    %v2072 = vunpack.c.l.b16 %v1598
    %v2073 = vunpack.c.h.b16 %v1598
    %v2074 = vunpack.c.l.b16 %v1599
    %v2075 = vunpack.c.h.b16 %v1599
    %v2076 = vunpack.c.l.b16 %v1600
    %v2077 = vunpack.c.h.b16 %v1600
    %v2078 = vunpack.c.l.b16 %v1601
    %v2079 = vunpack.c.h.b16 %v1601
    %v2080 = vunpack.c.l.b16 %v1602
    %v2081 = vunpack.c.h.b16 %v1602
    %v2082 = vunpack.c.l.b16 %v1603
    %v2083 = vunpack.c.h.b16 %v1603
    %v2084 = vunpack.c.l.b16 %v1604
    %v2085 = vunpack.c.h.b16 %v1604
    %v2086 = vunpack.c.l.b16 %v1605
    %v2087 = vunpack.c.h.b16 %v1605
    %v2088 = vunpack.c.l.b16 %v1606
    %v2089 = vunpack.c.h.b16 %v1606
    %v2090 = vunpack.c.l.b16 %v1607
    %v2091 = vunpack.c.h.b16 %v1607
    %v2092 = vunpack.c.l.b16 %v1608
    %v2093 = vunpack.c.h.b16 %v1608
    %v2094 = vunpack.c.l.b16 %v1609
    %v2095 = vunpack.c.h.b16 %v1609
    %v2096 = vunpack.c.l.b16 %v1610
    %v2097 = vunpack.c.h.b16 %v1610
    %v2098 = vunpack.c.l.b16 %v1611
    %v2099 = vunpack.c.h.b16 %v1611
    %v2100 = vunpack.c.l.b16 %v1612
    %v2101 = vunpack.c.h.b16 %v1612
    %v2102 = vunpack.c.l.b16 %v1613
    %v2103 = vunpack.c.h.b16 %v1613
    %v2104 = vunpack.c.l.b16 %v1614
    %v2105 = vunpack.c.h.b16 %v1614
    %v2106 = vunpack.c.l.b16 %v1615
    %v2107 = vunpack.c.h.b16 %v1615
    %v2108 = vunpack.c.l.b16 %v1616
    %v2109 = vunpack.c.h.b16 %v1616
    %v2110 = vunpack.c.l.b16 %v1617
    %v2111 = vunpack.c.h.b16 %v1617
    %v2112 = vunpack.c.l.b16 %v1618
    %v2113 = vunpack.c.h.b16 %v1618
    %v2114 = vunpack.c.l.b16 %v1619
    %v2115 = vunpack.c.h.b16 %v1619
    %v2116 = vunpack.c.l.b16 %v1620
    %v2117 = vunpack.c.h.b16 %v1620
    %v2118 = vunpack.c.l.b16 %v1621
    %v2119 = vunpack.c.h.b16 %v1621
    %v2120 = vunpack.c.l.b16 %v1622
    %v2121 = vunpack.c.h.b16 %v1622
    %v2122 = vunpack.c.l.b16 %v1623
    %v2123 = vunpack.c.h.b16 %v1623
    %v2124 = vunpack.c.l.b16 %v1624
    %v2125 = vunpack.c.h.b16 %v1624
    %v2126 = vpack.c.b16 %v2066, %v2062
    %v2127 = vpack.c.b16 %v2067, %v2063
    %v2128 = vpack.c.b16 %v2068, %v2064
    %v2129 = vpack.c.b16 %v2069, %v2065
    %v2130 = vpack.c.b16 %v2074, %v2070
    %v2131 = vpack.c.b16 %v2075, %v2071
    %v2132 = vpack.c.b16 %v2076, %v2072
    %v2133 = vpack.c.b16 %v2077, %v2073
    %v2134 = vpack.c.b16 %v2082, %v2078
    %v2135 = vpack.c.b16 %v2083, %v2079
    %v2136 = vpack.c.b16 %v2084, %v2080
    %v2137 = vpack.c.b16 %v2085, %v2081
    %v2138 = vpack.c.b16 %v2090, %v2086
    %v2139 = vpack.c.b16 %v2091, %v2087
    %v2140 = vpack.c.b16 %v2092, %v2088
    %v2141 = vpack.c.b16 %v2093, %v2089
    %v2142 = vpack.c.b16 %v2098, %v2094
    %v2143 = vpack.c.b16 %v2099, %v2095
    %v2144 = vpack.c.b16 %v2100, %v2096
    %v2145 = vpack.c.b16 %v2101, %v2097
    %v2146 = vpack.c.b16 %v2106, %v2102
    %v2147 = vpack.c.b16 %v2107, %v2103
    %v2148 = vpack.c.b16 %v2108, %v2104
    %v2149 = vpack.c.b16 %v2109, %v2105
    %v2150 = vpack.c.b16 %v2114, %v2110
    %v2151 = vpack.c.b16 %v2115, %v2111
    %v2152 = vpack.c.b16 %v2116, %v2112
    %v2153 = vpack.c.b16 %v2117, %v2113
    %v2154 = vpack.c.b16 %v2122, %v2118
    %v2155 = vpack.c.b16 %v2123, %v2119
    %v2156 = vpack.c.b16 %v2124, %v2120
    %v2157 = vpack.c.b16 %v2125, %v2121
    %2190 = vmatprep.subr.bf16.mxu0 %v2155
    %2191 = vmatpush1.bf16.msra.mxu0 %v2154
    %2192 = vmatprep.subr.bf16.mxu0 %v2151
    %2193 = vmatpush1.bf16.msra.mxu0 %v2150
    %2194 = vmatprep.subr.bf16.mxu0 %v2147
    %2195 = vmatpush1.bf16.msra.mxu0 %v2146
    %2196 = vmatprep.subr.bf16.mxu0 %v2143
    %2197 = vmatpush1.bf16.msra.mxu0 %v2142
    %2198 = vmatprep.subr.bf16.mxu0 %v2139
    %2199 = vmatpush1.bf16.msra.mxu0 %v2138
    %2200 = vmatprep.subr.bf16.mxu0 %v2135
    %2201 = vmatpush1.bf16.msra.mxu0 %v2134
    %2202 = vmatprep.subr.bf16.mxu0 %v2131
    %2203 = vmatpush1.bf16.msra.mxu0 %v2130
    %2204 = vmatprep.subr.bf16.mxu0 %v2127
    %2205 = vmatpush1.bf16.msra.mxu0 %v2126
    %2206 = vmatprep.subr.bf16.mxu0 0
    %2207 = vmatpush2.bf16.msra.mxu0 0
    %2208 = vmatprep.subr.bf16.mxu0 0
    %2209 = vmatpush2.bf16.msra.mxu0 0
    %2210 = vmatprep.subr.bf16.mxu0 0
    %2211 = vmatpush2.bf16.msra.mxu0 0
    %2212 = vmatprep.subr.bf16.mxu0 0
    %2213 = vmatpush2.bf16.msra.mxu0 0
    %2214 = vmatprep.subr.bf16.mxu0 0
    %2215 = vmatpush2.bf16.msra.mxu0 0
    %2216 = vmatprep.subr.bf16.mxu0 0
    %2217 = vmatpush2.bf16.msra.mxu0 0
    %2218 = vmatprep.subr.bf16.mxu0 0
    %2219 = vmatpush2.bf16.msra.mxu0 0
    %2220 = vmatprep.subr.bf16.mxu0 0
    %2221 = vmatpush2.bf16.msra.mxu0 0
    %2222 = vmatprep.mubr.bf16.mxu0 0
    %2223 = vmatmul.mubr.bf16.gmra.mxu0 %v2029
    %v2224 = vpop.f32.mrf.mxu0
    %v2225 = vadd.f32 0.0, %v2224
    %v2226 = vpop.f32.mrf.mxu0
    %v2227 = vadd.f32 0.0, %v2226
    %v2228 = vpop.f32.mrf.mxu0
    %v2229 = vpop.f32.mrf.mxu0
    %2230 = vdwg.mxu0
    %2231 = vmatprep.subr.bf16.mxu0 %v2157
    %2232 = vmatpush1.bf16.msra.mxu0 %v2156
    %2233 = vmatprep.subr.bf16.mxu0 %v2153
    %2234 = vmatpush1.bf16.msra.mxu0 %v2152
    %2235 = vmatprep.subr.bf16.mxu0 %v2149
    %2236 = vmatpush1.bf16.msra.mxu0 %v2148
    %2237 = vmatprep.subr.bf16.mxu0 %v2145
    %2238 = vmatpush1.bf16.msra.mxu0 %v2144
    %2239 = vmatprep.subr.bf16.mxu0 %v2141
    %2240 = vmatpush1.bf16.msra.mxu0 %v2140
    %2241 = vmatprep.subr.bf16.mxu0 %v2137
    %2242 = vmatpush1.bf16.msra.mxu0 %v2136
    %2243 = vmatprep.subr.bf16.mxu0 %v2133
    %2244 = vmatpush1.bf16.msra.mxu0 %v2132
    %2245 = vmatprep.subr.bf16.mxu0 %v2129
    %2246 = vmatpush1.bf16.msra.mxu0 %v2128
    %2247 = vmatprep.subr.bf16.mxu0 0
    %2248 = vmatpush2.bf16.msra.mxu0 0
    %2249 = vmatprep.subr.bf16.mxu0 0
    %2250 = vmatpush2.bf16.msra.mxu0 0
    %2251 = vmatprep.subr.bf16.mxu0 0
    %2252 = vmatpush2.bf16.msra.mxu0 0
    %2253 = vmatprep.subr.bf16.mxu0 0
    %2254 = vmatpush2.bf16.msra.mxu0 0
    %2255 = vmatprep.subr.bf16.mxu0 0
    %2256 = vmatpush2.bf16.msra.mxu0 0
    %2257 = vmatprep.subr.bf16.mxu0 0
    %2258 = vmatpush2.bf16.msra.mxu0 0
    %2259 = vmatprep.subr.bf16.mxu0 0
    %2260 = vmatpush2.bf16.msra.mxu0 0
    %2261 = vmatprep.subr.bf16.mxu0 0
    %2262 = vmatpush2.bf16.msra.mxu0 0
    %2263 = vmatprep.mubr.bf16.mxu0 0
    %2264 = vmatmul.mubr.bf16.gmra.mxu0 %v2029
    %v2265 = vpop.f32.mrf.mxu0
    %v2266 = vadd.f32 0.0, %v2265
    %v2267 = vpop.f32.mrf.mxu0
    %v2268 = vadd.f32 0.0, %v2267
    %v2269 = vpop.f32.mrf.mxu0
    %v2270 = vpop.f32.mrf.mxu0
    %2271 = vdwg.mxu0
    %v2272 = vadd.f32 %v2025, %v2225
    %v2273 = vadd.f32 %v2026, %v2227
    %v2274 = vadd.f32 %v2027, %v2266
    %v2275 = vadd.f32 %v2028, %v2268
    %v2276 = vxor.u32 %v2272, 2147483648
    %v2277 = vmul.f32 %v2276, 1.442695
    %v2278 = vpow.pop %v2277
    %v2279 = vadd.f32 %v2278, 1.0
    %v2280 = vrcp.pop %v2279
    %v2281 = vmul.f32 1.0, %v2280
    %v2282 = vxor.u32 %v2273, 2147483648
    %v2283 = vmul.f32 %v2282, 1.442695
    %v2284 = vpow.pop %v2283
    %v2285 = vadd.f32 %v2284, 1.0
    %v2286 = vrcp.pop %v2285
    %v2287 = vmul.f32 1.0, %v2286
    %v2288 = vtanh.pop %v2274
    %v2289 = vxor.u32 %v2275, 2147483648
    %v2290 = vmul.f32 %v2289, 1.442695
    %v2291 = vpow.pop %v2290
    %v2292 = vadd.f32 %v2291, 1.0
    %v2293 = vrcp.pop %v2292
    %v2294 = vmul.f32 1.0, %v2293
    %v2295 = vmul.f32 %v2287, %v2022
    %v2296 = vmul.f32 %v2281, %v2288
    %v2297 = vadd.f32 %v2295, %v2296
    %v2298 = vtanh.pop %v2297
    %v2299 = vmul.f32 %v2294, %v2298
    %v2300 = vld [vmem:[#allocation2 + $0x40] sm:$0xff]
    %v2301 = vld [vmem:[#allocation2 + $0x48] sm:$0xff]
    %v2302 = vld [vmem:[#allocation2 + $0x50] sm:$0xff]
    %v2303 = vld [vmem:[#allocation2 + $0x58] sm:$0xff]
    %v2304 = vpack.c.bf16 %v2299, %v2299
    %2305 = vmatprep.subr.bf16.mxu0 %v2155
    %2306 = vmatpush1.bf16.msra.mxu0 %v2154
    %2307 = vmatprep.subr.bf16.mxu0 %v2151
    %2308 = vmatpush1.bf16.msra.mxu0 %v2150
    %2309 = vmatprep.subr.bf16.mxu0 %v2147
    %2310 = vmatpush1.bf16.msra.mxu0 %v2146
    %2311 = vmatprep.subr.bf16.mxu0 %v2143
    %2312 = vmatpush1.bf16.msra.mxu0 %v2142
    %2313 = vmatprep.subr.bf16.mxu0 %v2139
    %2314 = vmatpush1.bf16.msra.mxu0 %v2138
    %2315 = vmatprep.subr.bf16.mxu0 %v2135
    %2316 = vmatpush1.bf16.msra.mxu0 %v2134
    %2317 = vmatprep.subr.bf16.mxu0 %v2131
    %2318 = vmatpush1.bf16.msra.mxu0 %v2130
    %2319 = vmatprep.subr.bf16.mxu0 %v2127
    %2320 = vmatpush1.bf16.msra.mxu0 %v2126
    %2321 = vmatprep.subr.bf16.mxu0 0
    %2322 = vmatpush2.bf16.msra.mxu0 0
    %2323 = vmatprep.subr.bf16.mxu0 0
    %2324 = vmatpush2.bf16.msra.mxu0 0
    %2325 = vmatprep.subr.bf16.mxu0 0
    %2326 = vmatpush2.bf16.msra.mxu0 0
    %2327 = vmatprep.subr.bf16.mxu0 0
    %2328 = vmatpush2.bf16.msra.mxu0 0
    %2329 = vmatprep.subr.bf16.mxu0 0
    %2330 = vmatpush2.bf16.msra.mxu0 0
    %2331 = vmatprep.subr.bf16.mxu0 0
    %2332 = vmatpush2.bf16.msra.mxu0 0
    %2333 = vmatprep.subr.bf16.mxu0 0
    %2334 = vmatpush2.bf16.msra.mxu0 0
    %2335 = vmatprep.subr.bf16.mxu0 0
    %2336 = vmatpush2.bf16.msra.mxu0 0
    %2337 = vmatprep.mubr.bf16.mxu0 0
    %2338 = vmatmul.mubr.bf16.gmra.mxu0 %v2304
    %v2339 = vpop.f32.mrf.mxu0
    %v2340 = vadd.f32 0.0, %v2339
    %v2341 = vpop.f32.mrf.mxu0
    %v2342 = vadd.f32 0.0, %v2341
    %v2343 = vpop.f32.mrf.mxu0
    %v2344 = vpop.f32.mrf.mxu0
    %2345 = vdwg.mxu0
    %2346 = vmatprep.subr.bf16.mxu0 %v2157
    %2347 = vmatpush1.bf16.msra.mxu0 %v2156
    %2348 = vmatprep.subr.bf16.mxu0 %v2153
    %2349 = vmatpush1.bf16.msra.mxu0 %v2152
    %2350 = vmatprep.subr.bf16.mxu0 %v2149
    %2351 = vmatpush1.bf16.msra.mxu0 %v2148
    %2352 = vmatprep.subr.bf16.mxu0 %v2145
    %2353 = vmatpush1.bf16.msra.mxu0 %v2144
    %2354 = vmatprep.subr.bf16.mxu0 %v2141
    %2355 = vmatpush1.bf16.msra.mxu0 %v2140
    %2356 = vmatprep.subr.bf16.mxu0 %v2137
    %2357 = vmatpush1.bf16.msra.mxu0 %v2136
    %2358 = vmatprep.subr.bf16.mxu0 %v2133
    %2359 = vmatpush1.bf16.msra.mxu0 %v2132
    %2360 = vmatprep.subr.bf16.mxu0 %v2129
    %2361 = vmatpush1.bf16.msra.mxu0 %v2128
    %2362 = vmatprep.subr.bf16.mxu0 0
    %2363 = vmatpush2.bf16.msra.mxu0 0
    %2364 = vmatprep.subr.bf16.mxu0 0
    %2365 = vmatpush2.bf16.msra.mxu0 0
    %2366 = vmatprep.subr.bf16.mxu0 0
    %2367 = vmatpush2.bf16.msra.mxu0 0
    %2368 = vmatprep.subr.bf16.mxu0 0
    %2369 = vmatpush2.bf16.msra.mxu0 0
    %2370 = vmatprep.subr.bf16.mxu0 0
    %2371 = vmatpush2.bf16.msra.mxu0 0
    %2372 = vmatprep.subr.bf16.mxu0 0
    %2373 = vmatpush2.bf16.msra.mxu0 0
    %2374 = vmatprep.subr.bf16.mxu0 0
    %2375 = vmatpush2.bf16.msra.mxu0 0
    %2376 = vmatprep.subr.bf16.mxu0 0
    %2377 = vmatpush2.bf16.msra.mxu0 0
    %2378 = vmatprep.mubr.bf16.mxu0 0
    %2379 = vmatmul.mubr.bf16.gmra.mxu0 %v2304
    %v2380 = vpop.f32.mrf.mxu0
    %v2381 = vadd.f32 0.0, %v2380
    %v2382 = vpop.f32.mrf.mxu0
    %v2383 = vadd.f32 0.0, %v2382
    %v2384 = vpop.f32.mrf.mxu0
    %v2385 = vpop.f32.mrf.mxu0
    %2386 = vdwg.mxu0
    %v2387 = vadd.f32 %v2300, %v2340
    %v2388 = vadd.f32 %v2301, %v2342
    %v2389 = vadd.f32 %v2302, %v2381
    %v2390 = vadd.f32 %v2303, %v2383
    %v2391 = vxor.u32 %v2387, 2147483648
    %v2392 = vmul.f32 %v2391, 1.442695
    %v2393 = vpow.pop %v2392
    %v2394 = vadd.f32 %v2393, 1.0
    %v2395 = vrcp.pop %v2394
    %v2396 = vmul.f32 1.0, %v2395
    %v2397 = vxor.u32 %v2388, 2147483648
    %v2398 = vmul.f32 %v2397, 1.442695
    %v2399 = vpow.pop %v2398
    %v2400 = vadd.f32 %v2399, 1.0
    %v2401 = vrcp.pop %v2400
    %v2402 = vmul.f32 1.0, %v2401
    %v2403 = vtanh.pop %v2389
    %v2404 = vxor.u32 %v2390, 2147483648
    %v2405 = vmul.f32 %v2404, 1.442695
    %v2406 = vpow.pop %v2405
    %v2407 = vadd.f32 %v2406, 1.0
    %v2408 = vrcp.pop %v2407
    %v2409 = vmul.f32 1.0, %v2408
    %v2410 = vmul.f32 %v2402, %v2297
    %v2411 = vmul.f32 %v2396, %v2403
    %v2412 = vadd.f32 %v2410, %v2411
    %v2413 = vtanh.pop %v2412
    %v2414 = vmul.f32 %v2409, %v2413
    %v2415 = vld [vmem:[#allocation2 + $0x60] sm:$0xff]
    %v2416 = vld [vmem:[#allocation2 + $0x68] sm:$0xff]
    %v2417 = vld [vmem:[#allocation2 + $0x70] sm:$0xff]
    %v2418 = vld [vmem:[#allocation2 + $0x78] sm:$0xff]
    %v2419 = vpack.c.bf16 %v2414, %v2414
    %2420 = vmatprep.subr.bf16.mxu0 %v2155
    %2421 = vmatpush1.bf16.msra.mxu0 %v2154
    %2422 = vmatprep.subr.bf16.mxu0 %v2151
    %2423 = vmatpush1.bf16.msra.mxu0 %v2150
    %2424 = vmatprep.subr.bf16.mxu0 %v2147
    %2425 = vmatpush1.bf16.msra.mxu0 %v2146
    %2426 = vmatprep.subr.bf16.mxu0 %v2143
    %2427 = vmatpush1.bf16.msra.mxu0 %v2142
    %2428 = vmatprep.subr.bf16.mxu0 %v2139
    %2429 = vmatpush1.bf16.msra.mxu0 %v2138
    %2430 = vmatprep.subr.bf16.mxu0 %v2135
    %2431 = vmatpush1.bf16.msra.mxu0 %v2134
    %2432 = vmatprep.subr.bf16.mxu0 %v2131
    %2433 = vmatpush1.bf16.msra.mxu0 %v2130
    %2434 = vmatprep.subr.bf16.mxu0 %v2127
    %2435 = vmatpush1.bf16.msra.mxu0 %v2126
    %2436 = vmatprep.subr.bf16.mxu0 0
    %2437 = vmatpush2.bf16.msra.mxu0 0
    %2438 = vmatprep.subr.bf16.mxu0 0
    %2439 = vmatpush2.bf16.msra.mxu0 0
    %2440 = vmatprep.subr.bf16.mxu0 0
    %2441 = vmatpush2.bf16.msra.mxu0 0
    %2442 = vmatprep.subr.bf16.mxu0 0
    %2443 = vmatpush2.bf16.msra.mxu0 0
    %2444 = vmatprep.subr.bf16.mxu0 0
    %2445 = vmatpush2.bf16.msra.mxu0 0
    %2446 = vmatprep.subr.bf16.mxu0 0
    %2447 = vmatpush2.bf16.msra.mxu0 0
    %2448 = vmatprep.subr.bf16.mxu0 0
    %2449 = vmatpush2.bf16.msra.mxu0 0
    %2450 = vmatprep.subr.bf16.mxu0 0
    %2451 = vmatpush2.bf16.msra.mxu0 0
    %2452 = vmatprep.mubr.bf16.mxu0 0
    %2453 = vmatmul.mubr.bf16.gmra.mxu0 %v2419
    %v2454 = vpop.f32.mrf.mxu0
    %v2455 = vadd.f32 0.0, %v2454
    %v2456 = vpop.f32.mrf.mxu0
    %v2457 = vadd.f32 0.0, %v2456
    %v2458 = vpop.f32.mrf.mxu0
    %v2459 = vpop.f32.mrf.mxu0
    %2460 = vdwg.mxu0
    %2461 = vmatprep.subr.bf16.mxu0 %v2157
    %2462 = vmatpush1.bf16.msra.mxu0 %v2156
    %2463 = vmatprep.subr.bf16.mxu0 %v2153
    %2464 = vmatpush1.bf16.msra.mxu0 %v2152
    %2465 = vmatprep.subr.bf16.mxu0 %v2149
    %2466 = vmatpush1.bf16.msra.mxu0 %v2148
    %2467 = vmatprep.subr.bf16.mxu0 %v2145
    %2468 = vmatpush1.bf16.msra.mxu0 %v2144
    %2469 = vmatprep.subr.bf16.mxu0 %v2141
    %2470 = vmatpush1.bf16.msra.mxu0 %v2140
    %2471 = vmatprep.subr.bf16.mxu0 %v2137
    %2472 = vmatpush1.bf16.msra.mxu0 %v2136
    %2473 = vmatprep.subr.bf16.mxu0 %v2133
    %2474 = vmatpush1.bf16.msra.mxu0 %v2132
    %2475 = vmatprep.subr.bf16.mxu0 %v2129
    %2476 = vmatpush1.bf16.msra.mxu0 %v2128
    %2477 = vmatprep.subr.bf16.mxu0 0
    %2478 = vmatpush2.bf16.msra.mxu0 0
    %2479 = vmatprep.subr.bf16.mxu0 0
    %2480 = vmatpush2.bf16.msra.mxu0 0
    %2481 = vmatprep.subr.bf16.mxu0 0
    %2482 = vmatpush2.bf16.msra.mxu0 0
    %2483 = vmatprep.subr.bf16.mxu0 0
    %2484 = vmatpush2.bf16.msra.mxu0 0
    %2485 = vmatprep.subr.bf16.mxu0 0
    %2486 = vmatpush2.bf16.msra.mxu0 0
    %2487 = vmatprep.subr.bf16.mxu0 0
    %2488 = vmatpush2.bf16.msra.mxu0 0
    %2489 = vmatprep.subr.bf16.mxu0 0
    %2490 = vmatpush2.bf16.msra.mxu0 0
    %2491 = vmatprep.subr.bf16.mxu0 0
    %2492 = vmatpush2.bf16.msra.mxu0 0
    %2493 = vmatprep.mubr.bf16.mxu0 0
    %2494 = vmatmul.mubr.bf16.gmra.mxu0 %v2419
    %v2495 = vpop.f32.mrf.mxu0
    %v2496 = vadd.f32 0.0, %v2495
    %v2497 = vpop.f32.mrf.mxu0
    %v2498 = vadd.f32 0.0, %v2497
    %v2499 = vpop.f32.mrf.mxu0
    %v2500 = vpop.f32.mrf.mxu0
    %2501 = vdwg.mxu0
    %v2502 = vadd.f32 %v2415, %v2455
    %v2503 = vadd.f32 %v2416, %v2457
    %v2504 = vadd.f32 %v2417, %v2496
    %v2505 = vadd.f32 %v2418, %v2498
    %v2506 = vxor.u32 %v2502, 2147483648
    %v2507 = vmul.f32 %v2506, 1.442695
    %v2508 = vpow.pop %v2507
    %v2509 = vadd.f32 %v2508, 1.0
    %v2510 = vrcp.pop %v2509
    %v2511 = vmul.f32 1.0, %v2510
    %v2512 = vxor.u32 %v2503, 2147483648
    %v2513 = vmul.f32 %v2512, 1.442695
    %v2514 = vpow.pop %v2513
    %v2515 = vadd.f32 %v2514, 1.0
    %v2516 = vrcp.pop %v2515
    %v2517 = vmul.f32 1.0, %v2516
    %v2518 = vtanh.pop %v2504
    %v2519 = vxor.u32 %v2505, 2147483648
    %v2520 = vmul.f32 %v2519, 1.442695
    %v2521 = vpow.pop %v2520
    %v2522 = vadd.f32 %v2521, 1.0
    %v2523 = vrcp.pop %v2522
    %v2524 = vmul.f32 1.0, %v2523
    %v2525 = vmul.f32 %v2517, %v2412
    %v2526 = vmul.f32 %v2511, %v2518
    %v2527 = vadd.f32 %v2525, %v2526
    %v2528 = vtanh.pop %v2527
    %v2529 = vmul.f32 %v2524, %v2528
    %v2530 = vld [vmem:[#allocation2 + $0x80] sm:$0xff]
    %v2531 = vld [vmem:[#allocation2 + $0x88] sm:$0xff]
    %v2532 = vld [vmem:[#allocation2 + $0x90] sm:$0xff]
    %v2533 = vld [vmem:[#allocation2 + $0x98] sm:$0xff]
    %v2534 = vpack.c.bf16 %v2529, %v2529
    %2535 = vmatprep.subr.bf16.mxu0 %v2155
    %2536 = vmatpush1.bf16.msra.mxu0 %v2154
    %2537 = vmatprep.subr.bf16.mxu0 %v2151
    %2538 = vmatpush1.bf16.msra.mxu0 %v2150
    %2539 = vmatprep.subr.bf16.mxu0 %v2147
    %2540 = vmatpush1.bf16.msra.mxu0 %v2146
    %2541 = vmatprep.subr.bf16.mxu0 %v2143
    %2542 = vmatpush1.bf16.msra.mxu0 %v2142
    %2543 = vmatprep.subr.bf16.mxu0 %v2139
    %2544 = vmatpush1.bf16.msra.mxu0 %v2138
    %2545 = vmatprep.subr.bf16.mxu0 %v2135
    %2546 = vmatpush1.bf16.msra.mxu0 %v2134
    %2547 = vmatprep.subr.bf16.mxu0 %v2131
    %2548 = vmatpush1.bf16.msra.mxu0 %v2130
    %2549 = vmatprep.subr.bf16.mxu0 %v2127
    %2550 = vmatpush1.bf16.msra.mxu0 %v2126
    %2551 = vmatprep.subr.bf16.mxu0 0
    %2552 = vmatpush2.bf16.msra.mxu0 0
    %2553 = vmatprep.subr.bf16.mxu0 0
    %2554 = vmatpush2.bf16.msra.mxu0 0
    %2555 = vmatprep.subr.bf16.mxu0 0
    %2556 = vmatpush2.bf16.msra.mxu0 0
    %2557 = vmatprep.subr.bf16.mxu0 0
    %2558 = vmatpush2.bf16.msra.mxu0 0
    %2559 = vmatprep.subr.bf16.mxu0 0
    %2560 = vmatpush2.bf16.msra.mxu0 0
    %2561 = vmatprep.subr.bf16.mxu0 0
    %2562 = vmatpush2.bf16.msra.mxu0 0
    %2563 = vmatprep.subr.bf16.mxu0 0
    %2564 = vmatpush2.bf16.msra.mxu0 0
    %2565 = vmatprep.subr.bf16.mxu0 0
    %2566 = vmatpush2.bf16.msra.mxu0 0
    %2567 = vmatprep.mubr.bf16.mxu0 0
    %2568 = vmatmul.mubr.bf16.gmra.mxu0 %v2534
    %v2569 = vpop.f32.mrf.mxu0
    %v2570 = vadd.f32 0.0, %v2569
    %v2571 = vpop.f32.mrf.mxu0
    %v2572 = vadd.f32 0.0, %v2571
    %v2573 = vpop.f32.mrf.mxu0
    %v2574 = vpop.f32.mrf.mxu0
    %2575 = vdwg.mxu0
    %2576 = vmatprep.subr.bf16.mxu0 %v2157
    %2577 = vmatpush1.bf16.msra.mxu0 %v2156
    %2578 = vmatprep.subr.bf16.mxu0 %v2153
    %2579 = vmatpush1.bf16.msra.mxu0 %v2152
    %2580 = vmatprep.subr.bf16.mxu0 %v2149
    %2581 = vmatpush1.bf16.msra.mxu0 %v2148
    %2582 = vmatprep.subr.bf16.mxu0 %v2145
    %2583 = vmatpush1.bf16.msra.mxu0 %v2144
    %2584 = vmatprep.subr.bf16.mxu0 %v2141
    %2585 = vmatpush1.bf16.msra.mxu0 %v2140
    %2586 = vmatprep.subr.bf16.mxu0 %v2137
    %2587 = vmatpush1.bf16.msra.mxu0 %v2136
    %2588 = vmatprep.subr.bf16.mxu0 %v2133
    %2589 = vmatpush1.bf16.msra.mxu0 %v2132
    %2590 = vmatprep.subr.bf16.mxu0 %v2129
    %2591 = vmatpush1.bf16.msra.mxu0 %v2128
    %2592 = vmatprep.subr.bf16.mxu0 0
    %2593 = vmatpush2.bf16.msra.mxu0 0
    %2594 = vmatprep.subr.bf16.mxu0 0
    %2595 = vmatpush2.bf16.msra.mxu0 0
    %2596 = vmatprep.subr.bf16.mxu0 0
    %2597 = vmatpush2.bf16.msra.mxu0 0
    %2598 = vmatprep.subr.bf16.mxu0 0
    %2599 = vmatpush2.bf16.msra.mxu0 0
    %2600 = vmatprep.subr.bf16.mxu0 0
    %2601 = vmatpush2.bf16.msra.mxu0 0
    %2602 = vmatprep.subr.bf16.mxu0 0
    %2603 = vmatpush2.bf16.msra.mxu0 0
    %2604 = vmatprep.subr.bf16.mxu0 0
    %2605 = vmatpush2.bf16.msra.mxu0 0
    %2606 = vmatprep.subr.bf16.mxu0 0
    %2607 = vmatpush2.bf16.msra.mxu0 0
    %2608 = vmatprep.mubr.bf16.mxu0 0
    %2609 = vmatmul.mubr.bf16.gmra.mxu0 %v2534
    %v2610 = vpop.f32.mrf.mxu0
    %v2611 = vadd.f32 0.0, %v2610
    %v2612 = vpop.f32.mrf.mxu0
    %v2613 = vadd.f32 0.0, %v2612
    %v2614 = vpop.f32.mrf.mxu0
    %v2615 = vpop.f32.mrf.mxu0
    %2616 = vdwg.mxu0
    %v2617 = vadd.f32 %v2530, %v2570
    %v2618 = vadd.f32 %v2531, %v2572
    %v2619 = vadd.f32 %v2532, %v2611
    %v2620 = vadd.f32 %v2533, %v2613
    %v2621 = vxor.u32 %v2617, 2147483648
    %v2622 = vmul.f32 %v2621, 1.442695
    %v2623 = vpow.pop %v2622
    %v2624 = vadd.f32 %v2623, 1.0
    %v2625 = vrcp.pop %v2624
    %v2626 = vmul.f32 1.0, %v2625
    %v2627 = vxor.u32 %v2618, 2147483648
    %v2628 = vmul.f32 %v2627, 1.442695
    %v2629 = vpow.pop %v2628
    %v2630 = vadd.f32 %v2629, 1.0
    %v2631 = vrcp.pop %v2630
    %v2632 = vmul.f32 1.0, %v2631
    %v2633 = vtanh.pop %v2619
    %v2634 = vxor.u32 %v2620, 2147483648
    %v2635 = vmul.f32 %v2634, 1.442695
    %v2636 = vpow.pop %v2635
    %v2637 = vadd.f32 %v2636, 1.0
    %v2638 = vrcp.pop %v2637
    %v2639 = vmul.f32 1.0, %v2638
    %v2640 = vmul.f32 %v2632, %v2527
    %v2641 = vmul.f32 %v2626, %v2633
    %v2642 = vadd.f32 %v2640, %v2641
    %v2643 = vtanh.pop %v2642
    %v2644 = vmul.f32 %v2639, %v2643
    %v2645 = vld [vmem:[#allocation2 + $0xa0] sm:$0xff]
    %v2646 = vld [vmem:[#allocation2 + $0xa8] sm:$0xff]
    %v2647 = vld [vmem:[#allocation2 + $0xb0] sm:$0xff]
    %v2648 = vld [vmem:[#allocation2 + $0xb8] sm:$0xff]
    %v2649 = vpack.c.bf16 %v2644, %v2644
    %2650 = vmatprep.subr.bf16.mxu0 %v2155
    %2651 = vmatpush1.bf16.msra.mxu0 %v2154
    %2652 = vmatprep.subr.bf16.mxu0 %v2151
    %2653 = vmatpush1.bf16.msra.mxu0 %v2150
    %2654 = vmatprep.subr.bf16.mxu0 %v2147
    %2655 = vmatpush1.bf16.msra.mxu0 %v2146
    %2656 = vmatprep.subr.bf16.mxu0 %v2143
    %2657 = vmatpush1.bf16.msra.mxu0 %v2142
    %2658 = vmatprep.subr.bf16.mxu0 %v2139
    %2659 = vmatpush1.bf16.msra.mxu0 %v2138
    %2660 = vmatprep.subr.bf16.mxu0 %v2135
    %2661 = vmatpush1.bf16.msra.mxu0 %v2134
    %2662 = vmatprep.subr.bf16.mxu0 %v2131
    %2663 = vmatpush1.bf16.msra.mxu0 %v2130
    %2664 = vmatprep.subr.bf16.mxu0 %v2127
    %2665 = vmatpush1.bf16.msra.mxu0 %v2126
    %2666 = vmatprep.subr.bf16.mxu0 0
    %2667 = vmatpush2.bf16.msra.mxu0 0
    %2668 = vmatprep.subr.bf16.mxu0 0
    %2669 = vmatpush2.bf16.msra.mxu0 0
    %2670 = vmatprep.subr.bf16.mxu0 0
    %2671 = vmatpush2.bf16.msra.mxu0 0
    %2672 = vmatprep.subr.bf16.mxu0 0
    %2673 = vmatpush2.bf16.msra.mxu0 0
    %2674 = vmatprep.subr.bf16.mxu0 0
    %2675 = vmatpush2.bf16.msra.mxu0 0
    %2676 = vmatprep.subr.bf16.mxu0 0
    %2677 = vmatpush2.bf16.msra.mxu0 0
    %2678 = vmatprep.subr.bf16.mxu0 0
    %2679 = vmatpush2.bf16.msra.mxu0 0
    %2680 = vmatprep.subr.bf16.mxu0 0
    %2681 = vmatpush2.bf16.msra.mxu0 0
    %2682 = vmatprep.mubr.bf16.mxu0 0
    %2683 = vmatmul.mubr.bf16.gmra.mxu0 %v2649
    %v2684 = vpop.f32.mrf.mxu0
    %v2685 = vadd.f32 0.0, %v2684
    %v2686 = vpop.f32.mrf.mxu0
    %v2687 = vadd.f32 0.0, %v2686
    %v2688 = vpop.f32.mrf.mxu0
    %v2689 = vpop.f32.mrf.mxu0
    %2690 = vdwg.mxu0
    %2691 = vmatprep.subr.bf16.mxu0 %v2157
    %2692 = vmatpush1.bf16.msra.mxu0 %v2156
    %2693 = vmatprep.subr.bf16.mxu0 %v2153
    %2694 = vmatpush1.bf16.msra.mxu0 %v2152
    %2695 = vmatprep.subr.bf16.mxu0 %v2149
    %2696 = vmatpush1.bf16.msra.mxu0 %v2148
    %2697 = vmatprep.subr.bf16.mxu0 %v2145
    %2698 = vmatpush1.bf16.msra.mxu0 %v2144
    %2699 = vmatprep.subr.bf16.mxu0 %v2141
    %2700 = vmatpush1.bf16.msra.mxu0 %v2140
    %2701 = vmatprep.subr.bf16.mxu0 %v2137
    %2702 = vmatpush1.bf16.msra.mxu0 %v2136
    %2703 = vmatprep.subr.bf16.mxu0 %v2133
    %2704 = vmatpush1.bf16.msra.mxu0 %v2132
    %2705 = vmatprep.subr.bf16.mxu0 %v2129
    %2706 = vmatpush1.bf16.msra.mxu0 %v2128
    %2707 = vmatprep.subr.bf16.mxu0 0
    %2708 = vmatpush2.bf16.msra.mxu0 0
    %2709 = vmatprep.subr.bf16.mxu0 0
    %2710 = vmatpush2.bf16.msra.mxu0 0
    %2711 = vmatprep.subr.bf16.mxu0 0
    %2712 = vmatpush2.bf16.msra.mxu0 0
    %2713 = vmatprep.subr.bf16.mxu0 0
    %2714 = vmatpush2.bf16.msra.mxu0 0
    %2715 = vmatprep.subr.bf16.mxu0 0
    %2716 = vmatpush2.bf16.msra.mxu0 0
    %2717 = vmatprep.subr.bf16.mxu0 0
    %2718 = vmatpush2.bf16.msra.mxu0 0
    %2719 = vmatprep.subr.bf16.mxu0 0
    %2720 = vmatpush2.bf16.msra.mxu0 0
    %2721 = vmatprep.subr.bf16.mxu0 0
    %2722 = vmatpush2.bf16.msra.mxu0 0
    %2723 = vmatprep.mubr.bf16.mxu0 0
    %2724 = vmatmul.mubr.bf16.gmra.mxu0 %v2649
    %v2725 = vpop.f32.mrf.mxu0
    %v2726 = vadd.f32 0.0, %v2725
    %v2727 = vpop.f32.mrf.mxu0
    %v2728 = vadd.f32 0.0, %v2727
    %v2729 = vpop.f32.mrf.mxu0
    %v2730 = vpop.f32.mrf.mxu0
    %2731 = vdwg.mxu0
    %v2732 = vadd.f32 %v2645, %v2685
    %v2733 = vadd.f32 %v2646, %v2687
    %v2734 = vadd.f32 %v2647, %v2726
    %v2735 = vadd.f32 %v2648, %v2728
    %v2736 = vxor.u32 %v2732, 2147483648
    %v2737 = vmul.f32 %v2736, 1.442695
    %v2738 = vpow.pop %v2737
    %v2739 = vadd.f32 %v2738, 1.0
    %v2740 = vrcp.pop %v2739
    %v2741 = vmul.f32 1.0, %v2740
    %v2742 = vxor.u32 %v2733, 2147483648
    %v2743 = vmul.f32 %v2742, 1.442695
    %v2744 = vpow.pop %v2743
    %v2745 = vadd.f32 %v2744, 1.0
    %v2746 = vrcp.pop %v2745
    %v2747 = vmul.f32 1.0, %v2746
    %v2748 = vtanh.pop %v2734
    %v2749 = vxor.u32 %v2735, 2147483648
    %v2750 = vmul.f32 %v2749, 1.442695
    %v2751 = vpow.pop %v2750
    %v2752 = vadd.f32 %v2751, 1.0
    %v2753 = vrcp.pop %v2752
    %v2754 = vmul.f32 1.0, %v2753
    %v2755 = vmul.f32 %v2747, %v2642
    %v2756 = vmul.f32 %v2741, %v2748
    %v2757 = vadd.f32 %v2755, %v2756
    %v2758 = vtanh.pop %v2757
    %v2759 = vmul.f32 %v2754, %v2758
    %v2760 = vld [vmem:[#allocation2 + $0xc0] sm:$0xff]
    %v2761 = vld [vmem:[#allocation2 + $0xc8] sm:$0xff]
    %v2762 = vld [vmem:[#allocation2 + $0xd0] sm:$0xff]
    %v2763 = vld [vmem:[#allocation2 + $0xd8] sm:$0xff]
    %v2764 = vpack.c.bf16 %v2759, %v2759
    %2765 = vmatprep.subr.bf16.mxu0 %v2155
    %2766 = vmatpush1.bf16.msra.mxu0 %v2154
    %2767 = vmatprep.subr.bf16.mxu0 %v2151
    %2768 = vmatpush1.bf16.msra.mxu0 %v2150
    %2769 = vmatprep.subr.bf16.mxu0 %v2147
    %2770 = vmatpush1.bf16.msra.mxu0 %v2146
    %2771 = vmatprep.subr.bf16.mxu0 %v2143
    %2772 = vmatpush1.bf16.msra.mxu0 %v2142
    %2773 = vmatprep.subr.bf16.mxu0 %v2139
    %2774 = vmatpush1.bf16.msra.mxu0 %v2138
    %2775 = vmatprep.subr.bf16.mxu0 %v2135
    %2776 = vmatpush1.bf16.msra.mxu0 %v2134
    %2777 = vmatprep.subr.bf16.mxu0 %v2131
    %2778 = vmatpush1.bf16.msra.mxu0 %v2130
    %2779 = vmatprep.subr.bf16.mxu0 %v2127
    %2780 = vmatpush1.bf16.msra.mxu0 %v2126
    %2781 = vmatprep.subr.bf16.mxu0 0
    %2782 = vmatpush2.bf16.msra.mxu0 0
    %2783 = vmatprep.subr.bf16.mxu0 0
    %2784 = vmatpush2.bf16.msra.mxu0 0
    %2785 = vmatprep.subr.bf16.mxu0 0
    %2786 = vmatpush2.bf16.msra.mxu0 0
    %2787 = vmatprep.subr.bf16.mxu0 0
    %2788 = vmatpush2.bf16.msra.mxu0 0
    %2789 = vmatprep.subr.bf16.mxu0 0
    %2790 = vmatpush2.bf16.msra.mxu0 0
    %2791 = vmatprep.subr.bf16.mxu0 0
    %2792 = vmatpush2.bf16.msra.mxu0 0
    %2793 = vmatprep.subr.bf16.mxu0 0
    %2794 = vmatpush2.bf16.msra.mxu0 0
    %2795 = vmatprep.subr.bf16.mxu0 0
    %2796 = vmatpush2.bf16.msra.mxu0 0
    %2797 = vmatprep.mubr.bf16.mxu0 0
    %2798 = vmatmul.mubr.bf16.gmra.mxu0 %v2764
    %v2799 = vpop.f32.mrf.mxu0
    %v2800 = vadd.f32 0.0, %v2799
    %v2801 = vpop.f32.mrf.mxu0
    %v2802 = vadd.f32 0.0, %v2801
    %v2803 = vpop.f32.mrf.mxu0
    %v2804 = vpop.f32.mrf.mxu0
    %2805 = vdwg.mxu0
    %2806 = vmatprep.subr.bf16.mxu0 %v2157
    %2807 = vmatpush1.bf16.msra.mxu0 %v2156
    %2808 = vmatprep.subr.bf16.mxu0 %v2153
    %2809 = vmatpush1.bf16.msra.mxu0 %v2152
    %2810 = vmatprep.subr.bf16.mxu0 %v2149
    %2811 = vmatpush1.bf16.msra.mxu0 %v2148
    %2812 = vmatprep.subr.bf16.mxu0 %v2145
    %2813 = vmatpush1.bf16.msra.mxu0 %v2144
    %2814 = vmatprep.subr.bf16.mxu0 %v2141
    %2815 = vmatpush1.bf16.msra.mxu0 %v2140
    %2816 = vmatprep.subr.bf16.mxu0 %v2137
    %2817 = vmatpush1.bf16.msra.mxu0 %v2136
    %2818 = vmatprep.subr.bf16.mxu0 %v2133
    %2819 = vmatpush1.bf16.msra.mxu0 %v2132
    %2820 = vmatprep.subr.bf16.mxu0 %v2129
    %2821 = vmatpush1.bf16.msra.mxu0 %v2128
    %2822 = vmatprep.subr.bf16.mxu0 0
    %2823 = vmatpush2.bf16.msra.mxu0 0
    %2824 = vmatprep.subr.bf16.mxu0 0
    %2825 = vmatpush2.bf16.msra.mxu0 0
    %2826 = vmatprep.subr.bf16.mxu0 0
    %2827 = vmatpush2.bf16.msra.mxu0 0
    %2828 = vmatprep.subr.bf16.mxu0 0
    %2829 = vmatpush2.bf16.msra.mxu0 0
    %2830 = vmatprep.subr.bf16.mxu0 0
    %2831 = vmatpush2.bf16.msra.mxu0 0
    %2832 = vmatprep.subr.bf16.mxu0 0
    %2833 = vmatpush2.bf16.msra.mxu0 0
    %2834 = vmatprep.subr.bf16.mxu0 0
    %2835 = vmatpush2.bf16.msra.mxu0 0
    %2836 = vmatprep.subr.bf16.mxu0 0
    %2837 = vmatpush2.bf16.msra.mxu0 0
    %2838 = vmatprep.mubr.bf16.mxu0 0
    %2839 = vmatmul.mubr.bf16.gmra.mxu0 %v2764
    %v2840 = vpop.f32.mrf.mxu0
    %v2841 = vadd.f32 0.0, %v2840
    %v2842 = vpop.f32.mrf.mxu0
    %v2843 = vadd.f32 0.0, %v2842
    %v2844 = vpop.f32.mrf.mxu0
    %v2845 = vpop.f32.mrf.mxu0
    %2846 = vdwg.mxu0
    %v2847 = vadd.f32 %v2760, %v2800
    %v2848 = vadd.f32 %v2761, %v2802
    %v2849 = vadd.f32 %v2762, %v2841
    %v2850 = vadd.f32 %v2763, %v2843
    %v2851 = vxor.u32 %v2847, 2147483648
    %v2852 = vmul.f32 %v2851, 1.442695
    %v2853 = vpow.pop %v2852
    %v2854 = vadd.f32 %v2853, 1.0
    %v2855 = vrcp.pop %v2854
    %v2856 = vmul.f32 1.0, %v2855
    %v2857 = vxor.u32 %v2848, 2147483648
    %v2858 = vmul.f32 %v2857, 1.442695
    %v2859 = vpow.pop %v2858
    %v2860 = vadd.f32 %v2859, 1.0
    %v2861 = vrcp.pop %v2860
    %v2862 = vmul.f32 1.0, %v2861
    %v2863 = vtanh.pop %v2849
    %v2864 = vxor.u32 %v2850, 2147483648
    %v2865 = vmul.f32 %v2864, 1.442695
    %v2866 = vpow.pop %v2865
    %v2867 = vadd.f32 %v2866, 1.0
    %v2868 = vrcp.pop %v2867
    %v2869 = vmul.f32 1.0, %v2868
    %v2870 = vmul.f32 %v2862, %v2757
    %v2871 = vmul.f32 %v2856, %v2863
    %v2872 = vadd.f32 %v2870, %v2871
    %v2873 = vtanh.pop %v2872
    %v2874 = vmul.f32 %v2869, %v2873
    %v2875 = vld [vmem:[#allocation2 + $0xe0] sm:$0xff]
    %v2876 = vld [vmem:[#allocation2 + $0xe8] sm:$0xff]
    %v2877 = vld [vmem:[#allocation2 + $0xf0] sm:$0xff]
    %v2878 = vld [vmem:[#allocation2 + $0xf8] sm:$0xff]
    %v2879 = vpack.c.bf16 %v2874, %v2874
    %2880 = vmatprep.subr.bf16.mxu0 %v2155
    %2881 = vmatpush1.bf16.msra.mxu0 %v2154
    %2882 = vmatprep.subr.bf16.mxu0 %v2151
    %2883 = vmatpush1.bf16.msra.mxu0 %v2150
    %2884 = vmatprep.subr.bf16.mxu0 %v2147
    %2885 = vmatpush1.bf16.msra.mxu0 %v2146
    %2886 = vmatprep.subr.bf16.mxu0 %v2143
    %2887 = vmatpush1.bf16.msra.mxu0 %v2142
    %2888 = vmatprep.subr.bf16.mxu0 %v2139
    %2889 = vmatpush1.bf16.msra.mxu0 %v2138
    %2890 = vmatprep.subr.bf16.mxu0 %v2135
    %2891 = vmatpush1.bf16.msra.mxu0 %v2134
    %2892 = vmatprep.subr.bf16.mxu0 %v2131
    %2893 = vmatpush1.bf16.msra.mxu0 %v2130
    %2894 = vmatprep.subr.bf16.mxu0 %v2127
    %2895 = vmatpush1.bf16.msra.mxu0 %v2126
    %2896 = vmatprep.subr.bf16.mxu0 0
    %2897 = vmatpush2.bf16.msra.mxu0 0
    %2898 = vmatprep.subr.bf16.mxu0 0
    %2899 = vmatpush2.bf16.msra.mxu0 0
    %2900 = vmatprep.subr.bf16.mxu0 0
    %2901 = vmatpush2.bf16.msra.mxu0 0
    %2902 = vmatprep.subr.bf16.mxu0 0
    %2903 = vmatpush2.bf16.msra.mxu0 0
    %2904 = vmatprep.subr.bf16.mxu0 0
    %2905 = vmatpush2.bf16.msra.mxu0 0
    %2906 = vmatprep.subr.bf16.mxu0 0
    %2907 = vmatpush2.bf16.msra.mxu0 0
    %2908 = vmatprep.subr.bf16.mxu0 0
    %2909 = vmatpush2.bf16.msra.mxu0 0
    %2910 = vmatprep.subr.bf16.mxu0 0
    %2911 = vmatpush2.bf16.msra.mxu0 0
    %2912 = vmatprep.mubr.bf16.mxu0 0
    %2913 = vmatmul.mubr.bf16.gmra.mxu0 %v2879
    %v2914 = vpop.f32.mrf.mxu0
    %v2915 = vadd.f32 0.0, %v2914
    %v2916 = vpop.f32.mrf.mxu0
    %v2917 = vadd.f32 0.0, %v2916
    %v2918 = vpop.f32.mrf.mxu0
    %v2919 = vpop.f32.mrf.mxu0
    %2920 = vdwg.mxu0
    %2921 = vmatprep.subr.bf16.mxu0 %v2157
    %2922 = vmatpush1.bf16.msra.mxu0 %v2156
    %2923 = vmatprep.subr.bf16.mxu0 %v2153
    %2924 = vmatpush1.bf16.msra.mxu0 %v2152
    %2925 = vmatprep.subr.bf16.mxu0 %v2149
    %2926 = vmatpush1.bf16.msra.mxu0 %v2148
    %2927 = vmatprep.subr.bf16.mxu0 %v2145
    %2928 = vmatpush1.bf16.msra.mxu0 %v2144
    %2929 = vmatprep.subr.bf16.mxu0 %v2141
    %2930 = vmatpush1.bf16.msra.mxu0 %v2140
    %2931 = vmatprep.subr.bf16.mxu0 %v2137
    %2932 = vmatpush1.bf16.msra.mxu0 %v2136
    %2933 = vmatprep.subr.bf16.mxu0 %v2133
    %2934 = vmatpush1.bf16.msra.mxu0 %v2132
    %2935 = vmatprep.subr.bf16.mxu0 %v2129
    %2936 = vmatpush1.bf16.msra.mxu0 %v2128
    %2937 = vmatprep.subr.bf16.mxu0 0
    %2938 = vmatpush2.bf16.msra.mxu0 0
    %2939 = vmatprep.subr.bf16.mxu0 0
    %2940 = vmatpush2.bf16.msra.mxu0 0
    %2941 = vmatprep.subr.bf16.mxu0 0
    %2942 = vmatpush2.bf16.msra.mxu0 0
    %2943 = vmatprep.subr.bf16.mxu0 0
    %2944 = vmatpush2.bf16.msra.mxu0 0
    %2945 = vmatprep.subr.bf16.mxu0 0
    %2946 = vmatpush2.bf16.msra.mxu0 0
    %2947 = vmatprep.subr.bf16.mxu0 0
    %2948 = vmatpush2.bf16.msra.mxu0 0
    %2949 = vmatprep.subr.bf16.mxu0 0
    %2950 = vmatpush2.bf16.msra.mxu0 0
    %2951 = vmatprep.subr.bf16.mxu0 0
    %2952 = vmatpush2.bf16.msra.mxu0 0
    %2953 = vmatprep.mubr.bf16.mxu0 0
    %2954 = vmatmul.mubr.bf16.gmra.mxu0 %v2879
    %v2955 = vpop.f32.mrf.mxu0
    %v2956 = vadd.f32 0.0, %v2955
    %v2957 = vpop.f32.mrf.mxu0
    %v2958 = vadd.f32 0.0, %v2957
    %v2959 = vpop.f32.mrf.mxu0
    %v2960 = vpop.f32.mrf.mxu0
    %2961 = vdwg.mxu0
    %v2962 = vadd.f32 %v2875, %v2915
    %v2963 = vadd.f32 %v2876, %v2917
    %v2964 = vadd.f32 %v2877, %v2956
    %v2965 = vadd.f32 %v2878, %v2958
    %v2966 = vxor.u32 %v2962, 2147483648
    %v2967 = vmul.f32 %v2966, 1.442695
    %v2968 = vpow.pop %v2967
    %v2969 = vadd.f32 %v2968, 1.0
    %v2970 = vrcp.pop %v2969
    %v2971 = vmul.f32 1.0, %v2970
    %v2972 = vxor.u32 %v2963, 2147483648
    %v2973 = vmul.f32 %v2972, 1.442695
    %v2974 = vpow.pop %v2973
    %v2975 = vadd.f32 %v2974, 1.0
    %v2976 = vrcp.pop %v2975
    %v2977 = vmul.f32 1.0, %v2976
    %v2978 = vtanh.pop %v2964
    %v2979 = vxor.u32 %v2965, 2147483648
    %v2980 = vmul.f32 %v2979, 1.442695
    %v2981 = vpow.pop %v2980
    %v2982 = vadd.f32 %v2981, 1.0
    %v2983 = vrcp.pop %v2982
    %v2984 = vmul.f32 1.0, %v2983
    %v2985 = vmul.f32 %v2977, %v2872
    %v2986 = vmul.f32 %v2971, %v2978
    %v2987 = vadd.f32 %v2985, %v2986
    %v2988 = vtanh.pop %v2987
    %v2989 = vmul.f32 %v2984, %v2988
    %v2990 = vtanh.pop %v1559
    %v2991 = vtanh.pop %v2989
    %v2992 = vpack.c.bf16 %v2990, %v2990
    %v2993 = vpack.c.bf16 %v1558, %v1558
    %v2994 = vpack.c.bf16 %v2991, %v2991
    %v2995 = vpack.c.bf16 %v2988, %v2988
    %v2996 = vld [vmem:[#allocation13] sm:$0xf]
    %v2997 = vld [vmem:[#allocation13 + $0x4] sm:$0xf]
    %v2998 = vld [vmem:[#allocation13 + $0x8] sm:$0xf]
    %v2999 = vld [vmem:[#allocation13 + $0xc] sm:$0xf]
    %v3000 = vld [vmem:[#allocation13 + $0x10] sm:$0xf]
    %v3001 = vld [vmem:[#allocation13 + $0x14] sm:$0xf]
    %v3002 = vld [vmem:[#allocation13 + $0x18] sm:$0xf]
    %v3003 = vld [vmem:[#allocation13 + $0x1c] sm:$0xf]
    %v3004 = vld [vmem:[#allocation13 + $0x20] sm:$0xf]
    %v3005 = vld [vmem:[#allocation13 + $0x24] sm:$0xf]
    %v3006 = vld [vmem:[#allocation13 + $0x28] sm:$0xf]
    %v3007 = vld [vmem:[#allocation13 + $0x2c] sm:$0xf]
    %v3008 = vld [vmem:[#allocation13 + $0x30] sm:$0xf]
    %v3009 = vld [vmem:[#allocation13 + $0x34] sm:$0xf]
    %v3010 = vld [vmem:[#allocation13 + $0x38] sm:$0xf]
    %v3011 = vld [vmem:[#allocation13 + $0x3c] sm:$0xf]
    %v3012 = vld [vmem:[#allocation13 + $0x40] sm:$0xf]
    %v3013 = vld [vmem:[#allocation13 + $0x44] sm:$0xf]
    %v3014 = vld [vmem:[#allocation13 + $0x48] sm:$0xf]
    %v3015 = vld [vmem:[#allocation13 + $0x4c] sm:$0xf]
    %v3016 = vld [vmem:[#allocation13 + $0x50] sm:$0xf]
    %v3017 = vld [vmem:[#allocation13 + $0x54] sm:$0xf]
    %v3018 = vld [vmem:[#allocation13 + $0x58] sm:$0xf]
    %v3019 = vld [vmem:[#allocation13 + $0x5c] sm:$0xf]
    %v3020 = vld [vmem:[#allocation13 + $0x60] sm:$0xf]
    %v3021 = vld [vmem:[#allocation13 + $0x64] sm:$0xf]
    %v3022 = vld [vmem:[#allocation13 + $0x68] sm:$0xf]
    %v3023 = vld [vmem:[#allocation13 + $0x6c] sm:$0xf]
    %v3024 = vld [vmem:[#allocation13 + $0x70] sm:$0xf]
    %v3025 = vld [vmem:[#allocation13 + $0x74] sm:$0xf]
    %v3026 = vld [vmem:[#allocation13 + $0x78] sm:$0xf]
    %v3027 = vld [vmem:[#allocation13 + $0x7c] sm:$0xf]
    %v3028 = vld [vmem:[#allocation13 + $0x80] sm:$0xf]
    %v3029 = vld [vmem:[#allocation13 + $0x84] sm:$0xf]
    %v3030 = vld [vmem:[#allocation13 + $0x88] sm:$0xf]
    %v3031 = vld [vmem:[#allocation13 + $0x8c] sm:$0xf]
    %v3032 = vld [vmem:[#allocation13 + $0x90] sm:$0xf]
    %v3033 = vld [vmem:[#allocation13 + $0x94] sm:$0xf]
    %v3034 = vld [vmem:[#allocation13 + $0x98] sm:$0xf]
    %v3035 = vld [vmem:[#allocation13 + $0x9c] sm:$0xf]
    %v3036 = vld [vmem:[#allocation13 + $0xa0] sm:$0xf]
    %v3037 = vld [vmem:[#allocation13 + $0xa4] sm:$0xf]
    %v3038 = vld [vmem:[#allocation13 + $0xa8] sm:$0xf]
    %v3039 = vld [vmem:[#allocation13 + $0xac] sm:$0xf]
    %v3040 = vld [vmem:[#allocation13 + $0xb0] sm:$0xf]
    %v3041 = vld [vmem:[#allocation13 + $0xb4] sm:$0xf]
    %v3042 = vld [vmem:[#allocation13 + $0xb8] sm:$0xf]
    %v3043 = vld [vmem:[#allocation13 + $0xbc] sm:$0xf]
    %v3044 = vld [vmem:[#allocation13 + $0xc0] sm:$0xf]
    %v3045 = vld [vmem:[#allocation13 + $0xc4] sm:$0xf]
    %v3046 = vld [vmem:[#allocation13 + $0xc8] sm:$0xf]
    %v3047 = vld [vmem:[#allocation13 + $0xcc] sm:$0xf]
    %v3048 = vld [vmem:[#allocation13 + $0xd0] sm:$0xf]
    %v3049 = vld [vmem:[#allocation13 + $0xd4] sm:$0xf]
    %v3050 = vld [vmem:[#allocation13 + $0xd8] sm:$0xf]
    %v3051 = vld [vmem:[#allocation13 + $0xdc] sm:$0xf]
    %v3052 = vld [vmem:[#allocation13 + $0xe0] sm:$0xf]
    %v3053 = vld [vmem:[#allocation13 + $0xe4] sm:$0xf]
    %v3054 = vld [vmem:[#allocation13 + $0xe8] sm:$0xf]
    %v3055 = vld [vmem:[#allocation13 + $0xec] sm:$0xf]
    %v3056 = vld [vmem:[#allocation13 + $0xf0] sm:$0xf]
    %v3057 = vld [vmem:[#allocation13 + $0xf4] sm:$0xf]
    %v3058 = vld [vmem:[#allocation13 + $0xf8] sm:$0xf]
    %v3059 = vld [vmem:[#allocation13 + $0xfc] sm:$0xf]
    %v3060 = vld [vmem:[%s8] sm:$0x1]
    %v3062 = vlaneseq
    %v3063 = vshrl.u32 %v3062, 7
    %v3064 = vsub.s32 0, %v3063
    %v3065 = vrot.slane %v3060, %v3064
    %v3131 = vunpack.c.l.b16 %v2996
    %v3132 = vunpack.c.l.b16 %v2997
    %v3133 = vunpack.c.l.b16 %v2998
    %v3134 = vunpack.c.l.b16 %v2999
    %v3135 = vunpack.c.l.b16 %v3000
    %v3136 = vunpack.c.l.b16 %v3001
    %v3137 = vunpack.c.l.b16 %v3002
    %v3138 = vunpack.c.l.b16 %v3003
    %v3139 = vunpack.c.l.b16 %v3004
    %v3140 = vunpack.c.l.b16 %v3005
    %v3141 = vunpack.c.l.b16 %v3006
    %v3142 = vunpack.c.l.b16 %v3007
    %v3143 = vunpack.c.l.b16 %v3008
    %v3144 = vunpack.c.l.b16 %v3009
    %v3145 = vunpack.c.l.b16 %v3010
    %v3146 = vunpack.c.l.b16 %v3011
    %v3147 = vunpack.c.l.b16 %v3012
    %v3148 = vunpack.c.l.b16 %v3013
    %v3149 = vunpack.c.l.b16 %v3014
    %v3150 = vunpack.c.l.b16 %v3015
    %v3151 = vunpack.c.l.b16 %v3016
    %v3152 = vunpack.c.l.b16 %v3017
    %v3153 = vunpack.c.l.b16 %v3018
    %v3154 = vunpack.c.l.b16 %v3019
    %v3155 = vunpack.c.l.b16 %v3020
    %v3156 = vunpack.c.l.b16 %v3021
    %v3157 = vunpack.c.l.b16 %v3022
    %v3158 = vunpack.c.l.b16 %v3023
    %v3159 = vunpack.c.l.b16 %v3024
    %v3160 = vunpack.c.l.b16 %v3025
    %v3161 = vunpack.c.l.b16 %v3026
    %v3162 = vunpack.c.l.b16 %v3027
    %v3163 = vunpack.c.l.b16 %v3028
    %v3164 = vunpack.c.l.b16 %v3029
    %v3165 = vunpack.c.l.b16 %v3030
    %v3166 = vunpack.c.l.b16 %v3031
    %v3167 = vunpack.c.l.b16 %v3032
    %v3168 = vunpack.c.l.b16 %v3033
    %v3169 = vunpack.c.l.b16 %v3034
    %v3170 = vunpack.c.l.b16 %v3035
    %v3171 = vunpack.c.l.b16 %v3036
    %v3172 = vunpack.c.l.b16 %v3037
    %v3173 = vunpack.c.l.b16 %v3038
    %v3174 = vunpack.c.l.b16 %v3039
    %v3175 = vunpack.c.l.b16 %v3040
    %v3176 = vunpack.c.l.b16 %v3041
    %v3177 = vunpack.c.l.b16 %v3042
    %v3178 = vunpack.c.l.b16 %v3043
    %v3179 = vunpack.c.l.b16 %v3044
    %v3180 = vunpack.c.l.b16 %v3045
    %v3181 = vunpack.c.l.b16 %v3046
    %v3182 = vunpack.c.l.b16 %v3047
    %v3183 = vunpack.c.l.b16 %v3048
    %v3184 = vunpack.c.l.b16 %v3049
    %v3185 = vunpack.c.l.b16 %v3050
    %v3186 = vunpack.c.l.b16 %v3051
    %v3187 = vunpack.c.l.b16 %v3052
    %v3188 = vunpack.c.l.b16 %v3053
    %v3189 = vunpack.c.l.b16 %v3054
    %v3190 = vunpack.c.l.b16 %v3055
    %v3191 = vunpack.c.l.b16 %v3056
    %v3192 = vunpack.c.l.b16 %v3057
    %v3193 = vunpack.c.l.b16 %v3058
    %v3194 = vunpack.c.l.b16 %v3059
    %v3195 = vpack.c.b16 %v3132, %v3131
    %v3196 = vpack.c.b16 %v3134, %v3133
    %v3197 = vpack.c.b16 %v3136, %v3135
    %v3198 = vpack.c.b16 %v3138, %v3137
    %v3199 = vpack.c.b16 %v3140, %v3139
    %v3200 = vpack.c.b16 %v3142, %v3141
    %v3201 = vpack.c.b16 %v3144, %v3143
    %v3202 = vpack.c.b16 %v3146, %v3145
    %v3203 = vpack.c.b16 %v3148, %v3147
    %v3204 = vpack.c.b16 %v3150, %v3149
    %v3205 = vpack.c.b16 %v3152, %v3151
    %v3206 = vpack.c.b16 %v3154, %v3153
    %v3207 = vpack.c.b16 %v3156, %v3155
    %v3208 = vpack.c.b16 %v3158, %v3157
    %v3209 = vpack.c.b16 %v3160, %v3159
    %v3210 = vpack.c.b16 %v3162, %v3161
    %v3211 = vpack.c.b16 %v3164, %v3163
    %v3212 = vpack.c.b16 %v3166, %v3165
    %v3213 = vpack.c.b16 %v3168, %v3167
    %v3214 = vpack.c.b16 %v3170, %v3169
    %v3215 = vpack.c.b16 %v3172, %v3171
    %v3216 = vpack.c.b16 %v3174, %v3173
    %v3217 = vpack.c.b16 %v3176, %v3175
    %v3218 = vpack.c.b16 %v3178, %v3177
    %v3219 = vpack.c.b16 %v3180, %v3179
    %v3220 = vpack.c.b16 %v3182, %v3181
    %v3221 = vpack.c.b16 %v3184, %v3183
    %v3222 = vpack.c.b16 %v3186, %v3185
    %v3223 = vpack.c.b16 %v3188, %v3187
    %v3224 = vpack.c.b16 %v3190, %v3189
    %v3225 = vpack.c.b16 %v3192, %v3191
    %v3226 = vpack.c.b16 %v3194, %v3193
    %3259 = vmatprep.subr.bf16.mxu0 0
    %3260 = vmatpush1.bf16.msra.mxu0 %v3202
    %3261 = vmatprep.subr.bf16.mxu0 0
    %3262 = vmatpush1.bf16.msra.mxu0 %v3201
    %3263 = vmatprep.subr.bf16.mxu0 0
    %3264 = vmatpush1.bf16.msra.mxu0 %v3200
    %3265 = vmatprep.subr.bf16.mxu0 0
    %3266 = vmatpush1.bf16.msra.mxu0 %v3199
    %3267 = vmatprep.subr.bf16.mxu0 0
    %3268 = vmatpush1.bf16.msra.mxu0 %v3198
    %3269 = vmatprep.subr.bf16.mxu0 0
    %3270 = vmatpush1.bf16.msra.mxu0 %v3197
    %3271 = vmatprep.subr.bf16.mxu0 0
    %3272 = vmatpush1.bf16.msra.mxu0 %v3196
    %3273 = vmatprep.subr.bf16.mxu0 0
    %3274 = vmatpush1.bf16.msra.mxu0 %v3195
    %3275 = vmatprep.subr.bf16.mxu0 0
    %3276 = vmatpush2.bf16.msra.mxu0 %v3210
    %3277 = vmatprep.subr.bf16.mxu0 0
    %3278 = vmatpush2.bf16.msra.mxu0 %v3209
    %3279 = vmatprep.subr.bf16.mxu0 0
    %3280 = vmatpush2.bf16.msra.mxu0 %v3208
    %3281 = vmatprep.subr.bf16.mxu0 0
    %3282 = vmatpush2.bf16.msra.mxu0 %v3207
    %3283 = vmatprep.subr.bf16.mxu0 0
    %3284 = vmatpush2.bf16.msra.mxu0 %v3206
    %3285 = vmatprep.subr.bf16.mxu0 0
    %3286 = vmatpush2.bf16.msra.mxu0 %v3205
    %3287 = vmatprep.subr.bf16.mxu0 0
    %3288 = vmatpush2.bf16.msra.mxu0 %v3204
    %3289 = vmatprep.subr.bf16.mxu0 0
    %3290 = vmatpush2.bf16.msra.mxu0 %v3203
    %3291 = vmatprep.mubr.bf16.mxu0 %v2993
    %3292 = vmatmul.mubr.bf16.gmra.mxu0 %v2992
    %v3293 = vpop.f32.mrf.mxu0
    %v3294 = vadd.f32 %v3065, %v3293
    %v3295 = vpop.f32.mrf.mxu0
    %v3296 = vpop.f32.mrf.mxu0
    %v3297 = vpop.f32.mrf.mxu0
    %3298 = vdwg.mxu0
    %3299 = vmatprep.subr.bf16.mxu0 0
    %3300 = vmatpush1.bf16.msra.mxu0 %v3218
    %3301 = vmatprep.subr.bf16.mxu0 0
    %3302 = vmatpush1.bf16.msra.mxu0 %v3217
    %3303 = vmatprep.subr.bf16.mxu0 0
    %3304 = vmatpush1.bf16.msra.mxu0 %v3216
    %3305 = vmatprep.subr.bf16.mxu0 0
    %3306 = vmatpush1.bf16.msra.mxu0 %v3215
    %3307 = vmatprep.subr.bf16.mxu0 0
    %3308 = vmatpush1.bf16.msra.mxu0 %v3214
    %3309 = vmatprep.subr.bf16.mxu0 0
    %3310 = vmatpush1.bf16.msra.mxu0 %v3213
    %3311 = vmatprep.subr.bf16.mxu0 0
    %3312 = vmatpush1.bf16.msra.mxu0 %v3212
    %3313 = vmatprep.subr.bf16.mxu0 0
    %3314 = vmatpush1.bf16.msra.mxu0 %v3211
    %3315 = vmatprep.subr.bf16.mxu0 0
    %3316 = vmatpush2.bf16.msra.mxu0 %v3226
    %3317 = vmatprep.subr.bf16.mxu0 0
    %3318 = vmatpush2.bf16.msra.mxu0 %v3225
    %3319 = vmatprep.subr.bf16.mxu0 0
    %3320 = vmatpush2.bf16.msra.mxu0 %v3224
    %3321 = vmatprep.subr.bf16.mxu0 0
    %3322 = vmatpush2.bf16.msra.mxu0 %v3223
    %3323 = vmatprep.subr.bf16.mxu0 0
    %3324 = vmatpush2.bf16.msra.mxu0 %v3222
    %3325 = vmatprep.subr.bf16.mxu0 0
    %3326 = vmatpush2.bf16.msra.mxu0 %v3221
    %3327 = vmatprep.subr.bf16.mxu0 0
    %3328 = vmatpush2.bf16.msra.mxu0 %v3220
    %3329 = vmatprep.subr.bf16.mxu0 0
    %3330 = vmatpush2.bf16.msra.mxu0 %v3219
    %3331 = vmatprep.mubr.bf16.mxu0 %v2995
    %3332 = vmatmul.mubr.bf16.gmra.mxu0 %v2994
    %v3333 = vpop.f32.mrf.mxu0
    %v3334 = vadd.f32 %v3294, %v3333
    %v3335 = vpop.f32.mrf.mxu0
    %v3336 = vpop.f32.mrf.mxu0
    %v3337 = vpop.f32.mrf.mxu0
    %3338 = vdwg.mxu0
    %3339 = vst [vmem:[#allocation15] sm:$0xff] %v3334
    // Predicated region
    $region62: #{tpu_custom_call.1} parent=1 // pred_check
      _
    $region63: #{tpu_custom_call.1} parent=1 // pred_check_branch
      %3341 = sbr.rel (0) target = $region65
    $region64: #{tpu_custom_call.1} parent=1 // pred_region
      %s3343 = ssub.s32 128, 128
      %3344 = vsyncadd [#allocation6], %s3343
      %s3346 = sshll.u32 [#allocation15], 4
      %s3347 = int_to_ptr.vmem [resolvable:$true] %s3346
      %3349 = dma.vmem_to_hbm [thread:$0]  %s3347, 128, %s9, [#allocation6]
    $region65: #{tpu_custom_call.1} parent=1 // pred_fallthru
      _
    // Predicated region
    $region66: #{tpu_custom_call.1} parent=1 // pred_check
      _
    $region67: #{tpu_custom_call.1} parent=1 // pred_check_branch
      %3351 = sbr.rel (0) target = $region69
    $region68: #{tpu_custom_call.1} parent=1 // pred_region
      %3352 = dma.done [#allocation6], 128
    $region69: #{tpu_custom_call.1} parent=1 // pred_fallthru
      _
    %3353 = vsyncpa [#allocation5], 1
    %3354 = vsyncpa [#allocation8], 1
    %3355 = vsyncpa [#allocation11], 1
    %3356 = vsyncpa [#allocation14], 1
    %3357 = vsyncpa [#allocation6], 1

</llo_original>
